<compile_context>
chip_gen: v7x
topology: tpu7x:2x2x1
jax: 0.10.0
libtpu: 0.0.40
codegen_flags: <defaults>
</compile_context>

<pallas_src>
import jax
import jax.numpy as jnp
from jax import lax
from jax.experimental import pallas as pl
from jax.experimental.pallas import tpu as pltpu

CPAD = 128  # lane-dense padding for all channel-ish GEMM output dims


# ---------------------------------------------------------------------------
# Fused ASPP kernel (one grid step == one image)
# ---------------------------------------------------------------------------
def _make_fused_aspp_kernel(H, W, Cin, dmax, rates, K):
    Hp = H + 2 * dmax
    Wp = W + 2 * dmax
    inv_hw = 1.0 / float(H * W)

    def kernel(xp_ref, wb_ref, bb_ref, wpool_ref, bpool_ref,
               wps_ref, wpp_ref, bproj_ref, o_ref):
        xp = xp_ref[...]                               # [1, Hp, Wp, Cin]

        # --- im2col slab: center tap (1x1 branch) + 9 taps per atrous rate ---
        taps = [xp[:, dmax:dmax + H, dmax:dmax + W, :]]
        for r in rates:
            base = dmax - r
            for ky in range(3):
                y0 = base + ky * r
                for kx in range(3):
                    x0 = base + kx * r
                    taps.append(xp[:, y0:y0 + H, x0:x0 + W, :])
        feat = jnp.concatenate(taps, axis=-1).reshape(H * W, K)   # [M, K]

        # --- all spatial branches in one GEMM (block-diagonal scaled weights) ---
        acts = jnp.dot(feat, wb_ref[...], preferred_element_type=jnp.float32)
        acts = jnp.maximum(acts + bb_ref[...], 0.0)               # [M, CPAD]

        # --- pooling branch: zero padding => sum(xp) == sum(x) ---
        pooled = jnp.sum(xp.reshape(Hp * Wp, Cin), axis=0, keepdims=True) * inv_hw
        pact = jnp.dot(pooled, wpool_ref[...], preferred_element_type=jnp.float32)
        pact = jnp.maximum(pact + bpool_ref[...], 0.0)            # [1, CPAD]

        # --- projection: accumulate spatial branches + rank-1 pooling term ---
        proj = jnp.dot(acts, wps_ref[...], preferred_element_type=jnp.float32)
        proj = proj + jnp.dot(pact, wpp_ref[...], preferred_element_type=jnp.float32)
        proj = proj + bproj_ref[...]
        o_ref[...] = jnp.maximum(proj, 0.0).astype(o_ref.dtype)   # [M, CPAD]

    return kernel


# ---------------------------------------------------------------------------
# Parameter construction (deterministic), BN folding, fused-weight packing
# ---------------------------------------------------------------------------
def fold_bn(gamma, beta, mean, var, eps=1e-5):
    scale = gamma / jnp.sqrt(var + eps)
    bias = beta - mean * scale
    return scale, bias


def make_bn_params(key, c):
    k1, k2, k3, k4 = jax.random.split(key, 4)
    gamma = 1.0 + 0.1 * jax.random.normal(k1, (c,), jnp.float32)
    beta = 0.05 * jax.random.normal(k2, (c,), jnp.float32)
    mean = 0.1 * jax.random.normal(k3, (c,), jnp.float32)
    var = 1.0 + 0.1 * jnp.abs(jax.random.normal(k4, (c,), jnp.float32))
    return fold_bn(gamma, beta, mean, var)


def make_aspp_params(key, in_ch, conv_ch, rates, out_ch):
    keys = jax.random.split(key, 16)
    params = {}
    params["w1x1"] = 0.1 * jax.random.normal(keys[0], (in_ch, conv_ch), jnp.float32)
    params["bn1x1"] = make_bn_params(keys[1], conv_ch)
    params["atrous"] = []
    for i, r in enumerate(rates):
        w = 0.1 * jax.random.normal(keys[2 + 2 * i], (3, 3, in_ch, conv_ch), jnp.float32)
        bn = make_bn_params(keys[3 + 2 * i], conv_ch)
        params["atrous"].append((r, w, bn))
    params["wpool"] = 0.1 * jax.random.normal(keys[10], (in_ch, conv_ch), jnp.float32)
    params["bnpool"] = make_bn_params(keys[11], conv_ch)
    n_branch = 2 + len(rates)
    params["wproj"] = 0.1 * jax.random.normal(
        keys[12], (n_branch * conv_ch, out_ch), jnp.float32)
    params["bnproj"] = make_bn_params(keys[13], out_ch)
    return params


def build_fused_params(params, in_ch, conv_ch, rates, out_ch):
    """Fold BN scales into conv weights, pack block-diagonal / lane-padded mats."""
    n_rates = len(rates)
    n_spatial = 1 + n_rates
    K = in_ch * (1 + 9 * n_rates)

    wb = jnp.zeros((K, CPAD), jnp.float32)
    bb = jnp.zeros((1, CPAD), jnp.float32)

    s, b = params["bn1x1"]
    wb = wb.at[:in_ch, :conv_ch].set(params["w1x1"] * s[None, :])
    bb = bb.at[0, :conv_ch].set(b)

    for i, (r, w, (s, b)) in enumerate(params["atrous"]):
        r0 = in_ch + i * 9 * in_ch
        c0 = (i + 1) * conv_ch
        w2 = w.reshape(9 * in_ch, conv_ch) * s[None, :]
        wb = wb.at[r0:r0 + 9 * in_ch, c0:c0 + conv_ch].set(w2)
        bb = bb.at[0, c0:c0 + conv_ch].set(b)

    s, b = params["bnpool"]
    wpool = jnp.zeros((in_ch, CPAD), jnp.float32).at[:, :conv_ch].set(
        params["wpool"] * s[None, :])
    bpool = jnp.zeros((1, CPAD), jnp.float32).at[0, :conv_ch].set(b)

    s, b = params["bnproj"]
    wproj_s = params["wproj"] * s[None, :]          # [(2+R)*cc, out_ch]
    wps = jnp.zeros((CPAD, CPAD), jnp.float32).at[
        :n_spatial * conv_ch, :out_ch].set(wproj_s[:n_spatial * conv_ch])
    wpp = jnp.zeros((CPAD, CPAD), jnp.float32).at[
        :conv_ch, :out_ch].set(wproj_s[n_spatial * conv_ch:])
    bproj = jnp.zeros((1, CPAD), jnp.float32).at[0, :out_ch].set(b)

    return dict(wb=wb, bb=bb, wpool=wpool, bpool=bpool,
                wps=wps, wpp=wpp, bproj=bproj, K=K)


# ---------------------------------------------------------------------------
# Public forward: NCHW in -> NCHW out
# ---------------------------------------------------------------------------
def aspp_forward(x_nchw, params, rates, conv_ch, out_ch):
    N, Cin, H, W = x_nchw.shape
    rates = tuple(int(r) for r in rates)
    dmax = max(rates)
    Hp, Wp = H + 2 * dmax, W + 2 * dmax

    # NCHW -> NHWC, pad once to the max dilation (zeros)
    x = jnp.transpose(x_nchw, (0, 2, 3, 1)).astype(jnp.float32)
    xp = jnp.pad(x, ((0, 0), (dmax, dmax), (dmax, dmax), (0, 0)))

    fp = build_fused_params(params, Cin, conv_ch, rates, out_ch)
    K = fp["K"]

    kernel = _make_fused_aspp_kernel(H, W, Cin, dmax, rates, K)

    out = pl.pallas_call(
        kernel,
        out_shape=jax.ShapeDtypeStruct((N * H * W, CPAD), jnp.float32),
        grid_spec=pltpu.PrefetchScalarGridSpec(
            num_scalar_prefetch=0,
            grid=(N,),
            in_specs=[
                pl.BlockSpec((1, Hp, Wp, Cin), lambda n: (n, 0, 0, 0)),
                pl.BlockSpec((K, CPAD), lambda n: (0, 0)),
                pl.BlockSpec((1, CPAD), lambda n: (0, 0)),
                pl.BlockSpec((Cin, CPAD), lambda n: (0, 0)),
                pl.BlockSpec((1, CPAD), lambda n: (0, 0)),
                pl.BlockSpec((CPAD, CPAD), lambda n: (0, 0)),
                pl.BlockSpec((CPAD, CPAD), lambda n: (0, 0)),
                pl.BlockSpec((1, CPAD), lambda n: (0, 0)),
            ],
            out_specs=pl.BlockSpec((H * W, CPAD), lambda n: (n, 0)),
        ),
        compiler_params=pltpu.CompilerParams(
            dimension_semantics=("parallel",)),
    )(xp, fp["wb"], fp["bb"], fp["wpool"], fp["bpool"],
      fp["wps"], fp["wpp"], fp["bproj"])

    out = out[:, :out_ch].reshape(N, H, W, out_ch)
    return jnp.transpose(out, (0, 3, 1, 2))


# ---------------------------------------------------------------------------
# Pure-JAX reference for validation
# ---------------------------------------------------------------------------
def aspp_reference(x_nchw, params):
    x = jnp.transpose(x_nchw, (0, 2, 3, 1)).astype(jnp.float32)
    N, H, W, Cin = x.shape

    def conv1x1(x_, w, s, b):
        y = jnp.einsum("nhwc,cd->nhwd", x_, w)
        return jnp.maximum(y * s + b, 0.0)

    res = []
    s, b = params["bn1x1"]
    res.append(conv1x1(x, params["w1x1"], s, b))
    for (r, w, (s, b)) in params["atrous"]:
        y = lax.conv_general_dilated(
            x, w, window_strides=(1, 1), padding=[(r, r), (r, r)],
            rhs_dilation=(r, r),
            dimension_numbers=("NHWC", "HWIO", "NHWC"))
        res.append(jnp.maximum(y * s + b, 0.0))
    s, b = params["bnpool"]
    pooled = jnp.mean(x, axis=(1, 2))
    y = jnp.maximum(pooled @ params["wpool"] * s + b, 0.0)
    res.append(jnp.broadcast_to(y[:, None, None, :], (N, H, W, y.shape[-1])))
    cat = jnp.concatenate(res, axis=-1)
    s, b = params["bnproj"]
    out = conv1x1(cat, params["wproj"], s, b)
    return jnp.transpose(out, (0, 3, 1, 2))


if __name__ == "__main__":
    key = jax.random.PRNGKey(0)
    kx, kp = jax.random.split(key)

    # ASPP(in_channels=4, conv_channels=8, atrous_rates=(2, 3), out_channels=16)
    in_ch, conv_ch, rates, out_ch = 4, 8, (2, 3), 16
    N, H, W = 2, 16, 16

    x = jax.random.normal(kx, (N, in_ch, H, W), jnp.float32)   # NCHW input
    params = make_aspp_params(kp, in_ch, conv_ch, rates, out_ch)

    out = aspp_forward(x, params, rates, conv_ch, out_ch)
    out = jax.block_until_ready(out)
    assert out.shape == (N, out_ch, H, W), out.shape

    ref = jax.block_until_ready(aspp_reference(x, params))
    err = float(jnp.max(jnp.abs(out - ref)))
    assert err < 1e-4, f"max abs error {err}"

    print("KERNEL_OK")
</pallas_src>

<mosaic_0001>
module attributes {stable_mosaic.version = 11 : i64} {
  func.func @kernel(%arg0: i32, %arg1: memref<1x22x22x4xf32, #tpu.memory_space<vmem>>, %arg2: memref<76x128xf32, #tpu.memory_space<vmem>>, %arg3: memref<1x128xf32, #tpu.memory_space<vmem>>, %arg4: memref<4x128xf32, #tpu.memory_space<vmem>>, %arg5: memref<1x128xf32, #tpu.memory_space<vmem>>, %arg6: memref<128x128xf32, #tpu.memory_space<vmem>>, %arg7: memref<128x128xf32, #tpu.memory_space<vmem>>, %arg8: memref<1x128xf32, #tpu.memory_space<vmem>>, %arg9: memref<256x128xf32, #tpu.memory_space<vmem>>) attributes {dimension_semantics = [#tpu.dimension_semantics<parallel>], iteration_bounds = array<i64: 2>, scalar_prefetch = 0 : i64, scratch_operands = 0 : i64, tpu.core_type = #tpu.core_type<tc>, window_params = [{transform_indices = @transform_0, window_bounds = array<i64: 1, 22, 22, 4>}, {pipeline_mode = #tpu.pipeline_mode<synchronous>, transform_indices = @transform_1, window_bounds = array<i64: 76, 128>}, {pipeline_mode = #tpu.pipeline_mode<synchronous>, transform_indices = @transform_2, window_bounds = array<i64: 1, 128>}, {pipeline_mode = #tpu.pipeline_mode<synchronous>, transform_indices = @transform_3, window_bounds = array<i64: 4, 128>}, {pipeline_mode = #tpu.pipeline_mode<synchronous>, transform_indices = @transform_4, window_bounds = array<i64: 1, 128>}, {pipeline_mode = #tpu.pipeline_mode<synchronous>, transform_indices = @transform_5, window_bounds = array<i64: 128, 128>}, {pipeline_mode = #tpu.pipeline_mode<synchronous>, transform_indices = @transform_6, window_bounds = array<i64: 128, 128>}, {pipeline_mode = #tpu.pipeline_mode<synchronous>, transform_indices = @transform_7, window_bounds = array<i64: 1, 128>}, {transform_indices = @transform_8, window_bounds = array<i64: 256, 128>}]} {
    %c0 = arith.constant 0 : index
    %c0_0 = arith.constant 0 : index
    %c0_1 = arith.constant 0 : index
    %c0_2 = arith.constant 0 : index
    %0 = vector.load %arg1[%c0, %c0_0, %c0_1, %c0_2] : memref<1x22x22x4xf32, #tpu.memory_space<vmem>>, vector<1x22x22x4xf32>
    %1 = vector.extract_strided_slice %0 {offsets = [0, 3, 3, 0], sizes = [1, 16, 16, 4], strides = [1, 1, 1, 1]} : vector<1x22x22x4xf32> to vector<1x16x16x4xf32>
    %2 = vector.extract_strided_slice %0 {offsets = [0, 1, 1, 0], sizes = [1, 16, 16, 4], strides = [1, 1, 1, 1]} : vector<1x22x22x4xf32> to vector<1x16x16x4xf32>
    %3 = vector.extract_strided_slice %0 {offsets = [0, 1, 3, 0], sizes = [1, 16, 16, 4], strides = [1, 1, 1, 1]} : vector<1x22x22x4xf32> to vector<1x16x16x4xf32>
    %4 = vector.extract_strided_slice %0 {offsets = [0, 1, 5, 0], sizes = [1, 16, 16, 4], strides = [1, 1, 1, 1]} : vector<1x22x22x4xf32> to vector<1x16x16x4xf32>
    %5 = vector.extract_strided_slice %0 {offsets = [0, 3, 1, 0], sizes = [1, 16, 16, 4], strides = [1, 1, 1, 1]} : vector<1x22x22x4xf32> to vector<1x16x16x4xf32>
    %6 = vector.extract_strided_slice %0 {offsets = [0, 3, 3, 0], sizes = [1, 16, 16, 4], strides = [1, 1, 1, 1]} : vector<1x22x22x4xf32> to vector<1x16x16x4xf32>
    %7 = vector.extract_strided_slice %0 {offsets = [0, 3, 5, 0], sizes = [1, 16, 16, 4], strides = [1, 1, 1, 1]} : vector<1x22x22x4xf32> to vector<1x16x16x4xf32>
    %8 = vector.extract_strided_slice %0 {offsets = [0, 5, 1, 0], sizes = [1, 16, 16, 4], strides = [1, 1, 1, 1]} : vector<1x22x22x4xf32> to vector<1x16x16x4xf32>
    %9 = vector.extract_strided_slice %0 {offsets = [0, 5, 3, 0], sizes = [1, 16, 16, 4], strides = [1, 1, 1, 1]} : vector<1x22x22x4xf32> to vector<1x16x16x4xf32>
    %10 = vector.extract_strided_slice %0 {offsets = [0, 5, 5, 0], sizes = [1, 16, 16, 4], strides = [1, 1, 1, 1]} : vector<1x22x22x4xf32> to vector<1x16x16x4xf32>
    %11 = vector.extract_strided_slice %0 {offsets = [0, 0, 0, 0], sizes = [1, 16, 16, 4], strides = [1, 1, 1, 1]} : vector<1x22x22x4xf32> to vector<1x16x16x4xf32>
    %12 = vector.extract_strided_slice %0 {offsets = [0, 0, 3, 0], sizes = [1, 16, 16, 4], strides = [1, 1, 1, 1]} : vector<1x22x22x4xf32> to vector<1x16x16x4xf32>
    %13 = vector.extract_strided_slice %0 {offsets = [0, 0, 6, 0], sizes = [1, 16, 16, 4], strides = [1, 1, 1, 1]} : vector<1x22x22x4xf32> to vector<1x16x16x4xf32>
    %14 = vector.extract_strided_slice %0 {offsets = [0, 3, 0, 0], sizes = [1, 16, 16, 4], strides = [1, 1, 1, 1]} : vector<1x22x22x4xf32> to vector<1x16x16x4xf32>
    %15 = vector.extract_strided_slice %0 {offsets = [0, 3, 3, 0], sizes = [1, 16, 16, 4], strides = [1, 1, 1, 1]} : vector<1x22x22x4xf32> to vector<1x16x16x4xf32>
    %16 = vector.extract_strided_slice %0 {offsets = [0, 3, 6, 0], sizes = [1, 16, 16, 4], strides = [1, 1, 1, 1]} : vector<1x22x22x4xf32> to vector<1x16x16x4xf32>
    %17 = vector.extract_strided_slice %0 {offsets = [0, 6, 0, 0], sizes = [1, 16, 16, 4], strides = [1, 1, 1, 1]} : vector<1x22x22x4xf32> to vector<1x16x16x4xf32>
    %18 = vector.extract_strided_slice %0 {offsets = [0, 6, 3, 0], sizes = [1, 16, 16, 4], strides = [1, 1, 1, 1]} : vector<1x22x22x4xf32> to vector<1x16x16x4xf32>
    %19 = vector.extract_strided_slice %0 {offsets = [0, 6, 6, 0], sizes = [1, 16, 16, 4], strides = [1, 1, 1, 1]} : vector<1x22x22x4xf32> to vector<1x16x16x4xf32>
    %20 = tpu.concatenate %1, %2, %3, %4, %5, %6, %7, %8, %9, %10, %11, %12, %13, %14, %15, %16 in 3 : vector<1x16x16x4xf32>, vector<1x16x16x4xf32>, vector<1x16x16x4xf32>, vector<1x16x16x4xf32>, vector<1x16x16x4xf32>, vector<1x16x16x4xf32>, vector<1x16x16x4xf32>, vector<1x16x16x4xf32>, vector<1x16x16x4xf32>, vector<1x16x16x4xf32>, vector<1x16x16x4xf32>, vector<1x16x16x4xf32>, vector<1x16x16x4xf32>, vector<1x16x16x4xf32>, vector<1x16x16x4xf32>, vector<1x16x16x4xf32> -> vector<1x16x16x64xf32>
    %21 = tpu.concatenate %17, %18, %19 in 3 : vector<1x16x16x4xf32>, vector<1x16x16x4xf32>, vector<1x16x16x4xf32> -> vector<1x16x16x12xf32>
    %22 = tpu.concatenate %20, %21 in 3 : vector<1x16x16x64xf32>, vector<1x16x16x12xf32> -> vector<1x16x16x76xf32>
    %23 = vector.shape_cast %22 : vector<1x16x16x76xf32> to vector<256x76xf32>
    %c0_3 = arith.constant 0 : index
    %c0_4 = arith.constant 0 : index
    %24 = vector.load %arg2[%c0_3, %c0_4] : memref<76x128xf32, #tpu.memory_space<vmem>>, vector<76x128xf32>
    %cst = arith.constant dense<0.000000e+00> : vector<256x128xf32>
    %25 = tpu.matmul %23, %24, %cst {dimension_numbers = #tpu.dot_dimension_numbers<[1], [0], [0], [1], [0, 0, 1, 1], [], []>} : vector<256x76xf32>, vector<76x128xf32>, vector<256x128xf32> -> vector<256x128xf32>
    %c0_5 = arith.constant 0 : index
    %c0_6 = arith.constant 0 : index
    %26 = vector.load %arg3[%c0_5, %c0_6] : memref<1x128xf32, #tpu.memory_space<vmem>>, vector<1x128xf32>
    %27 = vector.broadcast %26 : vector<1x128xf32> to vector<256x128xf32>
    %28 = arith.addf %25, %27 : vector<256x128xf32>
    %cst_7 = arith.constant 0.000000e+00 : f32
    %29 = vector.broadcast %cst_7 : f32 to vector<256x128xf32>
    %30 = arith.maximumf %28, %29 : vector<256x128xf32>
    %31 = vector.shape_cast %0 : vector<1x22x22x4xf32> to vector<484x4xf32>
    %cst_8 = arith.constant dense<0.000000e+00> : vector<4xf32>
    %32 = vector.multi_reduction <add>, %31, %cst_8 [0] : vector<484x4xf32> to vector<4xf32>
    %33 = vector.shape_cast %32 : vector<4xf32> to vector<1x4xf32>
    %cst_9 = arith.constant 3.906250e-03 : f32
    %34 = vector.broadcast %cst_9 : f32 to vector<1x4xf32>
    %35 = arith.mulf %33, %34 : vector<1x4xf32>
    %c0_10 = arith.constant 0 : index
    %c0_11 = arith.constant 0 : index
    %36 = vector.load %arg4[%c0_10, %c0_11] : memref<4x128xf32, #tpu.memory_space<vmem>>, vector<4x128xf32>
    %cst_12 = arith.constant dense<0.000000e+00> : vector<1x128xf32>
    %37 = tpu.matmul %35, %36, %cst_12 {dimension_numbers = #tpu.dot_dimension_numbers<[1], [0], [0], [1], [0, 0, 1, 1], [], []>} : vector<1x4xf32>, vector<4x128xf32>, vector<1x128xf32> -> vector<1x128xf32>
    %c0_13 = arith.constant 0 : index
    %c0_14 = arith.constant 0 : index
    %38 = vector.load %arg5[%c0_13, %c0_14] : memref<1x128xf32, #tpu.memory_space<vmem>>, vector<1x128xf32>
    %39 = arith.addf %37, %38 : vector<1x128xf32>
    %cst_15 = arith.constant 0.000000e+00 : f32
    %40 = vector.broadcast %cst_15 : f32 to vector<1x128xf32>
    %41 = arith.maximumf %39, %40 : vector<1x128xf32>
    %c0_16 = arith.constant 0 : index
    %c0_17 = arith.constant 0 : index
    %42 = vector.load %arg6[%c0_16, %c0_17] : memref<128x128xf32, #tpu.memory_space<vmem>>, vector<128x128xf32>
    %cst_18 = arith.constant dense<0.000000e+00> : vector<256x128xf32>
    %43 = tpu.matmul %30, %42, %cst_18 {dimension_numbers = #tpu.dot_dimension_numbers<[1], [0], [0], [1], [0, 0, 1, 1], [], []>} : vector<256x128xf32>, vector<128x128xf32>, vector<256x128xf32> -> vector<256x128xf32>
    %c0_19 = arith.constant 0 : index
    %c0_20 = arith.constant 0 : index
    %44 = vector.load %arg7[%c0_19, %c0_20] : memref<128x128xf32, #tpu.memory_space<vmem>>, vector<128x128xf32>
    %cst_21 = arith.constant dense<0.000000e+00> : vector<1x128xf32>
    %45 = tpu.matmul %41, %44, %cst_21 {dimension_numbers = #tpu.dot_dimension_numbers<[1], [0], [0], [1], [0, 0, 1, 1], [], []>} : vector<1x128xf32>, vector<128x128xf32>, vector<1x128xf32> -> vector<1x128xf32>
    %46 = vector.broadcast %45 : vector<1x128xf32> to vector<256x128xf32>
    %47 = arith.addf %43, %46 : vector<256x128xf32>
    %c0_22 = arith.constant 0 : index
    %c0_23 = arith.constant 0 : index
    %48 = vector.load %arg8[%c0_22, %c0_23] : memref<1x128xf32, #tpu.memory_space<vmem>>, vector<1x128xf32>
    %49 = vector.broadcast %48 : vector<1x128xf32> to vector<256x128xf32>
    %50 = arith.addf %47, %49 : vector<256x128xf32>
    %cst_24 = arith.constant 0.000000e+00 : f32
    %51 = vector.broadcast %cst_24 : f32 to vector<256x128xf32>
    %52 = arith.maximumf %50, %51 : vector<256x128xf32>
    %c0_25 = arith.constant 0 : index
    %c0_26 = arith.constant 0 : index
    %53 = vector.load %arg9[%c0_25, %c0_26] : memref<256x128xf32, #tpu.memory_space<vmem>>, vector<256x128xf32>
    tpu.vector_store %arg9[%c0_25, %c0_26], %52 {strides = array<i32>} : memref<256x128xf32, #tpu.memory_space<vmem>>, vector<256x128xf32>,
    return
  }
  func.func @transform_0(%arg0: i32) -> (i32, i32, i32, i32) {
    %c0_i32 = arith.constant 0 : i32
    %c0_i32_0 = arith.constant 0 : i32
    %c0_i32_1 = arith.constant 0 : i32
    %c0_i32_2 = arith.constant 0 : i32
    return %arg0, %c0_i32, %c0_i32_0, %c0_i32_1 : i32, i32, i32, i32
  }
  func.func @transform_1(%arg0: i32) -> (i32, i32) {
    %c0_i32 = arith.constant 0 : i32
    %c0_i32_0 = arith.constant 0 : i32
    %c0_i32_1 = arith.constant 0 : i32
    return %c0_i32, %c0_i32_0 : i32, i32
  }
  func.func @transform_2(%arg0: i32) -> (i32, i32) {
    %c0_i32 = arith.constant 0 : i32
    %c0_i32_0 = arith.constant 0 : i32
    %c0_i32_1 = arith.constant 0 : i32
    return %c0_i32, %c0_i32_0 : i32, i32
  }
  func.func @transform_3(%arg0: i32) -> (i32, i32) {
    %c0_i32 = arith.constant 0 : i32
    %c0_i32_0 = arith.constant 0 : i32
    %c0_i32_1 = arith.constant 0 : i32
    return %c0_i32, %c0_i32_0 : i32, i32
  }
  func.func @transform_4(%arg0: i32) -> (i32, i32) {
    %c0_i32 = arith.constant 0 : i32
    %c0_i32_0 = arith.constant 0 : i32
    %c0_i32_1 = arith.constant 0 : i32
    return %c0_i32, %c0_i32_0 : i32, i32
  }
  func.func @transform_5(%arg0: i32) -> (i32, i32) {
    %c0_i32 = arith.constant 0 : i32
    %c0_i32_0 = arith.constant 0 : i32
    %c0_i32_1 = arith.constant 0 : i32
    return %c0_i32, %c0_i32_0 : i32, i32
  }
  func.func @transform_6(%arg0: i32) -> (i32, i32) {
    %c0_i32 = arith.constant 0 : i32
    %c0_i32_0 = arith.constant 0 : i32
    %c0_i32_1 = arith.constant 0 : i32
    return %c0_i32, %c0_i32_0 : i32, i32
  }
  func.func @transform_7(%arg0: i32) -> (i32, i32) {
    %c0_i32 = arith.constant 0 : i32
    %c0_i32_0 = arith.constant 0 : i32
    %c0_i32_1 = arith.constant 0 : i32
    return %c0_i32, %c0_i32_0 : i32, i32
  }
  func.func @transform_8(%arg0: i32) -> (i32, i32) {
    %c0_i32 = arith.constant 0 : i32
    %c0_i32_0 = arith.constant 0 : i32
    return %arg0, %c0_i32 : i32, i32
  }
}

</mosaic_0001>

<llo_original>
// kernel: tpu_custom_call.1
$region0: #{tpu_custom_call.1}
  #allocation0 [shape = 'u32[]', space=smem, size = 0x4, offset = 0x4, fixed_abs, tag = 'smem constant byte address 0x4 - core index']
  #allocation1 [shape = 'u32[144,128]{1,0:T(1,128)}', space=vmem, size = 0x12000, scoped, tag = 'internal scratch']
  %s0 = inlined_call_operand.vmem [shape: f32[2,22,22,4], index: 0, kind: input, shape index: {}]
  %s1 = inlined_call_operand.vmem [shape: f32[76,128], index: 1, kind: input, shape index: {}]
  %s2 = inlined_call_operand.vmem [shape: f32[1,128], index: 2, kind: input, shape index: {}]
  %s3 = inlined_call_operand.vmem [shape: f32[4,128], index: 3, kind: input, shape index: {}]
  %s4 = inlined_call_operand.vmem [shape: f32[1,128], index: 4, kind: input, shape index: {}]
  %s5 = inlined_call_operand.vmem [shape: f32[128,128], index: 5, kind: input, shape index: {}]
  %s6 = inlined_call_operand.vmem [shape: f32[128,128], index: 6, kind: input, shape index: {}]
  %s7 = inlined_call_operand.vmem [shape: f32[1,128], index: 7, kind: input, shape index: {}]
  %s8 = inlined_call_operand.hbm [shape: f32[512,128], index: 8, kind: output, shape index: {}]
  %s9 = sld [smem:[#allocation0]]
  $region65: #{tpu_custom_call.1} parent=0
    _
  %s11 = ssub.s32 1, %s9
  %s12 = scalar_select 0, %s11, %s9
  $region1: #{tpu_custom_call.1} parent=0
    #allocation2 [shape = 'u8[262144]{0}', space=vmem, size = 0x40000, scoped, tag = 'output window, operand 0']
    #allocation3 [shape = 's32[2]{0}', space=sflag, size = 0x8, scoped, tag = 'scoped memory for tpu_custom_call.1']
    %13 = vsyncpa [#allocation3], 0
    %s14 = scalar_lea.sflag [#allocation3], 1
    %15 = vsyncpa %s14, 0
    loop: start=0, step=1, limit=4
    $region2: #{tpu_custom_call.1} parent=1 // loop_pre_header
      _
    $region3: #{tpu_custom_call.1} parent=1 // loop_header
      %s17 = sphi 0, %s21
      %p18 = scmp.ge.s32.totalorder %s17, 4
      %s27 = sphi 0, %s29
      %s30 = sphi 0, %s27
      %s31 = sphi 0, %s30
      %s47 = sphi 0, %s31
      %s51 = sphi 0, %s51
      %s53 = sphi 0, %s51
      %s54 = sphi 0, %s53
      %s68 = sphi 0, %s54
      %s72 = sphi 0, %s72
      %s74 = sphi 0, %s72
      %s75 = sphi 0, %s74
      %s89 = sphi 0, %s75
      %s93 = sphi 0, %s93
      %s95 = sphi 0, %s93
      %s96 = sphi 0, %s95
      %s110 = sphi 0, %s96
      %s114 = sphi 0, %s114
      %s116 = sphi 0, %s114
      %s117 = sphi 0, %s116
      %s131 = sphi 0, %s117
      %s135 = sphi 0, %s135
      %s137 = sphi 0, %s135
      %s138 = sphi 0, %s137
      %s152 = sphi 0, %s138
      %s156 = sphi 0, %s156
      %s158 = sphi 0, %s156
      %s159 = sphi 0, %s158
      %s173 = sphi 0, %s159
      %s177 = sphi 0, %s177
      %s179 = sphi 0, %s177
      %s180 = sphi 0, %s179
      %s194 = sphi 0, %s180
      %s200 = sphi 0, %s202
      %s203 = sphi 0, %s200
      %s204 = sphi 0, %s203
      %s220 = sphi 0, %s204
    $region4: #{tpu_custom_call.1} parent=1 // loop_header_branch
      %20 = sbr.rel (%p18) target = $region8
    $region5: #{tpu_custom_call.1} parent=1 // loop_body
      %s22 = ssub.s32 %s17, 1
      %s23 = ssub.s32 %s17, 2
      %s24 = sadd.s32 %s17, 1
      %s25 = ssub.s32 %s17, %s24
      %p26 = scmp.eq.s32.totalorder %s25, 0
      %s28 = sadd.s32 %s27, 1
      %s29 = scalar_select %p26, %s27, %s28
      %p32 = pneg %p26
      %p33 = scmp.eq.s32.totalorder %s17, 1
      %p34 = por %p32, %p33
      %p35 = scmp.ne.s32.totalorder %s27, %s30
      %p36 = scmp.eq.s32.totalorder %s17, 0
      %p37 = por %p35, %p36
      %p38 = scmp.ne.s32.totalorder %s27, %s30
      %p39 = scmp.eq.s32.totalorder %s22, 1
      %p40 = por %p38, %p39
      %p41 = scmp.ne.s32.totalorder %s30, %s31
      %p42 = scmp.eq.s32.totalorder %s22, 0
      %p43 = por %p41, %p42
      %p44 = scmp.ne.s32.totalorder %s30, %s31
      %p45 = scmp.eq.s32.totalorder %s23, 1
      %p46 = por %p44, %p45
      %p48 = scmp.ne.s32.totalorder %s31, %s47
      %p49 = scmp.eq.s32.totalorder %s23, 0
      %p50 = por %p48, %p49
      %s52 = sadd.s32 %s51, 1
      %p55 = scmp.eq.s32.totalorder %s17, 1
      %p56 = scmp.ne.s32.totalorder %s51, %s53
      %p57 = scmp.eq.s32.totalorder %s17, 0
      %p58 = por %p56, %p57
      %p59 = scmp.ne.s32.totalorder %s51, %s53
      %p60 = scmp.eq.s32.totalorder %s22, 1
      %p61 = por %p59, %p60
      %p62 = scmp.ne.s32.totalorder %s53, %s54
      %p63 = scmp.eq.s32.totalorder %s22, 0
      %p64 = por %p62, %p63
      %p65 = scmp.ne.s32.totalorder %s53, %s54
      %p66 = scmp.eq.s32.totalorder %s23, 1
      %p67 = por %p65, %p66
      %p69 = scmp.ne.s32.totalorder %s54, %s68
      %p70 = scmp.eq.s32.totalorder %s23, 0
      %p71 = por %p69, %p70
      %s73 = sadd.s32 %s72, 1
      %p76 = scmp.eq.s32.totalorder %s17, 1
      %p77 = scmp.ne.s32.totalorder %s72, %s74
      %p78 = scmp.eq.s32.totalorder %s17, 0
      %p79 = por %p77, %p78
      %p80 = scmp.ne.s32.totalorder %s72, %s74
      %p81 = scmp.eq.s32.totalorder %s22, 1
      %p82 = por %p80, %p81
      %p83 = scmp.ne.s32.totalorder %s74, %s75
      %p84 = scmp.eq.s32.totalorder %s22, 0
      %p85 = por %p83, %p84
      %p86 = scmp.ne.s32.totalorder %s74, %s75
      %p87 = scmp.eq.s32.totalorder %s23, 1
      %p88 = por %p86, %p87
      %p90 = scmp.ne.s32.totalorder %s75, %s89
      %p91 = scmp.eq.s32.totalorder %s23, 0
      %p92 = por %p90, %p91
      %s94 = sadd.s32 %s93, 1
      %p97 = scmp.eq.s32.totalorder %s17, 1
      %p98 = scmp.ne.s32.totalorder %s93, %s95
      %p99 = scmp.eq.s32.totalorder %s17, 0
      %p100 = por %p98, %p99
      %p101 = scmp.ne.s32.totalorder %s93, %s95
      %p102 = scmp.eq.s32.totalorder %s22, 1
      %p103 = por %p101, %p102
      %p104 = scmp.ne.s32.totalorder %s95, %s96
      %p105 = scmp.eq.s32.totalorder %s22, 0
      %p106 = por %p104, %p105
      %p107 = scmp.ne.s32.totalorder %s95, %s96
      %p108 = scmp.eq.s32.totalorder %s23, 1
      %p109 = por %p107, %p108
      %p111 = scmp.ne.s32.totalorder %s96, %s110
      %p112 = scmp.eq.s32.totalorder %s23, 0
      %p113 = por %p111, %p112
      %s115 = sadd.s32 %s114, 1
      %p118 = scmp.eq.s32.totalorder %s17, 1
      %p119 = scmp.ne.s32.totalorder %s114, %s116
      %p120 = scmp.eq.s32.totalorder %s17, 0
      %p121 = por %p119, %p120
      %p122 = scmp.ne.s32.totalorder %s114, %s116
      %p123 = scmp.eq.s32.totalorder %s22, 1
      %p124 = por %p122, %p123
      %p125 = scmp.ne.s32.totalorder %s116, %s117
      %p126 = scmp.eq.s32.totalorder %s22, 0
      %p127 = por %p125, %p126
      %p128 = scmp.ne.s32.totalorder %s116, %s117
      %p129 = scmp.eq.s32.totalorder %s23, 1
      %p130 = por %p128, %p129
      %p132 = scmp.ne.s32.totalorder %s117, %s131
      %p133 = scmp.eq.s32.totalorder %s23, 0
      %p134 = por %p132, %p133
      %s136 = sadd.s32 %s135, 1
      %p139 = scmp.eq.s32.totalorder %s17, 1
      %p140 = scmp.ne.s32.totalorder %s135, %s137
      %p141 = scmp.eq.s32.totalorder %s17, 0
      %p142 = por %p140, %p141
      %p143 = scmp.ne.s32.totalorder %s135, %s137
      %p144 = scmp.eq.s32.totalorder %s22, 1
      %p145 = por %p143, %p144
      %p146 = scmp.ne.s32.totalorder %s137, %s138
      %p147 = scmp.eq.s32.totalorder %s22, 0
      %p148 = por %p146, %p147
      %p149 = scmp.ne.s32.totalorder %s137, %s138
      %p150 = scmp.eq.s32.totalorder %s23, 1
      %p151 = por %p149, %p150
      %p153 = scmp.ne.s32.totalorder %s138, %s152
      %p154 = scmp.eq.s32.totalorder %s23, 0
      %p155 = por %p153, %p154
      %s157 = sadd.s32 %s156, 1
      %p160 = scmp.eq.s32.totalorder %s17, 1
      %p161 = scmp.ne.s32.totalorder %s156, %s158
      %p162 = scmp.eq.s32.totalorder %s17, 0
      %p163 = por %p161, %p162
      %p164 = scmp.ne.s32.totalorder %s156, %s158
      %p165 = scmp.eq.s32.totalorder %s22, 1
      %p166 = por %p164, %p165
      %p167 = scmp.ne.s32.totalorder %s158, %s159
      %p168 = scmp.eq.s32.totalorder %s22, 0
      %p169 = por %p167, %p168
      %p170 = scmp.ne.s32.totalorder %s158, %s159
      %p171 = scmp.eq.s32.totalorder %s23, 1
      %p172 = por %p170, %p171
      %p174 = scmp.ne.s32.totalorder %s159, %s173
      %p175 = scmp.eq.s32.totalorder %s23, 0
      %p176 = por %p174, %p175
      %s178 = sadd.s32 %s177, 1
      %p181 = scmp.eq.s32.totalorder %s17, 1
      %p182 = scmp.ne.s32.totalorder %s177, %s179
      %p183 = scmp.eq.s32.totalorder %s17, 0
      %p184 = por %p182, %p183
      %p185 = scmp.ne.s32.totalorder %s177, %s179
      %p186 = scmp.eq.s32.totalorder %s22, 1
      %p187 = por %p185, %p186
      %p188 = scmp.ne.s32.totalorder %s179, %s180
      %p189 = scmp.eq.s32.totalorder %s22, 0
      %p190 = por %p188, %p189
      %p191 = scmp.ne.s32.totalorder %s179, %s180
      %p192 = scmp.eq.s32.totalorder %s23, 1
      %p193 = por %p191, %p192
      %p195 = scmp.ne.s32.totalorder %s180, %s194
      %p196 = scmp.eq.s32.totalorder %s23, 0
      %p197 = por %p195, %p196
      %s198 = ssub.s32 %s17, %s24
      %p199 = scmp.eq.s32.totalorder %s198, 0
      %s201 = sadd.s32 %s200, 1
      %s202 = scalar_select %p199, %s200, %s201
      %p205 = pneg %p199
      %p206 = scmp.eq.s32.totalorder %s17, 1
      %p207 = por %p205, %p206
      %p208 = scmp.ne.s32.totalorder %s200, %s203
      %p209 = scmp.eq.s32.totalorder %s17, 0
      %p210 = por %p208, %p209
      %p211 = scmp.ne.s32.totalorder %s200, %s203
      %p212 = scmp.eq.s32.totalorder %s22, 1
      %p213 = por %p211, %p212
      %p214 = scmp.ne.s32.totalorder %s203, %s204
      %p215 = scmp.eq.s32.totalorder %s22, 0
      %p216 = por %p214, %p215
      %p217 = scmp.ne.s32.totalorder %s203, %s204
      %p218 = scmp.eq.s32.totalorder %s23, 1
      %p219 = por %p217, %p218
      %p221 = scmp.ne.s32.totalorder %s204, %s220
      %p222 = scmp.eq.s32.totalorder %s23, 0
      %p223 = por %p221, %p222
      %p224 = scmp.le.s32.totalorder 1, %s17
      %p225 = scmp.lt.s32.totalorder %s17, 3
      %p226 = pnand %p224, %p225
      %p227 = pneg %p226
      // Predicated region
      $region9: #{tpu_custom_call.1} parent=5 // pred_check
        _
      $region10: #{tpu_custom_call.1} parent=5 // pred_check_branch
        %229 = sbr.rel (%p226) target = $region12
      $region11: #{tpu_custom_call.1} parent=5 // pred_region
        %s230 = ssub.s32 %s17, 1
        // Predicated region
        $region13: #{tpu_custom_call.1} parent=11 // pred_check
          %p231 = pneg %p64
        $region14: #{tpu_custom_call.1} parent=11 // pred_check_branch
          %233 = sbr.rel (%p231) target = $region16
        $region15: #{tpu_custom_call.1} parent=11 // pred_region
          _
        $region16: #{tpu_custom_call.1} parent=11 // pred_fallthru
          _
        // Predicated region
        $region17: #{tpu_custom_call.1} parent=11 // pred_check
          %p234 = pneg %p85
        $region18: #{tpu_custom_call.1} parent=11 // pred_check_branch
          %236 = sbr.rel (%p234) target = $region20
        $region19: #{tpu_custom_call.1} parent=11 // pred_region
          _
        $region20: #{tpu_custom_call.1} parent=11 // pred_fallthru
          _
        // Predicated region
        $region21: #{tpu_custom_call.1} parent=11 // pred_check
          %p237 = pneg %p106
        $region22: #{tpu_custom_call.1} parent=11 // pred_check_branch
          %239 = sbr.rel (%p237) target = $region24
        $region23: #{tpu_custom_call.1} parent=11 // pred_region
          _
        $region24: #{tpu_custom_call.1} parent=11 // pred_fallthru
          _
        // Predicated region
        $region25: #{tpu_custom_call.1} parent=11 // pred_check
          %p240 = pneg %p127
        $region26: #{tpu_custom_call.1} parent=11 // pred_check_branch
          %242 = sbr.rel (%p240) target = $region28
        $region27: #{tpu_custom_call.1} parent=11 // pred_region
          _
        $region28: #{tpu_custom_call.1} parent=11 // pred_fallthru
          _
        // Predicated region
        $region29: #{tpu_custom_call.1} parent=11 // pred_check
          %p243 = pneg %p148
        $region30: #{tpu_custom_call.1} parent=11 // pred_check_branch
          %245 = sbr.rel (%p243) target = $region32
        $region31: #{tpu_custom_call.1} parent=11 // pred_region
          _
        $region32: #{tpu_custom_call.1} parent=11 // pred_fallthru
          _
        // Predicated region
        $region33: #{tpu_custom_call.1} parent=11 // pred_check
          %p246 = pneg %p169
        $region34: #{tpu_custom_call.1} parent=11 // pred_check_branch
          %248 = sbr.rel (%p246) target = $region36
        $region35: #{tpu_custom_call.1} parent=11 // pred_region
          _
        $region36: #{tpu_custom_call.1} parent=11 // pred_fallthru
          _
        // Predicated region
        $region37: #{tpu_custom_call.1} parent=11 // pred_check
          %p249 = pneg %p190
        $region38: #{tpu_custom_call.1} parent=11 // pred_check_branch
          %251 = sbr.rel (%p249) target = $region40
        $region39: #{tpu_custom_call.1} parent=11 // pred_region
          _
        $region40: #{tpu_custom_call.1} parent=11 // pred_fallthru
          _
      $region12: #{tpu_custom_call.1} parent=5 // pred_fallthru
        _
      %p252 = scmp.lt.s32.totalorder %s17, 2
      // Predicated region
      $region41: #{tpu_custom_call.1} parent=5 // pred_check
        %p253 = pneg %p252
      $region42: #{tpu_custom_call.1} parent=5 // pred_check_branch
        %255 = sbr.rel (%p253) target = $region44
      $region43: #{tpu_custom_call.1} parent=5 // pred_region
        // Predicated region
        $region45: #{tpu_custom_call.1} parent=43 // pred_check
          %p256 = pneg %p37
        $region46: #{tpu_custom_call.1} parent=43 // pred_check_branch
          %258 = sbr.rel (%p256) target = $region48
        $region47: #{tpu_custom_call.1} parent=43 // pred_region
          %p259 = scmp.lt.s32.totalorder %s17, 1
          %s260 = scalar_select %p259, %s17, 1
          %s261 = smul.addr %s260, 66
          %s262 = smul.addr %s261, 8
          %s263 = scalar_lea.vmem %s0, %s262
        $region48: #{tpu_custom_call.1} parent=43 // pred_fallthru
          _
      $region44: #{tpu_custom_call.1} parent=5 // pred_fallthru
        _
      %p264 = scmp.le.s32.totalorder 1, %s17
      %p265 = scmp.lt.s32.totalorder %s17, 3
      %p266 = pnand %p264, %p265
      %p267 = pneg %p266
      // Predicated region
      $region49: #{tpu_custom_call.1} parent=5 // pred_check
        _
      $region50: #{tpu_custom_call.1} parent=5 // pred_check_branch
        %269 = sbr.rel (%p266) target = $region52
      $region51: #{tpu_custom_call.1} parent=5 // pred_region
        %s270 = ssub.s32 %s17, 1
        %p271 = scmp.lt.s32.totalorder %s22, 1
        %s272 = scalar_select %p271, %s22, 1
        %s273 = smul.addr %s272, 66
        %s274 = smul.addr %s273, 8
        %s275 = scalar_lea.vmem %s0, %s274
        %p276 = pneg %p43
        %p277 = pneg %p40
        %p278 = pneg %p64
        %p279 = pneg %p61
        %p280 = pneg %p85
        %p281 = pneg %p82
        %p282 = pneg %p106
        %p283 = pneg %p103
        %p284 = pneg %p127
        %p285 = pneg %p124
        %p286 = pneg %p148
        %p287 = pneg %p145
        %p288 = pneg %p169
        %p289 = pneg %p166
        %p290 = pneg %p190
        %p291 = pneg %p187
        %p292 = pneg %p216
        %p293 = pneg %p213
        %s294 = sand.u32 %s203, 1
        %s295 = scalar_lea.sflag [#allocation3], %s294
        %s296 = sand.u32 %s203, 1
        %s297 = smul.addr %s296, 256
        %s298 = scalar_lea.vmem [#allocation2], %s297
        %p299 = scmp.lt.s32.totalorder %s22, 1
        %s300 = scalar_select %p299, %s22, 1
        %s301 = smul.addr %s300, 66
        %s302 = smul.addr %s301, 8
        %s303 = scalar_lea.vmem %s0, %s302
        %s304 = smul.u32 32, %s22
        %v305 = vld [vmem:[%s303] sm:$0xff]
        %v306 = vld [vmem:[%s303 + $0x8] sm:$0xff]
        %v307 = vld [vmem:[%s303 + $0x10] sm:$0x3f]
        %v308 = vld [vmem:[%s303 + $0x18] sm:$0xff]
        %v309 = vld [vmem:[%s303 + $0x20] sm:$0xff]
        %v310 = vld [vmem:[%s303 + $0x28] sm:$0x3f]
        %v311 = vld [vmem:[%s303 + $0x30] sm:$0xff]
        %v312 = vld [vmem:[%s303 + $0x38] sm:$0xff]
        %v313 = vld [vmem:[%s303 + $0x40] sm:$0x3f]
        %v314 = vld [vmem:[%s303 + $0x48] sm:$0xff]
        %v315 = vld [vmem:[%s303 + $0x50] sm:$0xff]
        %v316 = vld [vmem:[%s303 + $0x58] sm:$0x3f]
        %v317 = vld [vmem:[%s303 + $0x60] sm:$0xff]
        %v318 = vld [vmem:[%s303 + $0x68] sm:$0xff]
        %v319 = vld [vmem:[%s303 + $0x70] sm:$0x3f]
        %v320 = vld [vmem:[%s303 + $0x78] sm:$0xff]
        %v321 = vld [vmem:[%s303 + $0x80] sm:$0xff]
        %v322 = vld [vmem:[%s303 + $0x88] sm:$0x3f]
        %v323 = vld [vmem:[%s303 + $0x90] sm:$0xff]
        %v324 = vld [vmem:[%s303 + $0x98] sm:$0xff]
        %v325 = vld [vmem:[%s303 + $0xa0] sm:$0x3f]
        %v326 = vld [vmem:[%s303 + $0xa8] sm:$0xff]
        %v327 = vld [vmem:[%s303 + $0xb0] sm:$0xff]
        %v328 = vld [vmem:[%s303 + $0xb8] sm:$0x3f]
        %v329 = vld [vmem:[%s303 + $0xc0] sm:$0xff]
        %v330 = vld [vmem:[%s303 + $0xc8] sm:$0xff]
        %v331 = vld [vmem:[%s303 + $0xd0] sm:$0x3f]
        %v332 = vld [vmem:[%s303 + $0xd8] sm:$0xff]
        %v333 = vld [vmem:[%s303 + $0xe0] sm:$0xff]
        %v334 = vld [vmem:[%s303 + $0xe8] sm:$0x3f]
        %v335 = vld [vmem:[%s303 + $0xf0] sm:$0xff]
        %v336 = vld [vmem:[%s303 + $0xf8] sm:$0xff]
        %v337 = vld [vmem:[%s303 + $0x100] sm:$0x3f]
        %v338 = vld [vmem:[%s303 + $0x108] sm:$0xff]
        %v339 = vld [vmem:[%s303 + $0x110] sm:$0xff]
        %v340 = vld [vmem:[%s303 + $0x118] sm:$0x3f]
        %v341 = vld [vmem:[%s303 + $0x120] sm:$0xff]
        %v342 = vld [vmem:[%s303 + $0x128] sm:$0xff]
        %v343 = vld [vmem:[%s303 + $0x130] sm:$0x3f]
        %v344 = vld [vmem:[%s303 + $0x138] sm:$0xff]
        %v345 = vld [vmem:[%s303 + $0x140] sm:$0xff]
        %v346 = vld [vmem:[%s303 + $0x148] sm:$0x3f]
        %v347 = vld [vmem:[%s303 + $0x150] sm:$0xff]
        %v348 = vld [vmem:[%s303 + $0x158] sm:$0xff]
        %v349 = vld [vmem:[%s303 + $0x160] sm:$0x3f]
        %v350 = vld [vmem:[%s303 + $0x168] sm:$0xff]
        %v351 = vld [vmem:[%s303 + $0x170] sm:$0xff]
        %v352 = vld [vmem:[%s303 + $0x178] sm:$0x3f]
        %v353 = vld [vmem:[%s303 + $0x180] sm:$0xff]
        %v354 = vld [vmem:[%s303 + $0x188] sm:$0xff]
        %v355 = vld [vmem:[%s303 + $0x190] sm:$0x3f]
        %v356 = vld [vmem:[%s303 + $0x198] sm:$0xff]
        %v357 = vld [vmem:[%s303 + $0x1a0] sm:$0xff]
        %v358 = vld [vmem:[%s303 + $0x1a8] sm:$0x3f]
        %v359 = vld [vmem:[%s303 + $0x1b0] sm:$0xff]
        %v360 = vld [vmem:[%s303 + $0x1b8] sm:$0xff]
        %v361 = vld [vmem:[%s303 + $0x1c0] sm:$0x3f]
        %v362 = vld [vmem:[%s303 + $0x1c8] sm:$0xff]
        %v363 = vld [vmem:[%s303 + $0x1d0] sm:$0xff]
        %v364 = vld [vmem:[%s303 + $0x1d8] sm:$0x3f]
        %v365 = vld [vmem:[%s303 + $0x1e0] sm:$0xff]
        %v366 = vld [vmem:[%s303 + $0x1e8] sm:$0xff]
        %v367 = vld [vmem:[%s303 + $0x1f0] sm:$0x3f]
        %v368 = vld [vmem:[%s303 + $0x1f8] sm:$0xff]
        %v369 = vld [vmem:[%s303 + $0x200] sm:$0xff]
        %v370 = vld [vmem:[%s303 + $0x208] sm:$0x3f]
        %vm419 = vcmask 1041408
        %v420 = vrot.slane %v308, 6
        %v421 = vrot.slane %v309, 6
        %v422 = vsel %vm419, %v420, %v421
        %v423 = vrot.slane %v310, 6
        %v424 = vsel %vm419, %v421, %v423
        %v425 = vrot.slane %v311, 6
        %v426 = vrot.slane %v312, 6
        %v427 = vsel %vm419, %v425, %v426
        %v428 = vrot.slane %v313, 6
        %v429 = vsel %vm419, %v426, %v428
        %v430 = vrot.slane %v314, 6
        %v431 = vrot.slane %v315, 6
        %v432 = vsel %vm419, %v430, %v431
        %v433 = vrot.slane %v316, 6
        %v434 = vsel %vm419, %v431, %v433
        %v435 = vrot.slane %v317, 6
        %v436 = vrot.slane %v318, 6
        %v437 = vsel %vm419, %v435, %v436
        %v438 = vrot.slane %v319, 6
        %v439 = vsel %vm419, %v436, %v438
        %v440 = vrot.slane %v320, 6
        %v441 = vrot.slane %v321, 6
        %v442 = vsel %vm419, %v440, %v441
        %v443 = vrot.slane %v322, 6
        %v444 = vsel %vm419, %v441, %v443
        %v445 = vrot.slane %v323, 6
        %v446 = vrot.slane %v324, 6
        %v447 = vsel %vm419, %v445, %v446
        %v448 = vrot.slane %v325, 6
        %v449 = vsel %vm419, %v446, %v448
        %v450 = vrot.slane %v326, 6
        %v451 = vrot.slane %v327, 6
        %v452 = vsel %vm419, %v450, %v451
        %v453 = vrot.slane %v328, 6
        %v454 = vsel %vm419, %v451, %v453
        %v455 = vrot.slane %v329, 6
        %v456 = vrot.slane %v330, 6
        %v457 = vsel %vm419, %v455, %v456
        %v458 = vrot.slane %v331, 6
        %v459 = vsel %vm419, %v456, %v458
        %v460 = vrot.slane %v332, 6
        %v461 = vrot.slane %v333, 6
        %v462 = vsel %vm419, %v460, %v461
        %v463 = vrot.slane %v334, 6
        %v464 = vsel %vm419, %v461, %v463
        %v465 = vrot.slane %v335, 6
        %v466 = vrot.slane %v336, 6
        %v467 = vsel %vm419, %v465, %v466
        %v468 = vrot.slane %v337, 6
        %v469 = vsel %vm419, %v466, %v468
        %v470 = vrot.slane %v338, 6
        %v471 = vrot.slane %v339, 6
        %v472 = vsel %vm419, %v470, %v471
        %v473 = vrot.slane %v340, 6
        %v474 = vsel %vm419, %v471, %v473
        %v475 = vrot.slane %v341, 6
        %v476 = vrot.slane %v342, 6
        %v477 = vsel %vm419, %v475, %v476
        %v478 = vrot.slane %v343, 6
        %v479 = vsel %vm419, %v476, %v478
        %v480 = vrot.slane %v344, 6
        %v481 = vrot.slane %v345, 6
        %v482 = vsel %vm419, %v480, %v481
        %v483 = vrot.slane %v346, 6
        %v484 = vsel %vm419, %v481, %v483
        %v485 = vrot.slane %v347, 6
        %v486 = vrot.slane %v348, 6
        %v487 = vsel %vm419, %v485, %v486
        %v488 = vrot.slane %v349, 6
        %v489 = vsel %vm419, %v486, %v488
        %v490 = vrot.slane %v350, 6
        %v491 = vrot.slane %v351, 6
        %v492 = vsel %vm419, %v490, %v491
        %v493 = vrot.slane %v352, 6
        %v494 = vsel %vm419, %v491, %v493
        %v495 = vrot.slane %v353, 6
        %v496 = vrot.slane %v354, 6
        %v497 = vsel %vm419, %v495, %v496
        %v498 = vrot.slane %v355, 6
        %v499 = vsel %vm419, %v496, %v498
        %500 = vrot.lane.b32.xlu0 %v420, 4
        %v501 = vpop.permute.xlu0 %500
        %502 = vrot.lane.b32.xlu0 %v422, 4
        %v503 = vpop.permute.xlu0 %502
        %504 = vrot.lane.b32.xlu0 %v424, 4
        %v505 = vpop.permute.xlu0 %504
        %506 = vrot.lane.b32.xlu0 %v425, 4
        %v507 = vpop.permute.xlu0 %506
        %508 = vrot.lane.b32.xlu0 %v427, 4
        %v509 = vpop.permute.xlu0 %508
        %510 = vrot.lane.b32.xlu0 %v429, 4
        %v511 = vpop.permute.xlu0 %510
        %512 = vrot.lane.b32.xlu0 %v430, 4
        %v513 = vpop.permute.xlu0 %512
        %514 = vrot.lane.b32.xlu0 %v432, 4
        %v515 = vpop.permute.xlu0 %514
        %516 = vrot.lane.b32.xlu0 %v434, 4
        %v517 = vpop.permute.xlu0 %516
        %518 = vrot.lane.b32.xlu0 %v435, 4
        %v519 = vpop.permute.xlu0 %518
        %520 = vrot.lane.b32.xlu0 %v437, 4
        %v521 = vpop.permute.xlu0 %520
        %522 = vrot.lane.b32.xlu0 %v439, 4
        %v523 = vpop.permute.xlu0 %522
        %524 = vrot.lane.b32.xlu0 %v440, 4
        %v525 = vpop.permute.xlu0 %524
        %526 = vrot.lane.b32.xlu0 %v442, 4
        %v527 = vpop.permute.xlu0 %526
        %528 = vrot.lane.b32.xlu0 %v444, 4
        %v529 = vpop.permute.xlu0 %528
        %530 = vrot.lane.b32.xlu0 %v445, 4
        %v531 = vpop.permute.xlu0 %530
        %532 = vrot.lane.b32.xlu0 %v447, 4
        %v533 = vpop.permute.xlu0 %532
        %534 = vrot.lane.b32.xlu0 %v449, 4
        %v535 = vpop.permute.xlu0 %534
        %536 = vrot.lane.b32.xlu0 %v450, 4
        %v537 = vpop.permute.xlu0 %536
        %538 = vrot.lane.b32.xlu0 %v452, 4
        %v539 = vpop.permute.xlu0 %538
        %540 = vrot.lane.b32.xlu0 %v454, 4
        %v541 = vpop.permute.xlu0 %540
        %542 = vrot.lane.b32.xlu0 %v455, 4
        %v543 = vpop.permute.xlu0 %542
        %544 = vrot.lane.b32.xlu0 %v457, 4
        %v545 = vpop.permute.xlu0 %544
        %546 = vrot.lane.b32.xlu0 %v459, 4
        %v547 = vpop.permute.xlu0 %546
        %548 = vrot.lane.b32.xlu0 %v460, 4
        %v549 = vpop.permute.xlu0 %548
        %550 = vrot.lane.b32.xlu0 %v462, 4
        %v551 = vpop.permute.xlu0 %550
        %552 = vrot.lane.b32.xlu0 %v464, 4
        %v553 = vpop.permute.xlu0 %552
        %554 = vrot.lane.b32.xlu0 %v465, 4
        %v555 = vpop.permute.xlu0 %554
        %556 = vrot.lane.b32.xlu0 %v467, 4
        %v557 = vpop.permute.xlu0 %556
        %558 = vrot.lane.b32.xlu0 %v469, 4
        %v559 = vpop.permute.xlu0 %558
        %560 = vrot.lane.b32.xlu0 %v470, 4
        %v561 = vpop.permute.xlu0 %560
        %562 = vrot.lane.b32.xlu0 %v472, 4
        %v563 = vpop.permute.xlu0 %562
        %564 = vrot.lane.b32.xlu0 %v474, 4
        %v565 = vpop.permute.xlu0 %564
        %566 = vrot.lane.b32.xlu0 %v475, 4
        %v567 = vpop.permute.xlu0 %566
        %568 = vrot.lane.b32.xlu0 %v477, 4
        %v569 = vpop.permute.xlu0 %568
        %570 = vrot.lane.b32.xlu0 %v479, 4
        %v571 = vpop.permute.xlu0 %570
        %572 = vrot.lane.b32.xlu0 %v480, 4
        %v573 = vpop.permute.xlu0 %572
        %574 = vrot.lane.b32.xlu0 %v482, 4
        %v575 = vpop.permute.xlu0 %574
        %576 = vrot.lane.b32.xlu0 %v484, 4
        %v577 = vpop.permute.xlu0 %576
        %578 = vrot.lane.b32.xlu0 %v485, 4
        %v579 = vpop.permute.xlu0 %578
        %580 = vrot.lane.b32.xlu0 %v487, 4
        %v581 = vpop.permute.xlu0 %580
        %582 = vrot.lane.b32.xlu0 %v489, 4
        %v583 = vpop.permute.xlu0 %582
        %584 = vrot.lane.b32.xlu0 %v490, 4
        %v585 = vpop.permute.xlu0 %584
        %586 = vrot.lane.b32.xlu0 %v492, 4
        %v587 = vpop.permute.xlu0 %586
        %588 = vrot.lane.b32.xlu0 %v494, 4
        %v589 = vpop.permute.xlu0 %588
        %590 = vrot.lane.b32.xlu0 %v495, 4
        %v591 = vpop.permute.xlu0 %590
        %592 = vrot.lane.b32.xlu0 %v497, 4
        %v593 = vpop.permute.xlu0 %592
        %594 = vrot.lane.b32.xlu0 %v499, 4
        %v595 = vpop.permute.xlu0 %594
        %644 = vrot.lane.b32.xlu0 %v308, 8
        %v645 = vpop.permute.xlu0 %644
        %646 = vrot.lane.b32.xlu0 %v309, 8
        %v647 = vpop.permute.xlu0 %646
        %648 = vrot.lane.b32.xlu0 %v310, 8
        %v649 = vpop.permute.xlu0 %648
        %650 = vrot.lane.b32.xlu0 %v311, 8
        %v651 = vpop.permute.xlu0 %650
        %652 = vrot.lane.b32.xlu0 %v312, 8
        %v653 = vpop.permute.xlu0 %652
        %654 = vrot.lane.b32.xlu0 %v313, 8
        %v655 = vpop.permute.xlu0 %654
        %656 = vrot.lane.b32.xlu0 %v314, 8
        %v657 = vpop.permute.xlu0 %656
        %658 = vrot.lane.b32.xlu0 %v315, 8
        %v659 = vpop.permute.xlu0 %658
        %660 = vrot.lane.b32.xlu0 %v316, 8
        %v661 = vpop.permute.xlu0 %660
        %662 = vrot.lane.b32.xlu0 %v317, 8
        %v663 = vpop.permute.xlu0 %662
        %664 = vrot.lane.b32.xlu0 %v318, 8
        %v665 = vpop.permute.xlu0 %664
        %666 = vrot.lane.b32.xlu0 %v319, 8
        %v667 = vpop.permute.xlu0 %666
        %668 = vrot.lane.b32.xlu0 %v320, 8
        %v669 = vpop.permute.xlu0 %668
        %670 = vrot.lane.b32.xlu0 %v321, 8
        %v671 = vpop.permute.xlu0 %670
        %672 = vrot.lane.b32.xlu0 %v322, 8
        %v673 = vpop.permute.xlu0 %672
        %674 = vrot.lane.b32.xlu0 %v323, 8
        %v675 = vpop.permute.xlu0 %674
        %676 = vrot.lane.b32.xlu0 %v324, 8
        %v677 = vpop.permute.xlu0 %676
        %678 = vrot.lane.b32.xlu0 %v325, 8
        %v679 = vpop.permute.xlu0 %678
        %680 = vrot.lane.b32.xlu0 %v326, 8
        %v681 = vpop.permute.xlu0 %680
        %682 = vrot.lane.b32.xlu0 %v327, 8
        %v683 = vpop.permute.xlu0 %682
        %684 = vrot.lane.b32.xlu0 %v328, 8
        %v685 = vpop.permute.xlu0 %684
        %686 = vrot.lane.b32.xlu0 %v329, 8
        %v687 = vpop.permute.xlu0 %686
        %688 = vrot.lane.b32.xlu0 %v330, 8
        %v689 = vpop.permute.xlu0 %688
        %690 = vrot.lane.b32.xlu0 %v331, 8
        %v691 = vpop.permute.xlu0 %690
        %692 = vrot.lane.b32.xlu0 %v332, 8
        %v693 = vpop.permute.xlu0 %692
        %694 = vrot.lane.b32.xlu0 %v333, 8
        %v695 = vpop.permute.xlu0 %694
        %696 = vrot.lane.b32.xlu0 %v334, 8
        %v697 = vpop.permute.xlu0 %696
        %698 = vrot.lane.b32.xlu0 %v335, 8
        %v699 = vpop.permute.xlu0 %698
        %700 = vrot.lane.b32.xlu0 %v336, 8
        %v701 = vpop.permute.xlu0 %700
        %702 = vrot.lane.b32.xlu0 %v337, 8
        %v703 = vpop.permute.xlu0 %702
        %704 = vrot.lane.b32.xlu0 %v338, 8
        %v705 = vpop.permute.xlu0 %704
        %706 = vrot.lane.b32.xlu0 %v339, 8
        %v707 = vpop.permute.xlu0 %706
        %708 = vrot.lane.b32.xlu0 %v340, 8
        %v709 = vpop.permute.xlu0 %708
        %710 = vrot.lane.b32.xlu0 %v341, 8
        %v711 = vpop.permute.xlu0 %710
        %712 = vrot.lane.b32.xlu0 %v342, 8
        %v713 = vpop.permute.xlu0 %712
        %714 = vrot.lane.b32.xlu0 %v343, 8
        %v715 = vpop.permute.xlu0 %714
        %716 = vrot.lane.b32.xlu0 %v344, 8
        %v717 = vpop.permute.xlu0 %716
        %718 = vrot.lane.b32.xlu0 %v345, 8
        %v719 = vpop.permute.xlu0 %718
        %720 = vrot.lane.b32.xlu0 %v346, 8
        %v721 = vpop.permute.xlu0 %720
        %722 = vrot.lane.b32.xlu0 %v347, 8
        %v723 = vpop.permute.xlu0 %722
        %724 = vrot.lane.b32.xlu0 %v348, 8
        %v725 = vpop.permute.xlu0 %724
        %726 = vrot.lane.b32.xlu0 %v349, 8
        %v727 = vpop.permute.xlu0 %726
        %728 = vrot.lane.b32.xlu0 %v350, 8
        %v729 = vpop.permute.xlu0 %728
        %730 = vrot.lane.b32.xlu0 %v351, 8
        %v731 = vpop.permute.xlu0 %730
        %732 = vrot.lane.b32.xlu0 %v352, 8
        %v733 = vpop.permute.xlu0 %732
        %734 = vrot.lane.b32.xlu0 %v353, 8
        %v735 = vpop.permute.xlu0 %734
        %736 = vrot.lane.b32.xlu0 %v354, 8
        %v737 = vpop.permute.xlu0 %736
        %738 = vrot.lane.b32.xlu0 %v355, 8
        %v739 = vpop.permute.xlu0 %738
        %vm788 = vcmask 1045504
        %v789 = vrot.slane %v308, 2
        %v790 = vrot.slane %v309, 2
        %v791 = vsel %vm788, %v789, %v790
        %v792 = vrot.slane %v310, 2
        %v793 = vsel %vm788, %v790, %v792
        %v794 = vrot.slane %v311, 2
        %v795 = vrot.slane %v312, 2
        %v796 = vsel %vm788, %v794, %v795
        %v797 = vrot.slane %v313, 2
        %v798 = vsel %vm788, %v795, %v797
        %v799 = vrot.slane %v314, 2
        %v800 = vrot.slane %v315, 2
        %v801 = vsel %vm788, %v799, %v800
        %v802 = vrot.slane %v316, 2
        %v803 = vsel %vm788, %v800, %v802
        %v804 = vrot.slane %v317, 2
        %v805 = vrot.slane %v318, 2
        %v806 = vsel %vm788, %v804, %v805
        %v807 = vrot.slane %v319, 2
        %v808 = vsel %vm788, %v805, %v807
        %v809 = vrot.slane %v320, 2
        %v810 = vrot.slane %v321, 2
        %v811 = vsel %vm788, %v809, %v810
        %v812 = vrot.slane %v322, 2
        %v813 = vsel %vm788, %v810, %v812
        %v814 = vrot.slane %v323, 2
        %v815 = vrot.slane %v324, 2
        %v816 = vsel %vm788, %v814, %v815
        %v817 = vrot.slane %v325, 2
        %v818 = vsel %vm788, %v815, %v817
        %v819 = vrot.slane %v326, 2
        %v820 = vrot.slane %v327, 2
        %v821 = vsel %vm788, %v819, %v820
        %v822 = vrot.slane %v328, 2
        %v823 = vsel %vm788, %v820, %v822
        %v824 = vrot.slane %v329, 2
        %v825 = vrot.slane %v330, 2
        %v826 = vsel %vm788, %v824, %v825
        %v827 = vrot.slane %v331, 2
        %v828 = vsel %vm788, %v825, %v827
        %v829 = vrot.slane %v332, 2
        %v830 = vrot.slane %v333, 2
        %v831 = vsel %vm788, %v829, %v830
        %v832 = vrot.slane %v334, 2
        %v833 = vsel %vm788, %v830, %v832
        %v834 = vrot.slane %v335, 2
        %v835 = vrot.slane %v336, 2
        %v836 = vsel %vm788, %v834, %v835
        %v837 = vrot.slane %v337, 2
        %v838 = vsel %vm788, %v835, %v837
        %v839 = vrot.slane %v338, 2
        %v840 = vrot.slane %v339, 2
        %v841 = vsel %vm788, %v839, %v840
        %v842 = vrot.slane %v340, 2
        %v843 = vsel %vm788, %v840, %v842
        %v844 = vrot.slane %v341, 2
        %v845 = vrot.slane %v342, 2
        %v846 = vsel %vm788, %v844, %v845
        %v847 = vrot.slane %v343, 2
        %v848 = vsel %vm788, %v845, %v847
        %v849 = vrot.slane %v344, 2
        %v850 = vrot.slane %v345, 2
        %v851 = vsel %vm788, %v849, %v850
        %v852 = vrot.slane %v346, 2
        %v853 = vsel %vm788, %v850, %v852
        %v854 = vrot.slane %v347, 2
        %v855 = vrot.slane %v348, 2
        %v856 = vsel %vm788, %v854, %v855
        %v857 = vrot.slane %v349, 2
        %v858 = vsel %vm788, %v855, %v857
        %v859 = vrot.slane %v350, 2
        %v860 = vrot.slane %v351, 2
        %v861 = vsel %vm788, %v859, %v860
        %v862 = vrot.slane %v352, 2
        %v863 = vsel %vm788, %v860, %v862
        %v864 = vrot.slane %v353, 2
        %v865 = vrot.slane %v354, 2
        %v866 = vsel %vm788, %v864, %v865
        %v867 = vrot.slane %v355, 2
        %v868 = vsel %vm788, %v865, %v867
        %869 = vrot.lane.b32.xlu0 %v791, 12
        %v870 = vpop.permute.xlu0 %869
        %871 = vrot.lane.b32.xlu0 %v793, 12
        %v872 = vpop.permute.xlu0 %871
        %873 = vrot.lane.b32.xlu0 %v792, 12
        %v874 = vpop.permute.xlu0 %873
        %875 = vrot.lane.b32.xlu0 %v796, 12
        %v876 = vpop.permute.xlu0 %875
        %877 = vrot.lane.b32.xlu0 %v798, 12
        %v878 = vpop.permute.xlu0 %877
        %879 = vrot.lane.b32.xlu0 %v797, 12
        %v880 = vpop.permute.xlu0 %879
        %881 = vrot.lane.b32.xlu0 %v801, 12
        %v882 = vpop.permute.xlu0 %881
        %883 = vrot.lane.b32.xlu0 %v803, 12
        %v884 = vpop.permute.xlu0 %883
        %885 = vrot.lane.b32.xlu0 %v802, 12
        %v886 = vpop.permute.xlu0 %885
        %887 = vrot.lane.b32.xlu0 %v806, 12
        %v888 = vpop.permute.xlu0 %887
        %889 = vrot.lane.b32.xlu0 %v808, 12
        %v890 = vpop.permute.xlu0 %889
        %891 = vrot.lane.b32.xlu0 %v807, 12
        %v892 = vpop.permute.xlu0 %891
        %893 = vrot.lane.b32.xlu0 %v811, 12
        %v894 = vpop.permute.xlu0 %893
        %895 = vrot.lane.b32.xlu0 %v813, 12
        %v896 = vpop.permute.xlu0 %895
        %897 = vrot.lane.b32.xlu0 %v812, 12
        %v898 = vpop.permute.xlu0 %897
        %899 = vrot.lane.b32.xlu0 %v816, 12
        %v900 = vpop.permute.xlu0 %899
        %901 = vrot.lane.b32.xlu0 %v818, 12
        %v902 = vpop.permute.xlu0 %901
        %903 = vrot.lane.b32.xlu0 %v817, 12
        %v904 = vpop.permute.xlu0 %903
        %905 = vrot.lane.b32.xlu0 %v821, 12
        %v906 = vpop.permute.xlu0 %905
        %907 = vrot.lane.b32.xlu0 %v823, 12
        %v908 = vpop.permute.xlu0 %907
        %909 = vrot.lane.b32.xlu0 %v822, 12
        %v910 = vpop.permute.xlu0 %909
        %911 = vrot.lane.b32.xlu0 %v826, 12
        %v912 = vpop.permute.xlu0 %911
        %913 = vrot.lane.b32.xlu0 %v828, 12
        %v914 = vpop.permute.xlu0 %913
        %915 = vrot.lane.b32.xlu0 %v827, 12
        %v916 = vpop.permute.xlu0 %915
        %917 = vrot.lane.b32.xlu0 %v831, 12
        %v918 = vpop.permute.xlu0 %917
        %919 = vrot.lane.b32.xlu0 %v833, 12
        %v920 = vpop.permute.xlu0 %919
        %921 = vrot.lane.b32.xlu0 %v832, 12
        %v922 = vpop.permute.xlu0 %921
        %923 = vrot.lane.b32.xlu0 %v836, 12
        %v924 = vpop.permute.xlu0 %923
        %925 = vrot.lane.b32.xlu0 %v838, 12
        %v926 = vpop.permute.xlu0 %925
        %927 = vrot.lane.b32.xlu0 %v837, 12
        %v928 = vpop.permute.xlu0 %927
        %929 = vrot.lane.b32.xlu0 %v841, 12
        %v930 = vpop.permute.xlu0 %929
        %931 = vrot.lane.b32.xlu0 %v843, 12
        %v932 = vpop.permute.xlu0 %931
        %933 = vrot.lane.b32.xlu0 %v842, 12
        %v934 = vpop.permute.xlu0 %933
        %935 = vrot.lane.b32.xlu0 %v846, 12
        %v936 = vpop.permute.xlu0 %935
        %937 = vrot.lane.b32.xlu0 %v848, 12
        %v938 = vpop.permute.xlu0 %937
        %939 = vrot.lane.b32.xlu0 %v847, 12
        %v940 = vpop.permute.xlu0 %939
        %941 = vrot.lane.b32.xlu0 %v851, 12
        %v942 = vpop.permute.xlu0 %941
        %943 = vrot.lane.b32.xlu0 %v853, 12
        %v944 = vpop.permute.xlu0 %943
        %945 = vrot.lane.b32.xlu0 %v852, 12
        %v946 = vpop.permute.xlu0 %945
        %947 = vrot.lane.b32.xlu0 %v856, 12
        %v948 = vpop.permute.xlu0 %947
        %949 = vrot.lane.b32.xlu0 %v858, 12
        %v950 = vpop.permute.xlu0 %949
        %951 = vrot.lane.b32.xlu0 %v857, 12
        %v952 = vpop.permute.xlu0 %951
        %953 = vrot.lane.b32.xlu0 %v861, 12
        %v954 = vpop.permute.xlu0 %953
        %955 = vrot.lane.b32.xlu0 %v863, 12
        %v956 = vpop.permute.xlu0 %955
        %957 = vrot.lane.b32.xlu0 %v862, 12
        %v958 = vpop.permute.xlu0 %957
        %959 = vrot.lane.b32.xlu0 %v866, 12
        %v960 = vpop.permute.xlu0 %959
        %961 = vrot.lane.b32.xlu0 %v868, 12
        %v962 = vpop.permute.xlu0 %961
        %963 = vrot.lane.b32.xlu0 %v867, 12
        %v964 = vpop.permute.xlu0 %963
        %v1019 = vrot.slane %v356, 6
        %v1020 = vrot.slane %v357, 6
        %v1021 = vsel %vm419, %v1019, %v1020
        %v1022 = vrot.slane %v358, 6
        %v1023 = vsel %vm419, %v1020, %v1022
        %v1024 = vrot.slane %v359, 6
        %v1025 = vrot.slane %v360, 6
        %v1026 = vsel %vm419, %v1024, %v1025
        %v1027 = vrot.slane %v361, 6
        %v1028 = vsel %vm419, %v1025, %v1027
        %1029 = vrot.lane.b32.xlu0 %v430, 16
        %v1030 = vpop.permute.xlu0 %1029
        %1031 = vrot.lane.b32.xlu0 %v432, 16
        %v1032 = vpop.permute.xlu0 %1031
        %1033 = vrot.lane.b32.xlu0 %v434, 16
        %v1034 = vpop.permute.xlu0 %1033
        %1035 = vrot.lane.b32.xlu0 %v435, 16
        %v1036 = vpop.permute.xlu0 %1035
        %1037 = vrot.lane.b32.xlu0 %v437, 16
        %v1038 = vpop.permute.xlu0 %1037
        %1039 = vrot.lane.b32.xlu0 %v439, 16
        %v1040 = vpop.permute.xlu0 %1039
        %1041 = vrot.lane.b32.xlu0 %v440, 16
        %v1042 = vpop.permute.xlu0 %1041
        %1043 = vrot.lane.b32.xlu0 %v442, 16
        %v1044 = vpop.permute.xlu0 %1043
        %1045 = vrot.lane.b32.xlu0 %v444, 16
        %v1046 = vpop.permute.xlu0 %1045
        %1047 = vrot.lane.b32.xlu0 %v445, 16
        %v1048 = vpop.permute.xlu0 %1047
        %1049 = vrot.lane.b32.xlu0 %v447, 16
        %v1050 = vpop.permute.xlu0 %1049
        %1051 = vrot.lane.b32.xlu0 %v449, 16
        %v1052 = vpop.permute.xlu0 %1051
        %1053 = vrot.lane.b32.xlu0 %v450, 16
        %v1054 = vpop.permute.xlu0 %1053
        %1055 = vrot.lane.b32.xlu0 %v452, 16
        %v1056 = vpop.permute.xlu0 %1055
        %1057 = vrot.lane.b32.xlu0 %v454, 16
        %v1058 = vpop.permute.xlu0 %1057
        %1059 = vrot.lane.b32.xlu0 %v455, 16
        %v1060 = vpop.permute.xlu0 %1059
        %1061 = vrot.lane.b32.xlu0 %v457, 16
        %v1062 = vpop.permute.xlu0 %1061
        %1063 = vrot.lane.b32.xlu0 %v459, 16
        %v1064 = vpop.permute.xlu0 %1063
        %1065 = vrot.lane.b32.xlu0 %v460, 16
        %v1066 = vpop.permute.xlu0 %1065
        %1067 = vrot.lane.b32.xlu0 %v462, 16
        %v1068 = vpop.permute.xlu0 %1067
        %1069 = vrot.lane.b32.xlu0 %v464, 16
        %v1070 = vpop.permute.xlu0 %1069
        %1071 = vrot.lane.b32.xlu0 %v465, 16
        %v1072 = vpop.permute.xlu0 %1071
        %1073 = vrot.lane.b32.xlu0 %v467, 16
        %v1074 = vpop.permute.xlu0 %1073
        %1075 = vrot.lane.b32.xlu0 %v469, 16
        %v1076 = vpop.permute.xlu0 %1075
        %1077 = vrot.lane.b32.xlu0 %v470, 16
        %v1078 = vpop.permute.xlu0 %1077
        %1079 = vrot.lane.b32.xlu0 %v472, 16
        %v1080 = vpop.permute.xlu0 %1079
        %1081 = vrot.lane.b32.xlu0 %v474, 16
        %v1082 = vpop.permute.xlu0 %1081
        %1083 = vrot.lane.b32.xlu0 %v475, 16
        %v1084 = vpop.permute.xlu0 %1083
        %1085 = vrot.lane.b32.xlu0 %v477, 16
        %v1086 = vpop.permute.xlu0 %1085
        %1087 = vrot.lane.b32.xlu0 %v479, 16
        %v1088 = vpop.permute.xlu0 %1087
        %1089 = vrot.lane.b32.xlu0 %v480, 16
        %v1090 = vpop.permute.xlu0 %1089
        %1091 = vrot.lane.b32.xlu0 %v482, 16
        %v1092 = vpop.permute.xlu0 %1091
        %1093 = vrot.lane.b32.xlu0 %v484, 16
        %v1094 = vpop.permute.xlu0 %1093
        %1095 = vrot.lane.b32.xlu0 %v485, 16
        %v1096 = vpop.permute.xlu0 %1095
        %1097 = vrot.lane.b32.xlu0 %v487, 16
        %v1098 = vpop.permute.xlu0 %1097
        %1099 = vrot.lane.b32.xlu0 %v489, 16
        %v1100 = vpop.permute.xlu0 %1099
        %1101 = vrot.lane.b32.xlu0 %v490, 16
        %v1102 = vpop.permute.xlu0 %1101
        %1103 = vrot.lane.b32.xlu0 %v492, 16
        %v1104 = vpop.permute.xlu0 %1103
        %1105 = vrot.lane.b32.xlu0 %v494, 16
        %v1106 = vpop.permute.xlu0 %1105
        %1107 = vrot.lane.b32.xlu0 %v495, 16
        %v1108 = vpop.permute.xlu0 %1107
        %1109 = vrot.lane.b32.xlu0 %v497, 16
        %v1110 = vpop.permute.xlu0 %1109
        %1111 = vrot.lane.b32.xlu0 %v499, 16
        %v1112 = vpop.permute.xlu0 %1111
        %1113 = vrot.lane.b32.xlu0 %v1019, 16
        %v1114 = vpop.permute.xlu0 %1113
        %1115 = vrot.lane.b32.xlu0 %v1021, 16
        %v1116 = vpop.permute.xlu0 %1115
        %1117 = vrot.lane.b32.xlu0 %v1023, 16
        %v1118 = vpop.permute.xlu0 %1117
        %1119 = vrot.lane.b32.xlu0 %v1024, 16
        %v1120 = vpop.permute.xlu0 %1119
        %1121 = vrot.lane.b32.xlu0 %v1026, 16
        %v1122 = vpop.permute.xlu0 %1121
        %1123 = vrot.lane.b32.xlu0 %v1028, 16
        %v1124 = vpop.permute.xlu0 %1123
        %1173 = vrot.lane.b32.xlu0 %v314, 20
        %v1174 = vpop.permute.xlu0 %1173
        %1175 = vrot.lane.b32.xlu0 %v315, 20
        %v1176 = vpop.permute.xlu0 %1175
        %1177 = vrot.lane.b32.xlu0 %v316, 20
        %v1178 = vpop.permute.xlu0 %1177
        %1179 = vrot.lane.b32.xlu0 %v317, 20
        %v1180 = vpop.permute.xlu0 %1179
        %1181 = vrot.lane.b32.xlu0 %v318, 20
        %v1182 = vpop.permute.xlu0 %1181
        %1183 = vrot.lane.b32.xlu0 %v319, 20
        %v1184 = vpop.permute.xlu0 %1183
        %1185 = vrot.lane.b32.xlu0 %v320, 20
        %v1186 = vpop.permute.xlu0 %1185
        %1187 = vrot.lane.b32.xlu0 %v321, 20
        %v1188 = vpop.permute.xlu0 %1187
        %1189 = vrot.lane.b32.xlu0 %v322, 20
        %v1190 = vpop.permute.xlu0 %1189
        %1191 = vrot.lane.b32.xlu0 %v323, 20
        %v1192 = vpop.permute.xlu0 %1191
        %1193 = vrot.lane.b32.xlu0 %v324, 20
        %v1194 = vpop.permute.xlu0 %1193
        %1195 = vrot.lane.b32.xlu0 %v325, 20
        %v1196 = vpop.permute.xlu0 %1195
        %1197 = vrot.lane.b32.xlu0 %v326, 20
        %v1198 = vpop.permute.xlu0 %1197
        %1199 = vrot.lane.b32.xlu0 %v327, 20
        %v1200 = vpop.permute.xlu0 %1199
        %1201 = vrot.lane.b32.xlu0 %v328, 20
        %v1202 = vpop.permute.xlu0 %1201
        %1203 = vrot.lane.b32.xlu0 %v329, 20
        %v1204 = vpop.permute.xlu0 %1203
        %1205 = vrot.lane.b32.xlu0 %v330, 20
        %v1206 = vpop.permute.xlu0 %1205
        %1207 = vrot.lane.b32.xlu0 %v331, 20
        %v1208 = vpop.permute.xlu0 %1207
        %1209 = vrot.lane.b32.xlu0 %v332, 20
        %v1210 = vpop.permute.xlu0 %1209
        %1211 = vrot.lane.b32.xlu0 %v333, 20
        %v1212 = vpop.permute.xlu0 %1211
        %1213 = vrot.lane.b32.xlu0 %v334, 20
        %v1214 = vpop.permute.xlu0 %1213
        %1215 = vrot.lane.b32.xlu0 %v335, 20
        %v1216 = vpop.permute.xlu0 %1215
        %1217 = vrot.lane.b32.xlu0 %v336, 20
        %v1218 = vpop.permute.xlu0 %1217
        %1219 = vrot.lane.b32.xlu0 %v337, 20
        %v1220 = vpop.permute.xlu0 %1219
        %1221 = vrot.lane.b32.xlu0 %v338, 20
        %v1222 = vpop.permute.xlu0 %1221
        %1223 = vrot.lane.b32.xlu0 %v339, 20
        %v1224 = vpop.permute.xlu0 %1223
        %1225 = vrot.lane.b32.xlu0 %v340, 20
        %v1226 = vpop.permute.xlu0 %1225
        %1227 = vrot.lane.b32.xlu0 %v341, 20
        %v1228 = vpop.permute.xlu0 %1227
        %1229 = vrot.lane.b32.xlu0 %v342, 20
        %v1230 = vpop.permute.xlu0 %1229
        %1231 = vrot.lane.b32.xlu0 %v343, 20
        %v1232 = vpop.permute.xlu0 %1231
        %1233 = vrot.lane.b32.xlu0 %v344, 20
        %v1234 = vpop.permute.xlu0 %1233
        %1235 = vrot.lane.b32.xlu0 %v345, 20
        %v1236 = vpop.permute.xlu0 %1235
        %1237 = vrot.lane.b32.xlu0 %v346, 20
        %v1238 = vpop.permute.xlu0 %1237
        %1239 = vrot.lane.b32.xlu0 %v347, 20
        %v1240 = vpop.permute.xlu0 %1239
        %1241 = vrot.lane.b32.xlu0 %v348, 20
        %v1242 = vpop.permute.xlu0 %1241
        %1243 = vrot.lane.b32.xlu0 %v349, 20
        %v1244 = vpop.permute.xlu0 %1243
        %1245 = vrot.lane.b32.xlu0 %v350, 20
        %v1246 = vpop.permute.xlu0 %1245
        %1247 = vrot.lane.b32.xlu0 %v351, 20
        %v1248 = vpop.permute.xlu0 %1247
        %1249 = vrot.lane.b32.xlu0 %v352, 20
        %v1250 = vpop.permute.xlu0 %1249
        %1251 = vrot.lane.b32.xlu0 %v353, 20
        %v1252 = vpop.permute.xlu0 %1251
        %1253 = vrot.lane.b32.xlu0 %v354, 20
        %v1254 = vpop.permute.xlu0 %1253
        %1255 = vrot.lane.b32.xlu0 %v355, 20
        %v1256 = vpop.permute.xlu0 %1255
        %1257 = vrot.lane.b32.xlu0 %v356, 20
        %v1258 = vpop.permute.xlu0 %1257
        %1259 = vrot.lane.b32.xlu0 %v357, 20
        %v1260 = vpop.permute.xlu0 %1259
        %1261 = vrot.lane.b32.xlu0 %v358, 20
        %v1262 = vpop.permute.xlu0 %1261
        %1263 = vrot.lane.b32.xlu0 %v359, 20
        %v1264 = vpop.permute.xlu0 %1263
        %1265 = vrot.lane.b32.xlu0 %v360, 20
        %v1266 = vpop.permute.xlu0 %1265
        %1267 = vrot.lane.b32.xlu0 %v361, 20
        %v1268 = vpop.permute.xlu0 %1267
        %v1317 = vrot.slane %v356, 2
        %v1318 = vrot.slane %v357, 2
        %v1319 = vsel %vm788, %v1317, %v1318
        %v1320 = vrot.slane %v358, 2
        %v1321 = vsel %vm788, %v1318, %v1320
        %v1322 = vrot.slane %v359, 2
        %v1323 = vrot.slane %v360, 2
        %v1324 = vsel %vm788, %v1322, %v1323
        %v1325 = vrot.slane %v361, 2
        %v1326 = vsel %vm788, %v1323, %v1325
        %1327 = vrot.lane.b32.xlu0 %v801, 24
        %v1328 = vpop.permute.xlu0 %1327
        %1329 = vrot.lane.b32.xlu0 %v803, 24
        %v1330 = vpop.permute.xlu0 %1329
        %1331 = vrot.lane.b32.xlu0 %v802, 24
        %v1332 = vpop.permute.xlu0 %1331
        %1333 = vrot.lane.b32.xlu0 %v806, 24
        %v1334 = vpop.permute.xlu0 %1333
        %1335 = vrot.lane.b32.xlu0 %v808, 24
        %v1336 = vpop.permute.xlu0 %1335
        %1337 = vrot.lane.b32.xlu0 %v807, 24
        %v1338 = vpop.permute.xlu0 %1337
        %1339 = vrot.lane.b32.xlu0 %v811, 24
        %v1340 = vpop.permute.xlu0 %1339
        %1341 = vrot.lane.b32.xlu0 %v813, 24
        %v1342 = vpop.permute.xlu0 %1341
        %1343 = vrot.lane.b32.xlu0 %v812, 24
        %v1344 = vpop.permute.xlu0 %1343
        %1345 = vrot.lane.b32.xlu0 %v816, 24
        %v1346 = vpop.permute.xlu0 %1345
        %1347 = vrot.lane.b32.xlu0 %v818, 24
        %v1348 = vpop.permute.xlu0 %1347
        %1349 = vrot.lane.b32.xlu0 %v817, 24
        %v1350 = vpop.permute.xlu0 %1349
        %1351 = vrot.lane.b32.xlu0 %v821, 24
        %v1352 = vpop.permute.xlu0 %1351
        %1353 = vrot.lane.b32.xlu0 %v823, 24
        %v1354 = vpop.permute.xlu0 %1353
        %1355 = vrot.lane.b32.xlu0 %v822, 24
        %v1356 = vpop.permute.xlu0 %1355
        %1357 = vrot.lane.b32.xlu0 %v826, 24
        %v1358 = vpop.permute.xlu0 %1357
        %1359 = vrot.lane.b32.xlu0 %v828, 24
        %v1360 = vpop.permute.xlu0 %1359
        %1361 = vrot.lane.b32.xlu0 %v827, 24
        %v1362 = vpop.permute.xlu0 %1361
        %1363 = vrot.lane.b32.xlu0 %v831, 24
        %v1364 = vpop.permute.xlu0 %1363
        %1365 = vrot.lane.b32.xlu0 %v833, 24
        %v1366 = vpop.permute.xlu0 %1365
        %1367 = vrot.lane.b32.xlu0 %v832, 24
        %v1368 = vpop.permute.xlu0 %1367
        %1369 = vrot.lane.b32.xlu0 %v836, 24
        %v1370 = vpop.permute.xlu0 %1369
        %1371 = vrot.lane.b32.xlu0 %v838, 24
        %v1372 = vpop.permute.xlu0 %1371
        %1373 = vrot.lane.b32.xlu0 %v837, 24
        %v1374 = vpop.permute.xlu0 %1373
        %1375 = vrot.lane.b32.xlu0 %v841, 24
        %v1376 = vpop.permute.xlu0 %1375
        %1377 = vrot.lane.b32.xlu0 %v843, 24
        %v1378 = vpop.permute.xlu0 %1377
        %1379 = vrot.lane.b32.xlu0 %v842, 24
        %v1380 = vpop.permute.xlu0 %1379
        %1381 = vrot.lane.b32.xlu0 %v846, 24
        %v1382 = vpop.permute.xlu0 %1381
        %1383 = vrot.lane.b32.xlu0 %v848, 24
        %v1384 = vpop.permute.xlu0 %1383
        %1385 = vrot.lane.b32.xlu0 %v847, 24
        %v1386 = vpop.permute.xlu0 %1385
        %1387 = vrot.lane.b32.xlu0 %v851, 24
        %v1388 = vpop.permute.xlu0 %1387
        %1389 = vrot.lane.b32.xlu0 %v853, 24
        %v1390 = vpop.permute.xlu0 %1389
        %1391 = vrot.lane.b32.xlu0 %v852, 24
        %v1392 = vpop.permute.xlu0 %1391
        %1393 = vrot.lane.b32.xlu0 %v856, 24
        %v1394 = vpop.permute.xlu0 %1393
        %1395 = vrot.lane.b32.xlu0 %v858, 24
        %v1396 = vpop.permute.xlu0 %1395
        %1397 = vrot.lane.b32.xlu0 %v857, 24
        %v1398 = vpop.permute.xlu0 %1397
        %1399 = vrot.lane.b32.xlu0 %v861, 24
        %v1400 = vpop.permute.xlu0 %1399
        %1401 = vrot.lane.b32.xlu0 %v863, 24
        %v1402 = vpop.permute.xlu0 %1401
        %1403 = vrot.lane.b32.xlu0 %v862, 24
        %v1404 = vpop.permute.xlu0 %1403
        %1405 = vrot.lane.b32.xlu0 %v866, 24
        %v1406 = vpop.permute.xlu0 %1405
        %1407 = vrot.lane.b32.xlu0 %v868, 24
        %v1408 = vpop.permute.xlu0 %1407
        %1409 = vrot.lane.b32.xlu0 %v867, 24
        %v1410 = vpop.permute.xlu0 %1409
        %1411 = vrot.lane.b32.xlu0 %v1319, 24
        %v1412 = vpop.permute.xlu0 %1411
        %1413 = vrot.lane.b32.xlu0 %v1321, 24
        %v1414 = vpop.permute.xlu0 %1413
        %1415 = vrot.lane.b32.xlu0 %v1320, 24
        %v1416 = vpop.permute.xlu0 %1415
        %1417 = vrot.lane.b32.xlu0 %v1324, 24
        %v1418 = vpop.permute.xlu0 %1417
        %1419 = vrot.lane.b32.xlu0 %v1326, 24
        %v1420 = vpop.permute.xlu0 %1419
        %1421 = vrot.lane.b32.xlu0 %v1325, 24
        %v1422 = vpop.permute.xlu0 %1421
        %v1477 = vrot.slane %v362, 6
        %v1478 = vrot.slane %v363, 6
        %v1479 = vsel %vm419, %v1477, %v1478
        %v1480 = vrot.slane %v364, 6
        %v1481 = vsel %vm419, %v1478, %v1480
        %v1482 = vrot.slane %v365, 6
        %v1483 = vrot.slane %v366, 6
        %v1484 = vsel %vm419, %v1482, %v1483
        %v1485 = vrot.slane %v367, 6
        %v1486 = vsel %vm419, %v1483, %v1485
        %1487 = vrot.lane.b32.xlu0 %v440, 28
        %v1488 = vpop.permute.xlu0 %1487
        %1489 = vrot.lane.b32.xlu0 %v442, 28
        %v1490 = vpop.permute.xlu0 %1489
        %1491 = vrot.lane.b32.xlu0 %v444, 28
        %v1492 = vpop.permute.xlu0 %1491
        %1493 = vrot.lane.b32.xlu0 %v445, 28
        %v1494 = vpop.permute.xlu0 %1493
        %1495 = vrot.lane.b32.xlu0 %v447, 28
        %v1496 = vpop.permute.xlu0 %1495
        %1497 = vrot.lane.b32.xlu0 %v449, 28
        %v1498 = vpop.permute.xlu0 %1497
        %1499 = vrot.lane.b32.xlu0 %v450, 28
        %v1500 = vpop.permute.xlu0 %1499
        %1501 = vrot.lane.b32.xlu0 %v452, 28
        %v1502 = vpop.permute.xlu0 %1501
        %1503 = vrot.lane.b32.xlu0 %v454, 28
        %v1504 = vpop.permute.xlu0 %1503
        %1505 = vrot.lane.b32.xlu0 %v455, 28
        %v1506 = vpop.permute.xlu0 %1505
        %1507 = vrot.lane.b32.xlu0 %v457, 28
        %v1508 = vpop.permute.xlu0 %1507
        %1509 = vrot.lane.b32.xlu0 %v459, 28
        %v1510 = vpop.permute.xlu0 %1509
        %1511 = vrot.lane.b32.xlu0 %v460, 28
        %v1512 = vpop.permute.xlu0 %1511
        %1513 = vrot.lane.b32.xlu0 %v462, 28
        %v1514 = vpop.permute.xlu0 %1513
        %1515 = vrot.lane.b32.xlu0 %v464, 28
        %v1516 = vpop.permute.xlu0 %1515
        %1517 = vrot.lane.b32.xlu0 %v465, 28
        %v1518 = vpop.permute.xlu0 %1517
        %1519 = vrot.lane.b32.xlu0 %v467, 28
        %v1520 = vpop.permute.xlu0 %1519
        %1521 = vrot.lane.b32.xlu0 %v469, 28
        %v1522 = vpop.permute.xlu0 %1521
        %1523 = vrot.lane.b32.xlu0 %v470, 28
        %v1524 = vpop.permute.xlu0 %1523
        %1525 = vrot.lane.b32.xlu0 %v472, 28
        %v1526 = vpop.permute.xlu0 %1525
        %1527 = vrot.lane.b32.xlu0 %v474, 28
        %v1528 = vpop.permute.xlu0 %1527
        %1529 = vrot.lane.b32.xlu0 %v475, 28
        %v1530 = vpop.permute.xlu0 %1529
        %1531 = vrot.lane.b32.xlu0 %v477, 28
        %v1532 = vpop.permute.xlu0 %1531
        %1533 = vrot.lane.b32.xlu0 %v479, 28
        %v1534 = vpop.permute.xlu0 %1533
        %1535 = vrot.lane.b32.xlu0 %v480, 28
        %v1536 = vpop.permute.xlu0 %1535
        %1537 = vrot.lane.b32.xlu0 %v482, 28
        %v1538 = vpop.permute.xlu0 %1537
        %1539 = vrot.lane.b32.xlu0 %v484, 28
        %v1540 = vpop.permute.xlu0 %1539
        %1541 = vrot.lane.b32.xlu0 %v485, 28
        %v1542 = vpop.permute.xlu0 %1541
        %1543 = vrot.lane.b32.xlu0 %v487, 28
        %v1544 = vpop.permute.xlu0 %1543
        %1545 = vrot.lane.b32.xlu0 %v489, 28
        %v1546 = vpop.permute.xlu0 %1545
        %1547 = vrot.lane.b32.xlu0 %v490, 28
        %v1548 = vpop.permute.xlu0 %1547
        %1549 = vrot.lane.b32.xlu0 %v492, 28
        %v1550 = vpop.permute.xlu0 %1549
        %1551 = vrot.lane.b32.xlu0 %v494, 28
        %v1552 = vpop.permute.xlu0 %1551
        %1553 = vrot.lane.b32.xlu0 %v495, 28
        %v1554 = vpop.permute.xlu0 %1553
        %1555 = vrot.lane.b32.xlu0 %v497, 28
        %v1556 = vpop.permute.xlu0 %1555
        %1557 = vrot.lane.b32.xlu0 %v499, 28
        %v1558 = vpop.permute.xlu0 %1557
        %1559 = vrot.lane.b32.xlu0 %v1019, 28
        %v1560 = vpop.permute.xlu0 %1559
        %1561 = vrot.lane.b32.xlu0 %v1021, 28
        %v1562 = vpop.permute.xlu0 %1561
        %1563 = vrot.lane.b32.xlu0 %v1023, 28
        %v1564 = vpop.permute.xlu0 %1563
        %1565 = vrot.lane.b32.xlu0 %v1024, 28
        %v1566 = vpop.permute.xlu0 %1565
        %1567 = vrot.lane.b32.xlu0 %v1026, 28
        %v1568 = vpop.permute.xlu0 %1567
        %1569 = vrot.lane.b32.xlu0 %v1028, 28
        %v1570 = vpop.permute.xlu0 %1569
        %1571 = vrot.lane.b32.xlu0 %v1477, 28
        %v1572 = vpop.permute.xlu0 %1571
        %1573 = vrot.lane.b32.xlu0 %v1479, 28
        %v1574 = vpop.permute.xlu0 %1573
        %1575 = vrot.lane.b32.xlu0 %v1481, 28
        %v1576 = vpop.permute.xlu0 %1575
        %1577 = vrot.lane.b32.xlu0 %v1482, 28
        %v1578 = vpop.permute.xlu0 %1577
        %1579 = vrot.lane.b32.xlu0 %v1484, 28
        %v1580 = vpop.permute.xlu0 %1579
        %1581 = vrot.lane.b32.xlu0 %v1486, 28
        %v1582 = vpop.permute.xlu0 %1581
        %1631 = vrot.lane.b32.xlu0 %v320, 32
        %v1632 = vpop.permute.xlu0 %1631
        %1633 = vrot.lane.b32.xlu0 %v321, 32
        %v1634 = vpop.permute.xlu0 %1633
        %1635 = vrot.lane.b32.xlu0 %v322, 32
        %v1636 = vpop.permute.xlu0 %1635
        %1637 = vrot.lane.b32.xlu0 %v323, 32
        %v1638 = vpop.permute.xlu0 %1637
        %1639 = vrot.lane.b32.xlu0 %v324, 32
        %v1640 = vpop.permute.xlu0 %1639
        %1641 = vrot.lane.b32.xlu0 %v325, 32
        %v1642 = vpop.permute.xlu0 %1641
        %1643 = vrot.lane.b32.xlu0 %v326, 32
        %v1644 = vpop.permute.xlu0 %1643
        %1645 = vrot.lane.b32.xlu0 %v327, 32
        %v1646 = vpop.permute.xlu0 %1645
        %1647 = vrot.lane.b32.xlu0 %v328, 32
        %v1648 = vpop.permute.xlu0 %1647
        %1649 = vrot.lane.b32.xlu0 %v329, 32
        %v1650 = vpop.permute.xlu0 %1649
        %1651 = vrot.lane.b32.xlu0 %v330, 32
        %v1652 = vpop.permute.xlu0 %1651
        %1653 = vrot.lane.b32.xlu0 %v331, 32
        %v1654 = vpop.permute.xlu0 %1653
        %1655 = vrot.lane.b32.xlu0 %v332, 32
        %v1656 = vpop.permute.xlu0 %1655
        %1657 = vrot.lane.b32.xlu0 %v333, 32
        %v1658 = vpop.permute.xlu0 %1657
        %1659 = vrot.lane.b32.xlu0 %v334, 32
        %v1660 = vpop.permute.xlu0 %1659
        %1661 = vrot.lane.b32.xlu0 %v335, 32
        %v1662 = vpop.permute.xlu0 %1661
        %1663 = vrot.lane.b32.xlu0 %v336, 32
        %v1664 = vpop.permute.xlu0 %1663
        %1665 = vrot.lane.b32.xlu0 %v337, 32
        %v1666 = vpop.permute.xlu0 %1665
        %1667 = vrot.lane.b32.xlu0 %v338, 32
        %v1668 = vpop.permute.xlu0 %1667
        %1669 = vrot.lane.b32.xlu0 %v339, 32
        %v1670 = vpop.permute.xlu0 %1669
        %1671 = vrot.lane.b32.xlu0 %v340, 32
        %v1672 = vpop.permute.xlu0 %1671
        %1673 = vrot.lane.b32.xlu0 %v341, 32
        %v1674 = vpop.permute.xlu0 %1673
        %1675 = vrot.lane.b32.xlu0 %v342, 32
        %v1676 = vpop.permute.xlu0 %1675
        %1677 = vrot.lane.b32.xlu0 %v343, 32
        %v1678 = vpop.permute.xlu0 %1677
        %1679 = vrot.lane.b32.xlu0 %v344, 32
        %v1680 = vpop.permute.xlu0 %1679
        %1681 = vrot.lane.b32.xlu0 %v345, 32
        %v1682 = vpop.permute.xlu0 %1681
        %1683 = vrot.lane.b32.xlu0 %v346, 32
        %v1684 = vpop.permute.xlu0 %1683
        %1685 = vrot.lane.b32.xlu0 %v347, 32
        %v1686 = vpop.permute.xlu0 %1685
        %1687 = vrot.lane.b32.xlu0 %v348, 32
        %v1688 = vpop.permute.xlu0 %1687
        %1689 = vrot.lane.b32.xlu0 %v349, 32
        %v1690 = vpop.permute.xlu0 %1689
        %1691 = vrot.lane.b32.xlu0 %v350, 32
        %v1692 = vpop.permute.xlu0 %1691
        %1693 = vrot.lane.b32.xlu0 %v351, 32
        %v1694 = vpop.permute.xlu0 %1693
        %1695 = vrot.lane.b32.xlu0 %v352, 32
        %v1696 = vpop.permute.xlu0 %1695
        %1697 = vrot.lane.b32.xlu0 %v353, 32
        %v1698 = vpop.permute.xlu0 %1697
        %1699 = vrot.lane.b32.xlu0 %v354, 32
        %v1700 = vpop.permute.xlu0 %1699
        %1701 = vrot.lane.b32.xlu0 %v355, 32
        %v1702 = vpop.permute.xlu0 %1701
        %1703 = vrot.lane.b32.xlu0 %v356, 32
        %v1704 = vpop.permute.xlu0 %1703
        %1705 = vrot.lane.b32.xlu0 %v357, 32
        %v1706 = vpop.permute.xlu0 %1705
        %1707 = vrot.lane.b32.xlu0 %v358, 32
        %v1708 = vpop.permute.xlu0 %1707
        %1709 = vrot.lane.b32.xlu0 %v359, 32
        %v1710 = vpop.permute.xlu0 %1709
        %1711 = vrot.lane.b32.xlu0 %v360, 32
        %v1712 = vpop.permute.xlu0 %1711
        %1713 = vrot.lane.b32.xlu0 %v361, 32
        %v1714 = vpop.permute.xlu0 %1713
        %1715 = vrot.lane.b32.xlu0 %v362, 32
        %v1716 = vpop.permute.xlu0 %1715
        %1717 = vrot.lane.b32.xlu0 %v363, 32
        %v1718 = vpop.permute.xlu0 %1717
        %1719 = vrot.lane.b32.xlu0 %v364, 32
        %v1720 = vpop.permute.xlu0 %1719
        %1721 = vrot.lane.b32.xlu0 %v365, 32
        %v1722 = vpop.permute.xlu0 %1721
        %1723 = vrot.lane.b32.xlu0 %v366, 32
        %v1724 = vpop.permute.xlu0 %1723
        %1725 = vrot.lane.b32.xlu0 %v367, 32
        %v1726 = vpop.permute.xlu0 %1725
        %v1775 = vrot.slane %v362, 2
        %v1776 = vrot.slane %v363, 2
        %v1777 = vsel %vm788, %v1775, %v1776
        %v1778 = vrot.slane %v364, 2
        %v1779 = vsel %vm788, %v1776, %v1778
        %v1780 = vrot.slane %v365, 2
        %v1781 = vrot.slane %v366, 2
        %v1782 = vsel %vm788, %v1780, %v1781
        %v1783 = vrot.slane %v367, 2
        %v1784 = vsel %vm788, %v1781, %v1783
        %1785 = vrot.lane.b32.xlu0 %v811, 36
        %v1786 = vpop.permute.xlu0 %1785
        %1787 = vrot.lane.b32.xlu0 %v813, 36
        %v1788 = vpop.permute.xlu0 %1787
        %1789 = vrot.lane.b32.xlu0 %v812, 36
        %v1790 = vpop.permute.xlu0 %1789
        %1791 = vrot.lane.b32.xlu0 %v816, 36
        %v1792 = vpop.permute.xlu0 %1791
        %1793 = vrot.lane.b32.xlu0 %v818, 36
        %v1794 = vpop.permute.xlu0 %1793
        %1795 = vrot.lane.b32.xlu0 %v817, 36
        %v1796 = vpop.permute.xlu0 %1795
        %1797 = vrot.lane.b32.xlu0 %v821, 36
        %v1798 = vpop.permute.xlu0 %1797
        %1799 = vrot.lane.b32.xlu0 %v823, 36
        %v1800 = vpop.permute.xlu0 %1799
        %1801 = vrot.lane.b32.xlu0 %v822, 36
        %v1802 = vpop.permute.xlu0 %1801
        %1803 = vrot.lane.b32.xlu0 %v826, 36
        %v1804 = vpop.permute.xlu0 %1803
        %1805 = vrot.lane.b32.xlu0 %v828, 36
        %v1806 = vpop.permute.xlu0 %1805
        %1807 = vrot.lane.b32.xlu0 %v827, 36
        %v1808 = vpop.permute.xlu0 %1807
        %1809 = vrot.lane.b32.xlu0 %v831, 36
        %v1810 = vpop.permute.xlu0 %1809
        %1811 = vrot.lane.b32.xlu0 %v833, 36
        %v1812 = vpop.permute.xlu0 %1811
        %1813 = vrot.lane.b32.xlu0 %v832, 36
        %v1814 = vpop.permute.xlu0 %1813
        %1815 = vrot.lane.b32.xlu0 %v836, 36
        %v1816 = vpop.permute.xlu0 %1815
        %1817 = vrot.lane.b32.xlu0 %v838, 36
        %v1818 = vpop.permute.xlu0 %1817
        %1819 = vrot.lane.b32.xlu0 %v837, 36
        %v1820 = vpop.permute.xlu0 %1819
        %1821 = vrot.lane.b32.xlu0 %v841, 36
        %v1822 = vpop.permute.xlu0 %1821
        %1823 = vrot.lane.b32.xlu0 %v843, 36
        %v1824 = vpop.permute.xlu0 %1823
        %1825 = vrot.lane.b32.xlu0 %v842, 36
        %v1826 = vpop.permute.xlu0 %1825
        %1827 = vrot.lane.b32.xlu0 %v846, 36
        %v1828 = vpop.permute.xlu0 %1827
        %1829 = vrot.lane.b32.xlu0 %v848, 36
        %v1830 = vpop.permute.xlu0 %1829
        %1831 = vrot.lane.b32.xlu0 %v847, 36
        %v1832 = vpop.permute.xlu0 %1831
        %1833 = vrot.lane.b32.xlu0 %v851, 36
        %v1834 = vpop.permute.xlu0 %1833
        %1835 = vrot.lane.b32.xlu0 %v853, 36
        %v1836 = vpop.permute.xlu0 %1835
        %1837 = vrot.lane.b32.xlu0 %v852, 36
        %v1838 = vpop.permute.xlu0 %1837
        %1839 = vrot.lane.b32.xlu0 %v856, 36
        %v1840 = vpop.permute.xlu0 %1839
        %1841 = vrot.lane.b32.xlu0 %v858, 36
        %v1842 = vpop.permute.xlu0 %1841
        %1843 = vrot.lane.b32.xlu0 %v857, 36
        %v1844 = vpop.permute.xlu0 %1843
        %1845 = vrot.lane.b32.xlu0 %v861, 36
        %v1846 = vpop.permute.xlu0 %1845
        %1847 = vrot.lane.b32.xlu0 %v863, 36
        %v1848 = vpop.permute.xlu0 %1847
        %1849 = vrot.lane.b32.xlu0 %v862, 36
        %v1850 = vpop.permute.xlu0 %1849
        %1851 = vrot.lane.b32.xlu0 %v866, 36
        %v1852 = vpop.permute.xlu0 %1851
        %1853 = vrot.lane.b32.xlu0 %v868, 36
        %v1854 = vpop.permute.xlu0 %1853
        %1855 = vrot.lane.b32.xlu0 %v867, 36
        %v1856 = vpop.permute.xlu0 %1855
        %1857 = vrot.lane.b32.xlu0 %v1319, 36
        %v1858 = vpop.permute.xlu0 %1857
        %1859 = vrot.lane.b32.xlu0 %v1321, 36
        %v1860 = vpop.permute.xlu0 %1859
        %1861 = vrot.lane.b32.xlu0 %v1320, 36
        %v1862 = vpop.permute.xlu0 %1861
        %1863 = vrot.lane.b32.xlu0 %v1324, 36
        %v1864 = vpop.permute.xlu0 %1863
        %1865 = vrot.lane.b32.xlu0 %v1326, 36
        %v1866 = vpop.permute.xlu0 %1865
        %1867 = vrot.lane.b32.xlu0 %v1325, 36
        %v1868 = vpop.permute.xlu0 %1867
        %1869 = vrot.lane.b32.xlu0 %v1777, 36
        %v1870 = vpop.permute.xlu0 %1869
        %1871 = vrot.lane.b32.xlu0 %v1779, 36
        %v1872 = vpop.permute.xlu0 %1871
        %1873 = vrot.lane.b32.xlu0 %v1778, 36
        %v1874 = vpop.permute.xlu0 %1873
        %1875 = vrot.lane.b32.xlu0 %v1782, 36
        %v1876 = vpop.permute.xlu0 %1875
        %1877 = vrot.lane.b32.xlu0 %v1784, 36
        %v1878 = vpop.permute.xlu0 %1877
        %1879 = vrot.lane.b32.xlu0 %v1783, 36
        %v1880 = vpop.permute.xlu0 %1879
        %vm1931 = vcmask 1042432
        %v1932 = vrot.slane %v305, 5
        %v1933 = vrot.slane %v306, 5
        %v1934 = vsel %vm1931, %v1932, %v1933
        %v1935 = vrot.slane %v308, 5
        %v1936 = vrot.slane %v309, 5
        %v1937 = vsel %vm1931, %v1935, %v1936
        %v1938 = vrot.slane %v311, 5
        %v1939 = vrot.slane %v312, 5
        %v1940 = vsel %vm1931, %v1938, %v1939
        %v1941 = vrot.slane %v314, 5
        %v1942 = vrot.slane %v315, 5
        %v1943 = vsel %vm1931, %v1941, %v1942
        %v1944 = vrot.slane %v317, 5
        %v1945 = vrot.slane %v318, 5
        %v1946 = vsel %vm1931, %v1944, %v1945
        %v1947 = vrot.slane %v320, 5
        %v1948 = vrot.slane %v321, 5
        %v1949 = vsel %vm1931, %v1947, %v1948
        %v1950 = vrot.slane %v323, 5
        %v1951 = vrot.slane %v324, 5
        %v1952 = vsel %vm1931, %v1950, %v1951
        %v1953 = vrot.slane %v326, 5
        %v1954 = vrot.slane %v327, 5
        %v1955 = vsel %vm1931, %v1953, %v1954
        %v1956 = vrot.slane %v329, 5
        %v1957 = vrot.slane %v330, 5
        %v1958 = vsel %vm1931, %v1956, %v1957
        %v1959 = vrot.slane %v332, 5
        %v1960 = vrot.slane %v333, 5
        %v1961 = vsel %vm1931, %v1959, %v1960
        %v1962 = vrot.slane %v335, 5
        %v1963 = vrot.slane %v336, 5
        %v1964 = vsel %vm1931, %v1962, %v1963
        %v1965 = vrot.slane %v338, 5
        %v1966 = vrot.slane %v339, 5
        %v1967 = vsel %vm1931, %v1965, %v1966
        %v1968 = vrot.slane %v341, 5
        %v1969 = vrot.slane %v342, 5
        %v1970 = vsel %vm1931, %v1968, %v1969
        %v1971 = vrot.slane %v344, 5
        %v1972 = vrot.slane %v345, 5
        %v1973 = vsel %vm1931, %v1971, %v1972
        %v1974 = vrot.slane %v347, 5
        %v1975 = vrot.slane %v348, 5
        %v1976 = vsel %vm1931, %v1974, %v1975
        %v1977 = vrot.slane %v350, 5
        %v1978 = vrot.slane %v351, 5
        %v1979 = vsel %vm1931, %v1977, %v1978
        %1980 = vrot.lane.b32.xlu0 %v1932, 40
        %v1981 = vpop.permute.xlu0 %1980
        %1982 = vrot.lane.b32.xlu0 %v1934, 40
        %v1983 = vpop.permute.xlu0 %1982
        %1984 = vrot.lane.b32.xlu0 %v1933, 40
        %v1985 = vpop.permute.xlu0 %1984
        %1986 = vrot.lane.b32.xlu0 %v1935, 40
        %v1987 = vpop.permute.xlu0 %1986
        %1988 = vrot.lane.b32.xlu0 %v1937, 40
        %v1989 = vpop.permute.xlu0 %1988
        %1990 = vrot.lane.b32.xlu0 %v1936, 40
        %v1991 = vpop.permute.xlu0 %1990
        %1992 = vrot.lane.b32.xlu0 %v1938, 40
        %v1993 = vpop.permute.xlu0 %1992
        %1994 = vrot.lane.b32.xlu0 %v1940, 40
        %v1995 = vpop.permute.xlu0 %1994
        %1996 = vrot.lane.b32.xlu0 %v1939, 40
        %v1997 = vpop.permute.xlu0 %1996
        %1998 = vrot.lane.b32.xlu0 %v1941, 40
        %v1999 = vpop.permute.xlu0 %1998
        %2000 = vrot.lane.b32.xlu0 %v1943, 40
        %v2001 = vpop.permute.xlu0 %2000
        %2002 = vrot.lane.b32.xlu0 %v1942, 40
        %v2003 = vpop.permute.xlu0 %2002
        %2004 = vrot.lane.b32.xlu0 %v1944, 40
        %v2005 = vpop.permute.xlu0 %2004
        %2006 = vrot.lane.b32.xlu0 %v1946, 40
        %v2007 = vpop.permute.xlu0 %2006
        %2008 = vrot.lane.b32.xlu0 %v1945, 40
        %v2009 = vpop.permute.xlu0 %2008
        %2010 = vrot.lane.b32.xlu0 %v1947, 40
        %v2011 = vpop.permute.xlu0 %2010
        %2012 = vrot.lane.b32.xlu0 %v1949, 40
        %v2013 = vpop.permute.xlu0 %2012
        %2014 = vrot.lane.b32.xlu0 %v1948, 40
        %v2015 = vpop.permute.xlu0 %2014
        %2016 = vrot.lane.b32.xlu0 %v1950, 40
        %v2017 = vpop.permute.xlu0 %2016
        %2018 = vrot.lane.b32.xlu0 %v1952, 40
        %v2019 = vpop.permute.xlu0 %2018
        %2020 = vrot.lane.b32.xlu0 %v1951, 40
        %v2021 = vpop.permute.xlu0 %2020
        %2022 = vrot.lane.b32.xlu0 %v1953, 40
        %v2023 = vpop.permute.xlu0 %2022
        %2024 = vrot.lane.b32.xlu0 %v1955, 40
        %v2025 = vpop.permute.xlu0 %2024
        %2026 = vrot.lane.b32.xlu0 %v1954, 40
        %v2027 = vpop.permute.xlu0 %2026
        %2028 = vrot.lane.b32.xlu0 %v1956, 40
        %v2029 = vpop.permute.xlu0 %2028
        %2030 = vrot.lane.b32.xlu0 %v1958, 40
        %v2031 = vpop.permute.xlu0 %2030
        %2032 = vrot.lane.b32.xlu0 %v1957, 40
        %v2033 = vpop.permute.xlu0 %2032
        %2034 = vrot.lane.b32.xlu0 %v1959, 40
        %v2035 = vpop.permute.xlu0 %2034
        %2036 = vrot.lane.b32.xlu0 %v1961, 40
        %v2037 = vpop.permute.xlu0 %2036
        %2038 = vrot.lane.b32.xlu0 %v1960, 40
        %v2039 = vpop.permute.xlu0 %2038
        %2040 = vrot.lane.b32.xlu0 %v1962, 40
        %v2041 = vpop.permute.xlu0 %2040
        %2042 = vrot.lane.b32.xlu0 %v1964, 40
        %v2043 = vpop.permute.xlu0 %2042
        %2044 = vrot.lane.b32.xlu0 %v1963, 40
        %v2045 = vpop.permute.xlu0 %2044
        %2046 = vrot.lane.b32.xlu0 %v1965, 40
        %v2047 = vpop.permute.xlu0 %2046
        %2048 = vrot.lane.b32.xlu0 %v1967, 40
        %v2049 = vpop.permute.xlu0 %2048
        %2050 = vrot.lane.b32.xlu0 %v1966, 40
        %v2051 = vpop.permute.xlu0 %2050
        %2052 = vrot.lane.b32.xlu0 %v1968, 40
        %v2053 = vpop.permute.xlu0 %2052
        %2054 = vrot.lane.b32.xlu0 %v1970, 40
        %v2055 = vpop.permute.xlu0 %2054
        %2056 = vrot.lane.b32.xlu0 %v1969, 40
        %v2057 = vpop.permute.xlu0 %2056
        %2058 = vrot.lane.b32.xlu0 %v1971, 40
        %v2059 = vpop.permute.xlu0 %2058
        %2060 = vrot.lane.b32.xlu0 %v1973, 40
        %v2061 = vpop.permute.xlu0 %2060
        %2062 = vrot.lane.b32.xlu0 %v1972, 40
        %v2063 = vpop.permute.xlu0 %2062
        %2064 = vrot.lane.b32.xlu0 %v1974, 40
        %v2065 = vpop.permute.xlu0 %2064
        %2066 = vrot.lane.b32.xlu0 %v1976, 40
        %v2067 = vpop.permute.xlu0 %2066
        %2068 = vrot.lane.b32.xlu0 %v1975, 40
        %v2069 = vpop.permute.xlu0 %2068
        %2070 = vrot.lane.b32.xlu0 %v1977, 40
        %v2071 = vpop.permute.xlu0 %2070
        %2072 = vrot.lane.b32.xlu0 %v1979, 40
        %v2073 = vpop.permute.xlu0 %2072
        %2074 = vrot.lane.b32.xlu0 %v1978, 40
        %v2075 = vpop.permute.xlu0 %2074
        %2125 = vrot.lane.b32.xlu0 %v305, 44
        %v2126 = vpop.permute.xlu0 %2125
        %2127 = vrot.lane.b32.xlu0 %v306, 44
        %v2128 = vpop.permute.xlu0 %2127
        %2129 = vrot.lane.b32.xlu0 %v307, 44
        %v2130 = vpop.permute.xlu0 %2129
        %2131 = vrot.lane.b32.xlu0 %v308, 44
        %v2132 = vpop.permute.xlu0 %2131
        %2133 = vrot.lane.b32.xlu0 %v309, 44
        %v2134 = vpop.permute.xlu0 %2133
        %2135 = vrot.lane.b32.xlu0 %v310, 44
        %v2136 = vpop.permute.xlu0 %2135
        %2137 = vrot.lane.b32.xlu0 %v311, 44
        %v2138 = vpop.permute.xlu0 %2137
        %2139 = vrot.lane.b32.xlu0 %v312, 44
        %v2140 = vpop.permute.xlu0 %2139
        %2141 = vrot.lane.b32.xlu0 %v313, 44
        %v2142 = vpop.permute.xlu0 %2141
        %2143 = vrot.lane.b32.xlu0 %v314, 44
        %v2144 = vpop.permute.xlu0 %2143
        %2145 = vrot.lane.b32.xlu0 %v315, 44
        %v2146 = vpop.permute.xlu0 %2145
        %2147 = vrot.lane.b32.xlu0 %v316, 44
        %v2148 = vpop.permute.xlu0 %2147
        %2149 = vrot.lane.b32.xlu0 %v317, 44
        %v2150 = vpop.permute.xlu0 %2149
        %2151 = vrot.lane.b32.xlu0 %v318, 44
        %v2152 = vpop.permute.xlu0 %2151
        %2153 = vrot.lane.b32.xlu0 %v319, 44
        %v2154 = vpop.permute.xlu0 %2153
        %2155 = vrot.lane.b32.xlu0 %v320, 44
        %v2156 = vpop.permute.xlu0 %2155
        %2157 = vrot.lane.b32.xlu0 %v321, 44
        %v2158 = vpop.permute.xlu0 %2157
        %2159 = vrot.lane.b32.xlu0 %v322, 44
        %v2160 = vpop.permute.xlu0 %2159
        %2161 = vrot.lane.b32.xlu0 %v323, 44
        %v2162 = vpop.permute.xlu0 %2161
        %2163 = vrot.lane.b32.xlu0 %v324, 44
        %v2164 = vpop.permute.xlu0 %2163
        %2165 = vrot.lane.b32.xlu0 %v325, 44
        %v2166 = vpop.permute.xlu0 %2165
        %2167 = vrot.lane.b32.xlu0 %v326, 44
        %v2168 = vpop.permute.xlu0 %2167
        %2169 = vrot.lane.b32.xlu0 %v327, 44
        %v2170 = vpop.permute.xlu0 %2169
        %2171 = vrot.lane.b32.xlu0 %v328, 44
        %v2172 = vpop.permute.xlu0 %2171
        %2173 = vrot.lane.b32.xlu0 %v329, 44
        %v2174 = vpop.permute.xlu0 %2173
        %2175 = vrot.lane.b32.xlu0 %v330, 44
        %v2176 = vpop.permute.xlu0 %2175
        %2177 = vrot.lane.b32.xlu0 %v331, 44
        %v2178 = vpop.permute.xlu0 %2177
        %2179 = vrot.lane.b32.xlu0 %v332, 44
        %v2180 = vpop.permute.xlu0 %2179
        %2181 = vrot.lane.b32.xlu0 %v333, 44
        %v2182 = vpop.permute.xlu0 %2181
        %2183 = vrot.lane.b32.xlu0 %v334, 44
        %v2184 = vpop.permute.xlu0 %2183
        %2185 = vrot.lane.b32.xlu0 %v335, 44
        %v2186 = vpop.permute.xlu0 %2185
        %2187 = vrot.lane.b32.xlu0 %v336, 44
        %v2188 = vpop.permute.xlu0 %2187
        %2189 = vrot.lane.b32.xlu0 %v337, 44
        %v2190 = vpop.permute.xlu0 %2189
        %2191 = vrot.lane.b32.xlu0 %v338, 44
        %v2192 = vpop.permute.xlu0 %2191
        %2193 = vrot.lane.b32.xlu0 %v339, 44
        %v2194 = vpop.permute.xlu0 %2193
        %2195 = vrot.lane.b32.xlu0 %v340, 44
        %v2196 = vpop.permute.xlu0 %2195
        %2197 = vrot.lane.b32.xlu0 %v341, 44
        %v2198 = vpop.permute.xlu0 %2197
        %2199 = vrot.lane.b32.xlu0 %v342, 44
        %v2200 = vpop.permute.xlu0 %2199
        %2201 = vrot.lane.b32.xlu0 %v343, 44
        %v2202 = vpop.permute.xlu0 %2201
        %2203 = vrot.lane.b32.xlu0 %v344, 44
        %v2204 = vpop.permute.xlu0 %2203
        %2205 = vrot.lane.b32.xlu0 %v345, 44
        %v2206 = vpop.permute.xlu0 %2205
        %2207 = vrot.lane.b32.xlu0 %v346, 44
        %v2208 = vpop.permute.xlu0 %2207
        %2209 = vrot.lane.b32.xlu0 %v347, 44
        %v2210 = vpop.permute.xlu0 %2209
        %2211 = vrot.lane.b32.xlu0 %v348, 44
        %v2212 = vpop.permute.xlu0 %2211
        %2213 = vrot.lane.b32.xlu0 %v349, 44
        %v2214 = vpop.permute.xlu0 %2213
        %2215 = vrot.lane.b32.xlu0 %v350, 44
        %v2216 = vpop.permute.xlu0 %2215
        %2217 = vrot.lane.b32.xlu0 %v351, 44
        %v2218 = vpop.permute.xlu0 %2217
        %2219 = vrot.lane.b32.xlu0 %v352, 44
        %v2220 = vpop.permute.xlu0 %2219
        %vm2269 = vcmask 1044480
        %v2270 = vrot.slane %v305, 3
        %v2271 = vrot.slane %v306, 3
        %v2272 = vsel %vm2269, %v2270, %v2271
        %v2273 = vrot.slane %v307, 3
        %v2274 = vsel %vm2269, %v2271, %v2273
        %v2275 = vrot.slane %v308, 3
        %v2276 = vrot.slane %v309, 3
        %v2277 = vsel %vm2269, %v2275, %v2276
        %v2278 = vrot.slane %v310, 3
        %v2279 = vsel %vm2269, %v2276, %v2278
        %v2280 = vrot.slane %v311, 3
        %v2281 = vrot.slane %v312, 3
        %v2282 = vsel %vm2269, %v2280, %v2281
        %v2283 = vrot.slane %v313, 3
        %v2284 = vsel %vm2269, %v2281, %v2283
        %v2285 = vrot.slane %v314, 3
        %v2286 = vrot.slane %v315, 3
        %v2287 = vsel %vm2269, %v2285, %v2286
        %v2288 = vrot.slane %v316, 3
        %v2289 = vsel %vm2269, %v2286, %v2288
        %v2290 = vrot.slane %v317, 3
        %v2291 = vrot.slane %v318, 3
        %v2292 = vsel %vm2269, %v2290, %v2291
        %v2293 = vrot.slane %v319, 3
        %v2294 = vsel %vm2269, %v2291, %v2293
        %v2295 = vrot.slane %v320, 3
        %v2296 = vrot.slane %v321, 3
        %v2297 = vsel %vm2269, %v2295, %v2296
        %v2298 = vrot.slane %v322, 3
        %v2299 = vsel %vm2269, %v2296, %v2298
        %v2300 = vrot.slane %v323, 3
        %v2301 = vrot.slane %v324, 3
        %v2302 = vsel %vm2269, %v2300, %v2301
        %v2303 = vrot.slane %v325, 3
        %v2304 = vsel %vm2269, %v2301, %v2303
        %v2305 = vrot.slane %v326, 3
        %v2306 = vrot.slane %v327, 3
        %v2307 = vsel %vm2269, %v2305, %v2306
        %v2308 = vrot.slane %v328, 3
        %v2309 = vsel %vm2269, %v2306, %v2308
        %v2310 = vrot.slane %v329, 3
        %v2311 = vrot.slane %v330, 3
        %v2312 = vsel %vm2269, %v2310, %v2311
        %v2313 = vrot.slane %v331, 3
        %v2314 = vsel %vm2269, %v2311, %v2313
        %v2315 = vrot.slane %v332, 3
        %v2316 = vrot.slane %v333, 3
        %v2317 = vsel %vm2269, %v2315, %v2316
        %v2318 = vrot.slane %v334, 3
        %v2319 = vsel %vm2269, %v2316, %v2318
        %v2320 = vrot.slane %v335, 3
        %v2321 = vrot.slane %v336, 3
        %v2322 = vsel %vm2269, %v2320, %v2321
        %v2323 = vrot.slane %v337, 3
        %v2324 = vsel %vm2269, %v2321, %v2323
        %v2325 = vrot.slane %v338, 3
        %v2326 = vrot.slane %v339, 3
        %v2327 = vsel %vm2269, %v2325, %v2326
        %v2328 = vrot.slane %v340, 3
        %v2329 = vsel %vm2269, %v2326, %v2328
        %v2330 = vrot.slane %v341, 3
        %v2331 = vrot.slane %v342, 3
        %v2332 = vsel %vm2269, %v2330, %v2331
        %v2333 = vrot.slane %v343, 3
        %v2334 = vsel %vm2269, %v2331, %v2333
        %v2335 = vrot.slane %v344, 3
        %v2336 = vrot.slane %v345, 3
        %v2337 = vsel %vm2269, %v2335, %v2336
        %v2338 = vrot.slane %v346, 3
        %v2339 = vsel %vm2269, %v2336, %v2338
        %v2340 = vrot.slane %v347, 3
        %v2341 = vrot.slane %v348, 3
        %v2342 = vsel %vm2269, %v2340, %v2341
        %v2343 = vrot.slane %v349, 3
        %v2344 = vsel %vm2269, %v2341, %v2343
        %v2345 = vrot.slane %v350, 3
        %v2346 = vrot.slane %v351, 3
        %v2347 = vsel %vm2269, %v2345, %v2346
        %v2348 = vrot.slane %v352, 3
        %v2349 = vsel %vm2269, %v2346, %v2348
        %2350 = vrot.lane.b32.xlu0 %v2272, 48
        %v2351 = vpop.permute.xlu0 %2350
        %2352 = vrot.lane.b32.xlu0 %v2274, 48
        %v2353 = vpop.permute.xlu0 %2352
        %2354 = vrot.lane.b32.xlu0 %v2273, 48
        %v2355 = vpop.permute.xlu0 %2354
        %2356 = vrot.lane.b32.xlu0 %v2277, 48
        %v2357 = vpop.permute.xlu0 %2356
        %2358 = vrot.lane.b32.xlu0 %v2279, 48
        %v2359 = vpop.permute.xlu0 %2358
        %2360 = vrot.lane.b32.xlu0 %v2278, 48
        %v2361 = vpop.permute.xlu0 %2360
        %2362 = vrot.lane.b32.xlu0 %v2282, 48
        %v2363 = vpop.permute.xlu0 %2362
        %2364 = vrot.lane.b32.xlu0 %v2284, 48
        %v2365 = vpop.permute.xlu0 %2364
        %2366 = vrot.lane.b32.xlu0 %v2283, 48
        %v2367 = vpop.permute.xlu0 %2366
        %2368 = vrot.lane.b32.xlu0 %v2287, 48
        %v2369 = vpop.permute.xlu0 %2368
        %2370 = vrot.lane.b32.xlu0 %v2289, 48
        %v2371 = vpop.permute.xlu0 %2370
        %2372 = vrot.lane.b32.xlu0 %v2288, 48
        %v2373 = vpop.permute.xlu0 %2372
        %2374 = vrot.lane.b32.xlu0 %v2292, 48
        %v2375 = vpop.permute.xlu0 %2374
        %2376 = vrot.lane.b32.xlu0 %v2294, 48
        %v2377 = vpop.permute.xlu0 %2376
        %2378 = vrot.lane.b32.xlu0 %v2293, 48
        %v2379 = vpop.permute.xlu0 %2378
        %2380 = vrot.lane.b32.xlu0 %v2297, 48
        %v2381 = vpop.permute.xlu0 %2380
        %2382 = vrot.lane.b32.xlu0 %v2299, 48
        %v2383 = vpop.permute.xlu0 %2382
        %2384 = vrot.lane.b32.xlu0 %v2298, 48
        %v2385 = vpop.permute.xlu0 %2384
        %2386 = vrot.lane.b32.xlu0 %v2302, 48
        %v2387 = vpop.permute.xlu0 %2386
        %2388 = vrot.lane.b32.xlu0 %v2304, 48
        %v2389 = vpop.permute.xlu0 %2388
        %2390 = vrot.lane.b32.xlu0 %v2303, 48
        %v2391 = vpop.permute.xlu0 %2390
        %2392 = vrot.lane.b32.xlu0 %v2307, 48
        %v2393 = vpop.permute.xlu0 %2392
        %2394 = vrot.lane.b32.xlu0 %v2309, 48
        %v2395 = vpop.permute.xlu0 %2394
        %2396 = vrot.lane.b32.xlu0 %v2308, 48
        %v2397 = vpop.permute.xlu0 %2396
        %2398 = vrot.lane.b32.xlu0 %v2312, 48
        %v2399 = vpop.permute.xlu0 %2398
        %2400 = vrot.lane.b32.xlu0 %v2314, 48
        %v2401 = vpop.permute.xlu0 %2400
        %2402 = vrot.lane.b32.xlu0 %v2313, 48
        %v2403 = vpop.permute.xlu0 %2402
        %2404 = vrot.lane.b32.xlu0 %v2317, 48
        %v2405 = vpop.permute.xlu0 %2404
        %2406 = vrot.lane.b32.xlu0 %v2319, 48
        %v2407 = vpop.permute.xlu0 %2406
        %2408 = vrot.lane.b32.xlu0 %v2318, 48
        %v2409 = vpop.permute.xlu0 %2408
        %2410 = vrot.lane.b32.xlu0 %v2322, 48
        %v2411 = vpop.permute.xlu0 %2410
        %2412 = vrot.lane.b32.xlu0 %v2324, 48
        %v2413 = vpop.permute.xlu0 %2412
        %2414 = vrot.lane.b32.xlu0 %v2323, 48
        %v2415 = vpop.permute.xlu0 %2414
        %2416 = vrot.lane.b32.xlu0 %v2327, 48
        %v2417 = vpop.permute.xlu0 %2416
        %2418 = vrot.lane.b32.xlu0 %v2329, 48
        %v2419 = vpop.permute.xlu0 %2418
        %2420 = vrot.lane.b32.xlu0 %v2328, 48
        %v2421 = vpop.permute.xlu0 %2420
        %2422 = vrot.lane.b32.xlu0 %v2332, 48
        %v2423 = vpop.permute.xlu0 %2422
        %2424 = vrot.lane.b32.xlu0 %v2334, 48
        %v2425 = vpop.permute.xlu0 %2424
        %2426 = vrot.lane.b32.xlu0 %v2333, 48
        %v2427 = vpop.permute.xlu0 %2426
        %2428 = vrot.lane.b32.xlu0 %v2337, 48
        %v2429 = vpop.permute.xlu0 %2428
        %2430 = vrot.lane.b32.xlu0 %v2339, 48
        %v2431 = vpop.permute.xlu0 %2430
        %2432 = vrot.lane.b32.xlu0 %v2338, 48
        %v2433 = vpop.permute.xlu0 %2432
        %2434 = vrot.lane.b32.xlu0 %v2342, 48
        %v2435 = vpop.permute.xlu0 %2434
        %2436 = vrot.lane.b32.xlu0 %v2344, 48
        %v2437 = vpop.permute.xlu0 %2436
        %2438 = vrot.lane.b32.xlu0 %v2343, 48
        %v2439 = vpop.permute.xlu0 %2438
        %2440 = vrot.lane.b32.xlu0 %v2347, 48
        %v2441 = vpop.permute.xlu0 %2440
        %2442 = vrot.lane.b32.xlu0 %v2349, 48
        %v2443 = vpop.permute.xlu0 %2442
        %2444 = vrot.lane.b32.xlu0 %v2348, 48
        %v2445 = vpop.permute.xlu0 %2444
        %v2494 = vrot.slane %v353, 5
        %v2495 = vrot.slane %v354, 5
        %v2496 = vsel %vm1931, %v2494, %v2495
        %v2497 = vrot.slane %v356, 5
        %v2498 = vrot.slane %v357, 5
        %v2499 = vsel %vm1931, %v2497, %v2498
        %v2500 = vrot.slane %v359, 5
        %v2501 = vrot.slane %v360, 5
        %v2502 = vsel %vm1931, %v2500, %v2501
        %2503 = vrot.lane.b32.xlu0 %v1941, 52
        %v2504 = vpop.permute.xlu0 %2503
        %2505 = vrot.lane.b32.xlu0 %v1943, 52
        %v2506 = vpop.permute.xlu0 %2505
        %2507 = vrot.lane.b32.xlu0 %v1942, 52
        %v2508 = vpop.permute.xlu0 %2507
        %2509 = vrot.lane.b32.xlu0 %v1944, 52
        %v2510 = vpop.permute.xlu0 %2509
        %2511 = vrot.lane.b32.xlu0 %v1946, 52
        %v2512 = vpop.permute.xlu0 %2511
        %2513 = vrot.lane.b32.xlu0 %v1945, 52
        %v2514 = vpop.permute.xlu0 %2513
        %2515 = vrot.lane.b32.xlu0 %v1947, 52
        %v2516 = vpop.permute.xlu0 %2515
        %2517 = vrot.lane.b32.xlu0 %v1949, 52
        %v2518 = vpop.permute.xlu0 %2517
        %2519 = vrot.lane.b32.xlu0 %v1948, 52
        %v2520 = vpop.permute.xlu0 %2519
        %2521 = vrot.lane.b32.xlu0 %v1950, 52
        %v2522 = vpop.permute.xlu0 %2521
        %2523 = vrot.lane.b32.xlu0 %v1952, 52
        %v2524 = vpop.permute.xlu0 %2523
        %2525 = vrot.lane.b32.xlu0 %v1951, 52
        %v2526 = vpop.permute.xlu0 %2525
        %2527 = vrot.lane.b32.xlu0 %v1953, 52
        %v2528 = vpop.permute.xlu0 %2527
        %2529 = vrot.lane.b32.xlu0 %v1955, 52
        %v2530 = vpop.permute.xlu0 %2529
        %2531 = vrot.lane.b32.xlu0 %v1954, 52
        %v2532 = vpop.permute.xlu0 %2531
        %2533 = vrot.lane.b32.xlu0 %v1956, 52
        %v2534 = vpop.permute.xlu0 %2533
        %2535 = vrot.lane.b32.xlu0 %v1958, 52
        %v2536 = vpop.permute.xlu0 %2535
        %2537 = vrot.lane.b32.xlu0 %v1957, 52
        %v2538 = vpop.permute.xlu0 %2537
        %2539 = vrot.lane.b32.xlu0 %v1959, 52
        %v2540 = vpop.permute.xlu0 %2539
        %2541 = vrot.lane.b32.xlu0 %v1961, 52
        %v2542 = vpop.permute.xlu0 %2541
        %2543 = vrot.lane.b32.xlu0 %v1960, 52
        %v2544 = vpop.permute.xlu0 %2543
        %2545 = vrot.lane.b32.xlu0 %v1962, 52
        %v2546 = vpop.permute.xlu0 %2545
        %2547 = vrot.lane.b32.xlu0 %v1964, 52
        %v2548 = vpop.permute.xlu0 %2547
        %2549 = vrot.lane.b32.xlu0 %v1963, 52
        %v2550 = vpop.permute.xlu0 %2549
        %2551 = vrot.lane.b32.xlu0 %v1965, 52
        %v2552 = vpop.permute.xlu0 %2551
        %2553 = vrot.lane.b32.xlu0 %v1967, 52
        %v2554 = vpop.permute.xlu0 %2553
        %2555 = vrot.lane.b32.xlu0 %v1966, 52
        %v2556 = vpop.permute.xlu0 %2555
        %2557 = vrot.lane.b32.xlu0 %v1968, 52
        %v2558 = vpop.permute.xlu0 %2557
        %2559 = vrot.lane.b32.xlu0 %v1970, 52
        %v2560 = vpop.permute.xlu0 %2559
        %2561 = vrot.lane.b32.xlu0 %v1969, 52
        %v2562 = vpop.permute.xlu0 %2561
        %2563 = vrot.lane.b32.xlu0 %v1971, 52
        %v2564 = vpop.permute.xlu0 %2563
        %2565 = vrot.lane.b32.xlu0 %v1973, 52
        %v2566 = vpop.permute.xlu0 %2565
        %2567 = vrot.lane.b32.xlu0 %v1972, 52
        %v2568 = vpop.permute.xlu0 %2567
        %2569 = vrot.lane.b32.xlu0 %v1974, 52
        %v2570 = vpop.permute.xlu0 %2569
        %2571 = vrot.lane.b32.xlu0 %v1976, 52
        %v2572 = vpop.permute.xlu0 %2571
        %2573 = vrot.lane.b32.xlu0 %v1975, 52
        %v2574 = vpop.permute.xlu0 %2573
        %2575 = vrot.lane.b32.xlu0 %v1977, 52
        %v2576 = vpop.permute.xlu0 %2575
        %2577 = vrot.lane.b32.xlu0 %v1979, 52
        %v2578 = vpop.permute.xlu0 %2577
        %2579 = vrot.lane.b32.xlu0 %v1978, 52
        %v2580 = vpop.permute.xlu0 %2579
        %2581 = vrot.lane.b32.xlu0 %v2494, 52
        %v2582 = vpop.permute.xlu0 %2581
        %2583 = vrot.lane.b32.xlu0 %v2496, 52
        %v2584 = vpop.permute.xlu0 %2583
        %2585 = vrot.lane.b32.xlu0 %v2495, 52
        %v2586 = vpop.permute.xlu0 %2585
        %2587 = vrot.lane.b32.xlu0 %v2497, 52
        %v2588 = vpop.permute.xlu0 %2587
        %2589 = vrot.lane.b32.xlu0 %v2499, 52
        %v2590 = vpop.permute.xlu0 %2589
        %2591 = vrot.lane.b32.xlu0 %v2498, 52
        %v2592 = vpop.permute.xlu0 %2591
        %2593 = vrot.lane.b32.xlu0 %v2500, 52
        %v2594 = vpop.permute.xlu0 %2593
        %2595 = vrot.lane.b32.xlu0 %v2502, 52
        %v2596 = vpop.permute.xlu0 %2595
        %2597 = vrot.lane.b32.xlu0 %v2501, 52
        %v2598 = vpop.permute.xlu0 %2597
        %2647 = vrot.lane.b32.xlu0 %v314, 56
        %v2648 = vpop.permute.xlu0 %2647
        %2649 = vrot.lane.b32.xlu0 %v315, 56
        %v2650 = vpop.permute.xlu0 %2649
        %2651 = vrot.lane.b32.xlu0 %v316, 56
        %v2652 = vpop.permute.xlu0 %2651
        %2653 = vrot.lane.b32.xlu0 %v317, 56
        %v2654 = vpop.permute.xlu0 %2653
        %2655 = vrot.lane.b32.xlu0 %v318, 56
        %v2656 = vpop.permute.xlu0 %2655
        %2657 = vrot.lane.b32.xlu0 %v319, 56
        %v2658 = vpop.permute.xlu0 %2657
        %2659 = vrot.lane.b32.xlu0 %v320, 56
        %v2660 = vpop.permute.xlu0 %2659
        %2661 = vrot.lane.b32.xlu0 %v321, 56
        %v2662 = vpop.permute.xlu0 %2661
        %2663 = vrot.lane.b32.xlu0 %v322, 56
        %v2664 = vpop.permute.xlu0 %2663
        %2665 = vrot.lane.b32.xlu0 %v323, 56
        %v2666 = vpop.permute.xlu0 %2665
        %2667 = vrot.lane.b32.xlu0 %v324, 56
        %v2668 = vpop.permute.xlu0 %2667
        %2669 = vrot.lane.b32.xlu0 %v325, 56
        %v2670 = vpop.permute.xlu0 %2669
        %2671 = vrot.lane.b32.xlu0 %v326, 56
        %v2672 = vpop.permute.xlu0 %2671
        %2673 = vrot.lane.b32.xlu0 %v327, 56
        %v2674 = vpop.permute.xlu0 %2673
        %2675 = vrot.lane.b32.xlu0 %v328, 56
        %v2676 = vpop.permute.xlu0 %2675
        %2677 = vrot.lane.b32.xlu0 %v329, 56
        %v2678 = vpop.permute.xlu0 %2677
        %2679 = vrot.lane.b32.xlu0 %v330, 56
        %v2680 = vpop.permute.xlu0 %2679
        %2681 = vrot.lane.b32.xlu0 %v331, 56
        %v2682 = vpop.permute.xlu0 %2681
        %2683 = vrot.lane.b32.xlu0 %v332, 56
        %v2684 = vpop.permute.xlu0 %2683
        %2685 = vrot.lane.b32.xlu0 %v333, 56
        %v2686 = vpop.permute.xlu0 %2685
        %2687 = vrot.lane.b32.xlu0 %v334, 56
        %v2688 = vpop.permute.xlu0 %2687
        %2689 = vrot.lane.b32.xlu0 %v335, 56
        %v2690 = vpop.permute.xlu0 %2689
        %2691 = vrot.lane.b32.xlu0 %v336, 56
        %v2692 = vpop.permute.xlu0 %2691
        %2693 = vrot.lane.b32.xlu0 %v337, 56
        %v2694 = vpop.permute.xlu0 %2693
        %2695 = vrot.lane.b32.xlu0 %v338, 56
        %v2696 = vpop.permute.xlu0 %2695
        %2697 = vrot.lane.b32.xlu0 %v339, 56
        %v2698 = vpop.permute.xlu0 %2697
        %2699 = vrot.lane.b32.xlu0 %v340, 56
        %v2700 = vpop.permute.xlu0 %2699
        %2701 = vrot.lane.b32.xlu0 %v341, 56
        %v2702 = vpop.permute.xlu0 %2701
        %2703 = vrot.lane.b32.xlu0 %v342, 56
        %v2704 = vpop.permute.xlu0 %2703
        %2705 = vrot.lane.b32.xlu0 %v343, 56
        %v2706 = vpop.permute.xlu0 %2705
        %2707 = vrot.lane.b32.xlu0 %v344, 56
        %v2708 = vpop.permute.xlu0 %2707
        %2709 = vrot.lane.b32.xlu0 %v345, 56
        %v2710 = vpop.permute.xlu0 %2709
        %2711 = vrot.lane.b32.xlu0 %v346, 56
        %v2712 = vpop.permute.xlu0 %2711
        %2713 = vrot.lane.b32.xlu0 %v347, 56
        %v2714 = vpop.permute.xlu0 %2713
        %2715 = vrot.lane.b32.xlu0 %v348, 56
        %v2716 = vpop.permute.xlu0 %2715
        %2717 = vrot.lane.b32.xlu0 %v349, 56
        %v2718 = vpop.permute.xlu0 %2717
        %2719 = vrot.lane.b32.xlu0 %v350, 56
        %v2720 = vpop.permute.xlu0 %2719
        %2721 = vrot.lane.b32.xlu0 %v351, 56
        %v2722 = vpop.permute.xlu0 %2721
        %2723 = vrot.lane.b32.xlu0 %v352, 56
        %v2724 = vpop.permute.xlu0 %2723
        %2725 = vrot.lane.b32.xlu0 %v353, 56
        %v2726 = vpop.permute.xlu0 %2725
        %2727 = vrot.lane.b32.xlu0 %v354, 56
        %v2728 = vpop.permute.xlu0 %2727
        %2729 = vrot.lane.b32.xlu0 %v355, 56
        %v2730 = vpop.permute.xlu0 %2729
        %2731 = vrot.lane.b32.xlu0 %v356, 56
        %v2732 = vpop.permute.xlu0 %2731
        %2733 = vrot.lane.b32.xlu0 %v357, 56
        %v2734 = vpop.permute.xlu0 %2733
        %2735 = vrot.lane.b32.xlu0 %v358, 56
        %v2736 = vpop.permute.xlu0 %2735
        %2737 = vrot.lane.b32.xlu0 %v359, 56
        %v2738 = vpop.permute.xlu0 %2737
        %2739 = vrot.lane.b32.xlu0 %v360, 56
        %v2740 = vpop.permute.xlu0 %2739
        %2741 = vrot.lane.b32.xlu0 %v361, 56
        %v2742 = vpop.permute.xlu0 %2741
        %v2791 = vrot.slane %v353, 3
        %v2792 = vrot.slane %v354, 3
        %v2793 = vsel %vm2269, %v2791, %v2792
        %v2794 = vrot.slane %v355, 3
        %v2795 = vsel %vm2269, %v2792, %v2794
        %v2796 = vrot.slane %v356, 3
        %v2797 = vrot.slane %v357, 3
        %v2798 = vsel %vm2269, %v2796, %v2797
        %v2799 = vrot.slane %v358, 3
        %v2800 = vsel %vm2269, %v2797, %v2799
        %v2801 = vrot.slane %v359, 3
        %v2802 = vrot.slane %v360, 3
        %v2803 = vsel %vm2269, %v2801, %v2802
        %v2804 = vrot.slane %v361, 3
        %v2805 = vsel %vm2269, %v2802, %v2804
        %2806 = vrot.lane.b32.xlu0 %v2287, 60
        %v2807 = vpop.permute.xlu0 %2806
        %2808 = vrot.lane.b32.xlu0 %v2289, 60
        %v2809 = vpop.permute.xlu0 %2808
        %2810 = vrot.lane.b32.xlu0 %v2288, 60
        %v2811 = vpop.permute.xlu0 %2810
        %2812 = vrot.lane.b32.xlu0 %v2292, 60
        %v2813 = vpop.permute.xlu0 %2812
        %2814 = vrot.lane.b32.xlu0 %v2294, 60
        %v2815 = vpop.permute.xlu0 %2814
        %2816 = vrot.lane.b32.xlu0 %v2293, 60
        %v2817 = vpop.permute.xlu0 %2816
        %2818 = vrot.lane.b32.xlu0 %v2297, 60
        %v2819 = vpop.permute.xlu0 %2818
        %2820 = vrot.lane.b32.xlu0 %v2299, 60
        %v2821 = vpop.permute.xlu0 %2820
        %2822 = vrot.lane.b32.xlu0 %v2298, 60
        %v2823 = vpop.permute.xlu0 %2822
        %2824 = vrot.lane.b32.xlu0 %v2302, 60
        %v2825 = vpop.permute.xlu0 %2824
        %2826 = vrot.lane.b32.xlu0 %v2304, 60
        %v2827 = vpop.permute.xlu0 %2826
        %2828 = vrot.lane.b32.xlu0 %v2303, 60
        %v2829 = vpop.permute.xlu0 %2828
        %2830 = vrot.lane.b32.xlu0 %v2307, 60
        %v2831 = vpop.permute.xlu0 %2830
        %2832 = vrot.lane.b32.xlu0 %v2309, 60
        %v2833 = vpop.permute.xlu0 %2832
        %2834 = vrot.lane.b32.xlu0 %v2308, 60
        %v2835 = vpop.permute.xlu0 %2834
        %2836 = vrot.lane.b32.xlu0 %v2312, 60
        %v2837 = vpop.permute.xlu0 %2836
        %2838 = vrot.lane.b32.xlu0 %v2314, 60
        %v2839 = vpop.permute.xlu0 %2838
        %2840 = vrot.lane.b32.xlu0 %v2313, 60
        %v2841 = vpop.permute.xlu0 %2840
        %2842 = vrot.lane.b32.xlu0 %v2317, 60
        %v2843 = vpop.permute.xlu0 %2842
        %2844 = vrot.lane.b32.xlu0 %v2319, 60
        %v2845 = vpop.permute.xlu0 %2844
        %2846 = vrot.lane.b32.xlu0 %v2318, 60
        %v2847 = vpop.permute.xlu0 %2846
        %2848 = vrot.lane.b32.xlu0 %v2322, 60
        %v2849 = vpop.permute.xlu0 %2848
        %2850 = vrot.lane.b32.xlu0 %v2324, 60
        %v2851 = vpop.permute.xlu0 %2850
        %2852 = vrot.lane.b32.xlu0 %v2323, 60
        %v2853 = vpop.permute.xlu0 %2852
        %2854 = vrot.lane.b32.xlu0 %v2327, 60
        %v2855 = vpop.permute.xlu0 %2854
        %2856 = vrot.lane.b32.xlu0 %v2329, 60
        %v2857 = vpop.permute.xlu0 %2856
        %2858 = vrot.lane.b32.xlu0 %v2328, 60
        %v2859 = vpop.permute.xlu0 %2858
        %2860 = vrot.lane.b32.xlu0 %v2332, 60
        %v2861 = vpop.permute.xlu0 %2860
        %2862 = vrot.lane.b32.xlu0 %v2334, 60
        %v2863 = vpop.permute.xlu0 %2862
        %2864 = vrot.lane.b32.xlu0 %v2333, 60
        %v2865 = vpop.permute.xlu0 %2864
        %2866 = vrot.lane.b32.xlu0 %v2337, 60
        %v2867 = vpop.permute.xlu0 %2866
        %2868 = vrot.lane.b32.xlu0 %v2339, 60
        %v2869 = vpop.permute.xlu0 %2868
        %2870 = vrot.lane.b32.xlu0 %v2338, 60
        %v2871 = vpop.permute.xlu0 %2870
        %2872 = vrot.lane.b32.xlu0 %v2342, 60
        %v2873 = vpop.permute.xlu0 %2872
        %2874 = vrot.lane.b32.xlu0 %v2344, 60
        %v2875 = vpop.permute.xlu0 %2874
        %2876 = vrot.lane.b32.xlu0 %v2343, 60
        %v2877 = vpop.permute.xlu0 %2876
        %2878 = vrot.lane.b32.xlu0 %v2347, 60
        %v2879 = vpop.permute.xlu0 %2878
        %2880 = vrot.lane.b32.xlu0 %v2349, 60
        %v2881 = vpop.permute.xlu0 %2880
        %2882 = vrot.lane.b32.xlu0 %v2348, 60
        %v2883 = vpop.permute.xlu0 %2882
        %2884 = vrot.lane.b32.xlu0 %v2793, 60
        %v2885 = vpop.permute.xlu0 %2884
        %2886 = vrot.lane.b32.xlu0 %v2795, 60
        %v2887 = vpop.permute.xlu0 %2886
        %2888 = vrot.lane.b32.xlu0 %v2794, 60
        %v2889 = vpop.permute.xlu0 %2888
        %2890 = vrot.lane.b32.xlu0 %v2798, 60
        %v2891 = vpop.permute.xlu0 %2890
        %2892 = vrot.lane.b32.xlu0 %v2800, 60
        %v2893 = vpop.permute.xlu0 %2892
        %2894 = vrot.lane.b32.xlu0 %v2799, 60
        %v2895 = vpop.permute.xlu0 %2894
        %2896 = vrot.lane.b32.xlu0 %v2803, 60
        %v2897 = vpop.permute.xlu0 %2896
        %2898 = vrot.lane.b32.xlu0 %v2805, 60
        %v2899 = vpop.permute.xlu0 %2898
        %2900 = vrot.lane.b32.xlu0 %v2804, 60
        %v2901 = vpop.permute.xlu0 %2900
        %vm2950 = vcmask 31744
        %v2951 = vsel %vm2950, %v314, %v501
        %v2952 = vsel %vm2950, %v315, %v503
        %v2953 = vsel %vm2950, %v316, %v505
        %v2954 = vsel %vm2950, %v317, %v507
        %v2955 = vsel %vm2950, %v318, %v509
        %v2956 = vsel %vm2950, %v319, %v511
        %v2957 = vsel %vm2950, %v320, %v513
        %v2958 = vsel %vm2950, %v321, %v515
        %v2959 = vsel %vm2950, %v322, %v517
        %v2960 = vsel %vm2950, %v323, %v519
        %v2961 = vsel %vm2950, %v324, %v521
        %v2962 = vsel %vm2950, %v325, %v523
        %v2963 = vsel %vm2950, %v326, %v525
        %v2964 = vsel %vm2950, %v327, %v527
        %v2965 = vsel %vm2950, %v328, %v529
        %v2966 = vsel %vm2950, %v329, %v531
        %v2967 = vsel %vm2950, %v330, %v533
        %v2968 = vsel %vm2950, %v331, %v535
        %v2969 = vsel %vm2950, %v332, %v537
        %v2970 = vsel %vm2950, %v333, %v539
        %v2971 = vsel %vm2950, %v334, %v541
        %v2972 = vsel %vm2950, %v335, %v543
        %v2973 = vsel %vm2950, %v336, %v545
        %v2974 = vsel %vm2950, %v337, %v547
        %v2975 = vsel %vm2950, %v338, %v549
        %v2976 = vsel %vm2950, %v339, %v551
        %v2977 = vsel %vm2950, %v340, %v553
        %v2978 = vsel %vm2950, %v341, %v555
        %v2979 = vsel %vm2950, %v342, %v557
        %v2980 = vsel %vm2950, %v343, %v559
        %v2981 = vsel %vm2950, %v344, %v561
        %v2982 = vsel %vm2950, %v345, %v563
        %v2983 = vsel %vm2950, %v346, %v565
        %v2984 = vsel %vm2950, %v347, %v567
        %v2985 = vsel %vm2950, %v348, %v569
        %v2986 = vsel %vm2950, %v349, %v571
        %v2987 = vsel %vm2950, %v350, %v573
        %v2988 = vsel %vm2950, %v351, %v575
        %v2989 = vsel %vm2950, %v352, %v577
        %v2990 = vsel %vm2950, %v353, %v579
        %v2991 = vsel %vm2950, %v354, %v581
        %v2992 = vsel %vm2950, %v355, %v583
        %v2993 = vsel %vm2950, %v356, %v585
        %v2994 = vsel %vm2950, %v357, %v587
        %v2995 = vsel %vm2950, %v358, %v589
        %v2996 = vsel %vm2950, %v359, %v591
        %v2997 = vsel %vm2950, %v360, %v593
        %v2998 = vsel %vm2950, %v361, %v595
        %vm2999 = vcmask 64512
        %v3000 = vsel %vm2999, %v2951, %v645
        %v3001 = vsel %vm2999, %v2952, %v647
        %v3002 = vsel %vm2999, %v2953, %v649
        %v3003 = vsel %vm2999, %v2954, %v651
        %v3004 = vsel %vm2999, %v2955, %v653
        %v3005 = vsel %vm2999, %v2956, %v655
        %v3006 = vsel %vm2999, %v2957, %v657
        %v3007 = vsel %vm2999, %v2958, %v659
        %v3008 = vsel %vm2999, %v2959, %v661
        %v3009 = vsel %vm2999, %v2960, %v663
        %v3010 = vsel %vm2999, %v2961, %v665
        %v3011 = vsel %vm2999, %v2962, %v667
        %v3012 = vsel %vm2999, %v2963, %v669
        %v3013 = vsel %vm2999, %v2964, %v671
        %v3014 = vsel %vm2999, %v2965, %v673
        %v3015 = vsel %vm2999, %v2966, %v675
        %v3016 = vsel %vm2999, %v2967, %v677
        %v3017 = vsel %vm2999, %v2968, %v679
        %v3018 = vsel %vm2999, %v2969, %v681
        %v3019 = vsel %vm2999, %v2970, %v683
        %v3020 = vsel %vm2999, %v2971, %v685
        %v3021 = vsel %vm2999, %v2972, %v687
        %v3022 = vsel %vm2999, %v2973, %v689
        %v3023 = vsel %vm2999, %v2974, %v691
        %v3024 = vsel %vm2999, %v2975, %v693
        %v3025 = vsel %vm2999, %v2976, %v695
        %v3026 = vsel %vm2999, %v2977, %v697
        %v3027 = vsel %vm2999, %v2978, %v699
        %v3028 = vsel %vm2999, %v2979, %v701
        %v3029 = vsel %vm2999, %v2980, %v703
        %v3030 = vsel %vm2999, %v2981, %v705
        %v3031 = vsel %vm2999, %v2982, %v707
        %v3032 = vsel %vm2999, %v2983, %v709
        %v3033 = vsel %vm2999, %v2984, %v711
        %v3034 = vsel %vm2999, %v2985, %v713
        %v3035 = vsel %vm2999, %v2986, %v715
        %v3036 = vsel %vm2999, %v2987, %v717
        %v3037 = vsel %vm2999, %v2988, %v719
        %v3038 = vsel %vm2999, %v2989, %v721
        %v3039 = vsel %vm2999, %v2990, %v723
        %v3040 = vsel %vm2999, %v2991, %v725
        %v3041 = vsel %vm2999, %v2992, %v727
        %v3042 = vsel %vm2999, %v2993, %v729
        %v3043 = vsel %vm2999, %v2994, %v731
        %v3044 = vsel %vm2999, %v2995, %v733
        %v3045 = vsel %vm2999, %v2996, %v735
        %v3046 = vsel %vm2999, %v2997, %v737
        %v3047 = vsel %vm2999, %v2998, %v739
        %vm3048 = vcmask 97280
        %v3049 = vsel %vm3048, %v3000, %v870
        %v3050 = vsel %vm3048, %v3001, %v872
        %v3051 = vsel %vm3048, %v3002, %v874
        %v3052 = vsel %vm3048, %v3003, %v876
        %v3053 = vsel %vm3048, %v3004, %v878
        %v3054 = vsel %vm3048, %v3005, %v880
        %v3055 = vsel %vm3048, %v3006, %v882
        %v3056 = vsel %vm3048, %v3007, %v884
        %v3057 = vsel %vm3048, %v3008, %v886
        %v3058 = vsel %vm3048, %v3009, %v888
        %v3059 = vsel %vm3048, %v3010, %v890
        %v3060 = vsel %vm3048, %v3011, %v892
        %v3061 = vsel %vm3048, %v3012, %v894
        %v3062 = vsel %vm3048, %v3013, %v896
        %v3063 = vsel %vm3048, %v3014, %v898
        %v3064 = vsel %vm3048, %v3015, %v900
        %v3065 = vsel %vm3048, %v3016, %v902
        %v3066 = vsel %vm3048, %v3017, %v904
        %v3067 = vsel %vm3048, %v3018, %v906
        %v3068 = vsel %vm3048, %v3019, %v908
        %v3069 = vsel %vm3048, %v3020, %v910
        %v3070 = vsel %vm3048, %v3021, %v912
        %v3071 = vsel %vm3048, %v3022, %v914
        %v3072 = vsel %vm3048, %v3023, %v916
        %v3073 = vsel %vm3048, %v3024, %v918
        %v3074 = vsel %vm3048, %v3025, %v920
        %v3075 = vsel %vm3048, %v3026, %v922
        %v3076 = vsel %vm3048, %v3027, %v924
        %v3077 = vsel %vm3048, %v3028, %v926
        %v3078 = vsel %vm3048, %v3029, %v928
        %v3079 = vsel %vm3048, %v3030, %v930
        %v3080 = vsel %vm3048, %v3031, %v932
        %v3081 = vsel %vm3048, %v3032, %v934
        %v3082 = vsel %vm3048, %v3033, %v936
        %v3083 = vsel %vm3048, %v3034, %v938
        %v3084 = vsel %vm3048, %v3035, %v940
        %v3085 = vsel %vm3048, %v3036, %v942
        %v3086 = vsel %vm3048, %v3037, %v944
        %v3087 = vsel %vm3048, %v3038, %v946
        %v3088 = vsel %vm3048, %v3039, %v948
        %v3089 = vsel %vm3048, %v3040, %v950
        %v3090 = vsel %vm3048, %v3041, %v952
        %v3091 = vsel %vm3048, %v3042, %v954
        %v3092 = vsel %vm3048, %v3043, %v956
        %v3093 = vsel %vm3048, %v3044, %v958
        %v3094 = vsel %vm3048, %v3045, %v960
        %v3095 = vsel %vm3048, %v3046, %v962
        %v3096 = vsel %vm3048, %v3047, %v964
        %vm3097 = vcmask 130048
        %v3098 = vsel %vm3097, %v3049, %v1030
        %v3099 = vsel %vm3097, %v3050, %v1032
        %v3100 = vsel %vm3097, %v3051, %v1034
        %v3101 = vsel %vm3097, %v3052, %v1036
        %v3102 = vsel %vm3097, %v3053, %v1038
        %v3103 = vsel %vm3097, %v3054, %v1040
        %v3104 = vsel %vm3097, %v3055, %v1042
        %v3105 = vsel %vm3097, %v3056, %v1044
        %v3106 = vsel %vm3097, %v3057, %v1046
        %v3107 = vsel %vm3097, %v3058, %v1048
        %v3108 = vsel %vm3097, %v3059, %v1050
        %v3109 = vsel %vm3097, %v3060, %v1052
        %v3110 = vsel %vm3097, %v3061, %v1054
        %v3111 = vsel %vm3097, %v3062, %v1056
        %v3112 = vsel %vm3097, %v3063, %v1058
        %v3113 = vsel %vm3097, %v3064, %v1060
        %v3114 = vsel %vm3097, %v3065, %v1062
        %v3115 = vsel %vm3097, %v3066, %v1064
        %v3116 = vsel %vm3097, %v3067, %v1066
        %v3117 = vsel %vm3097, %v3068, %v1068
        %v3118 = vsel %vm3097, %v3069, %v1070
        %v3119 = vsel %vm3097, %v3070, %v1072
        %v3120 = vsel %vm3097, %v3071, %v1074
        %v3121 = vsel %vm3097, %v3072, %v1076
        %v3122 = vsel %vm3097, %v3073, %v1078
        %v3123 = vsel %vm3097, %v3074, %v1080
        %v3124 = vsel %vm3097, %v3075, %v1082
        %v3125 = vsel %vm3097, %v3076, %v1084
        %v3126 = vsel %vm3097, %v3077, %v1086
        %v3127 = vsel %vm3097, %v3078, %v1088
        %v3128 = vsel %vm3097, %v3079, %v1090
        %v3129 = vsel %vm3097, %v3080, %v1092
        %v3130 = vsel %vm3097, %v3081, %v1094
        %v3131 = vsel %vm3097, %v3082, %v1096
        %v3132 = vsel %vm3097, %v3083, %v1098
        %v3133 = vsel %vm3097, %v3084, %v1100
        %v3134 = vsel %vm3097, %v3085, %v1102
        %v3135 = vsel %vm3097, %v3086, %v1104
        %v3136 = vsel %vm3097, %v3087, %v1106
        %v3137 = vsel %vm3097, %v3088, %v1108
        %v3138 = vsel %vm3097, %v3089, %v1110
        %v3139 = vsel %vm3097, %v3090, %v1112
        %v3140 = vsel %vm3097, %v3091, %v1114
        %v3141 = vsel %vm3097, %v3092, %v1116
        %v3142 = vsel %vm3097, %v3093, %v1118
        %v3143 = vsel %vm3097, %v3094, %v1120
        %v3144 = vsel %vm3097, %v3095, %v1122
        %v3145 = vsel %vm3097, %v3096, %v1124
        %vm3146 = vcmask 162816
        %v3147 = vsel %vm3146, %v3098, %v1174
        %v3148 = vsel %vm3146, %v3099, %v1176
        %v3149 = vsel %vm3146, %v3100, %v1178
        %v3150 = vsel %vm3146, %v3101, %v1180
        %v3151 = vsel %vm3146, %v3102, %v1182
        %v3152 = vsel %vm3146, %v3103, %v1184
        %v3153 = vsel %vm3146, %v3104, %v1186
        %v3154 = vsel %vm3146, %v3105, %v1188
        %v3155 = vsel %vm3146, %v3106, %v1190
        %v3156 = vsel %vm3146, %v3107, %v1192
        %v3157 = vsel %vm3146, %v3108, %v1194
        %v3158 = vsel %vm3146, %v3109, %v1196
        %v3159 = vsel %vm3146, %v3110, %v1198
        %v3160 = vsel %vm3146, %v3111, %v1200
        %v3161 = vsel %vm3146, %v3112, %v1202
        %v3162 = vsel %vm3146, %v3113, %v1204
        %v3163 = vsel %vm3146, %v3114, %v1206
        %v3164 = vsel %vm3146, %v3115, %v1208
        %v3165 = vsel %vm3146, %v3116, %v1210
        %v3166 = vsel %vm3146, %v3117, %v1212
        %v3167 = vsel %vm3146, %v3118, %v1214
        %v3168 = vsel %vm3146, %v3119, %v1216
        %v3169 = vsel %vm3146, %v3120, %v1218
        %v3170 = vsel %vm3146, %v3121, %v1220
        %v3171 = vsel %vm3146, %v3122, %v1222
        %v3172 = vsel %vm3146, %v3123, %v1224
        %v3173 = vsel %vm3146, %v3124, %v1226
        %v3174 = vsel %vm3146, %v3125, %v1228
        %v3175 = vsel %vm3146, %v3126, %v1230
        %v3176 = vsel %vm3146, %v3127, %v1232
        %v3177 = vsel %vm3146, %v3128, %v1234
        %v3178 = vsel %vm3146, %v3129, %v1236
        %v3179 = vsel %vm3146, %v3130, %v1238
        %v3180 = vsel %vm3146, %v3131, %v1240
        %v3181 = vsel %vm3146, %v3132, %v1242
        %v3182 = vsel %vm3146, %v3133, %v1244
        %v3183 = vsel %vm3146, %v3134, %v1246
        %v3184 = vsel %vm3146, %v3135, %v1248
        %v3185 = vsel %vm3146, %v3136, %v1250
        %v3186 = vsel %vm3146, %v3137, %v1252
        %v3187 = vsel %vm3146, %v3138, %v1254
        %v3188 = vsel %vm3146, %v3139, %v1256
        %v3189 = vsel %vm3146, %v3140, %v1258
        %v3190 = vsel %vm3146, %v3141, %v1260
        %v3191 = vsel %vm3146, %v3142, %v1262
        %v3192 = vsel %vm3146, %v3143, %v1264
        %v3193 = vsel %vm3146, %v3144, %v1266
        %v3194 = vsel %vm3146, %v3145, %v1268
        %vm3195 = vcmask 195584
        %v3196 = vsel %vm3195, %v3147, %v1328
        %v3197 = vsel %vm3195, %v3148, %v1330
        %v3198 = vsel %vm3195, %v3149, %v1332
        %v3199 = vsel %vm3195, %v3150, %v1334
        %v3200 = vsel %vm3195, %v3151, %v1336
        %v3201 = vsel %vm3195, %v3152, %v1338
        %v3202 = vsel %vm3195, %v3153, %v1340
        %v3203 = vsel %vm3195, %v3154, %v1342
        %v3204 = vsel %vm3195, %v3155, %v1344
        %v3205 = vsel %vm3195, %v3156, %v1346
        %v3206 = vsel %vm3195, %v3157, %v1348
        %v3207 = vsel %vm3195, %v3158, %v1350
        %v3208 = vsel %vm3195, %v3159, %v1352
        %v3209 = vsel %vm3195, %v3160, %v1354
        %v3210 = vsel %vm3195, %v3161, %v1356
        %v3211 = vsel %vm3195, %v3162, %v1358
        %v3212 = vsel %vm3195, %v3163, %v1360
        %v3213 = vsel %vm3195, %v3164, %v1362
        %v3214 = vsel %vm3195, %v3165, %v1364
        %v3215 = vsel %vm3195, %v3166, %v1366
        %v3216 = vsel %vm3195, %v3167, %v1368
        %v3217 = vsel %vm3195, %v3168, %v1370
        %v3218 = vsel %vm3195, %v3169, %v1372
        %v3219 = vsel %vm3195, %v3170, %v1374
        %v3220 = vsel %vm3195, %v3171, %v1376
        %v3221 = vsel %vm3195, %v3172, %v1378
        %v3222 = vsel %vm3195, %v3173, %v1380
        %v3223 = vsel %vm3195, %v3174, %v1382
        %v3224 = vsel %vm3195, %v3175, %v1384
        %v3225 = vsel %vm3195, %v3176, %v1386
        %v3226 = vsel %vm3195, %v3177, %v1388
        %v3227 = vsel %vm3195, %v3178, %v1390
        %v3228 = vsel %vm3195, %v3179, %v1392
        %v3229 = vsel %vm3195, %v3180, %v1394
        %v3230 = vsel %vm3195, %v3181, %v1396
        %v3231 = vsel %vm3195, %v3182, %v1398
        %v3232 = vsel %vm3195, %v3183, %v1400
        %v3233 = vsel %vm3195, %v3184, %v1402
        %v3234 = vsel %vm3195, %v3185, %v1404
        %v3235 = vsel %vm3195, %v3186, %v1406
        %v3236 = vsel %vm3195, %v3187, %v1408
        %v3237 = vsel %vm3195, %v3188, %v1410
        %v3238 = vsel %vm3195, %v3189, %v1412
        %v3239 = vsel %vm3195, %v3190, %v1414
        %v3240 = vsel %vm3195, %v3191, %v1416
        %v3241 = vsel %vm3195, %v3192, %v1418
        %v3242 = vsel %vm3195, %v3193, %v1420
        %v3243 = vsel %vm3195, %v3194, %v1422
        %vm3244 = vcmask 228352
        %v3245 = vsel %vm3244, %v3196, %v1488
        %v3246 = vsel %vm3244, %v3197, %v1490
        %v3247 = vsel %vm3244, %v3198, %v1492
        %v3248 = vsel %vm3244, %v3199, %v1494
        %v3249 = vsel %vm3244, %v3200, %v1496
        %v3250 = vsel %vm3244, %v3201, %v1498
        %v3251 = vsel %vm3244, %v3202, %v1500
        %v3252 = vsel %vm3244, %v3203, %v1502
        %v3253 = vsel %vm3244, %v3204, %v1504
        %v3254 = vsel %vm3244, %v3205, %v1506
        %v3255 = vsel %vm3244, %v3206, %v1508
        %v3256 = vsel %vm3244, %v3207, %v1510
        %v3257 = vsel %vm3244, %v3208, %v1512
        %v3258 = vsel %vm3244, %v3209, %v1514
        %v3259 = vsel %vm3244, %v3210, %v1516
        %v3260 = vsel %vm3244, %v3211, %v1518
        %v3261 = vsel %vm3244, %v3212, %v1520
        %v3262 = vsel %vm3244, %v3213, %v1522
        %v3263 = vsel %vm3244, %v3214, %v1524
        %v3264 = vsel %vm3244, %v3215, %v1526
        %v3265 = vsel %vm3244, %v3216, %v1528
        %v3266 = vsel %vm3244, %v3217, %v1530
        %v3267 = vsel %vm3244, %v3218, %v1532
        %v3268 = vsel %vm3244, %v3219, %v1534
        %v3269 = vsel %vm3244, %v3220, %v1536
        %v3270 = vsel %vm3244, %v3221, %v1538
        %v3271 = vsel %vm3244, %v3222, %v1540
        %v3272 = vsel %vm3244, %v3223, %v1542
        %v3273 = vsel %vm3244, %v3224, %v1544
        %v3274 = vsel %vm3244, %v3225, %v1546
        %v3275 = vsel %vm3244, %v3226, %v1548
        %v3276 = vsel %vm3244, %v3227, %v1550
        %v3277 = vsel %vm3244, %v3228, %v1552
        %v3278 = vsel %vm3244, %v3229, %v1554
        %v3279 = vsel %vm3244, %v3230, %v1556
        %v3280 = vsel %vm3244, %v3231, %v1558
        %v3281 = vsel %vm3244, %v3232, %v1560
        %v3282 = vsel %vm3244, %v3233, %v1562
        %v3283 = vsel %vm3244, %v3234, %v1564
        %v3284 = vsel %vm3244, %v3235, %v1566
        %v3285 = vsel %vm3244, %v3236, %v1568
        %v3286 = vsel %vm3244, %v3237, %v1570
        %v3287 = vsel %vm3244, %v3238, %v1572
        %v3288 = vsel %vm3244, %v3239, %v1574
        %v3289 = vsel %vm3244, %v3240, %v1576
        %v3290 = vsel %vm3244, %v3241, %v1578
        %v3291 = vsel %vm3244, %v3242, %v1580
        %v3292 = vsel %vm3244, %v3243, %v1582
        %vm3293 = vcmask 261120
        %v3294 = vsel %vm3293, %v3245, %v1632
        %v3295 = vsel %vm3293, %v3246, %v1634
        %v3296 = vsel %vm3293, %v3247, %v1636
        %v3297 = vsel %vm3293, %v3248, %v1638
        %v3298 = vsel %vm3293, %v3249, %v1640
        %v3299 = vsel %vm3293, %v3250, %v1642
        %v3300 = vsel %vm3293, %v3251, %v1644
        %v3301 = vsel %vm3293, %v3252, %v1646
        %v3302 = vsel %vm3293, %v3253, %v1648
        %v3303 = vsel %vm3293, %v3254, %v1650
        %v3304 = vsel %vm3293, %v3255, %v1652
        %v3305 = vsel %vm3293, %v3256, %v1654
        %v3306 = vsel %vm3293, %v3257, %v1656
        %v3307 = vsel %vm3293, %v3258, %v1658
        %v3308 = vsel %vm3293, %v3259, %v1660
        %v3309 = vsel %vm3293, %v3260, %v1662
        %v3310 = vsel %vm3293, %v3261, %v1664
        %v3311 = vsel %vm3293, %v3262, %v1666
        %v3312 = vsel %vm3293, %v3263, %v1668
        %v3313 = vsel %vm3293, %v3264, %v1670
        %v3314 = vsel %vm3293, %v3265, %v1672
        %v3315 = vsel %vm3293, %v3266, %v1674
        %v3316 = vsel %vm3293, %v3267, %v1676
        %v3317 = vsel %vm3293, %v3268, %v1678
        %v3318 = vsel %vm3293, %v3269, %v1680
        %v3319 = vsel %vm3293, %v3270, %v1682
        %v3320 = vsel %vm3293, %v3271, %v1684
        %v3321 = vsel %vm3293, %v3272, %v1686
        %v3322 = vsel %vm3293, %v3273, %v1688
        %v3323 = vsel %vm3293, %v3274, %v1690
        %v3324 = vsel %vm3293, %v3275, %v1692
        %v3325 = vsel %vm3293, %v3276, %v1694
        %v3326 = vsel %vm3293, %v3277, %v1696
        %v3327 = vsel %vm3293, %v3278, %v1698
        %v3328 = vsel %vm3293, %v3279, %v1700
        %v3329 = vsel %vm3293, %v3280, %v1702
        %v3330 = vsel %vm3293, %v3281, %v1704
        %v3331 = vsel %vm3293, %v3282, %v1706
        %v3332 = vsel %vm3293, %v3283, %v1708
        %v3333 = vsel %vm3293, %v3284, %v1710
        %v3334 = vsel %vm3293, %v3285, %v1712
        %v3335 = vsel %vm3293, %v3286, %v1714
        %v3336 = vsel %vm3293, %v3287, %v1716
        %v3337 = vsel %vm3293, %v3288, %v1718
        %v3338 = vsel %vm3293, %v3289, %v1720
        %v3339 = vsel %vm3293, %v3290, %v1722
        %v3340 = vsel %vm3293, %v3291, %v1724
        %v3341 = vsel %vm3293, %v3292, %v1726
        %vm3342 = vcmask 293888
        %v3343 = vsel %vm3342, %v3294, %v1786
        %v3344 = vsel %vm3342, %v3295, %v1788
        %v3345 = vsel %vm3342, %v3296, %v1790
        %v3346 = vsel %vm3342, %v3297, %v1792
        %v3347 = vsel %vm3342, %v3298, %v1794
        %v3348 = vsel %vm3342, %v3299, %v1796
        %v3349 = vsel %vm3342, %v3300, %v1798
        %v3350 = vsel %vm3342, %v3301, %v1800
        %v3351 = vsel %vm3342, %v3302, %v1802
        %v3352 = vsel %vm3342, %v3303, %v1804
        %v3353 = vsel %vm3342, %v3304, %v1806
        %v3354 = vsel %vm3342, %v3305, %v1808
        %v3355 = vsel %vm3342, %v3306, %v1810
        %v3356 = vsel %vm3342, %v3307, %v1812
        %v3357 = vsel %vm3342, %v3308, %v1814
        %v3358 = vsel %vm3342, %v3309, %v1816
        %v3359 = vsel %vm3342, %v3310, %v1818
        %v3360 = vsel %vm3342, %v3311, %v1820
        %v3361 = vsel %vm3342, %v3312, %v1822
        %v3362 = vsel %vm3342, %v3313, %v1824
        %v3363 = vsel %vm3342, %v3314, %v1826
        %v3364 = vsel %vm3342, %v3315, %v1828
        %v3365 = vsel %vm3342, %v3316, %v1830
        %v3366 = vsel %vm3342, %v3317, %v1832
        %v3367 = vsel %vm3342, %v3318, %v1834
        %v3368 = vsel %vm3342, %v3319, %v1836
        %v3369 = vsel %vm3342, %v3320, %v1838
        %v3370 = vsel %vm3342, %v3321, %v1840
        %v3371 = vsel %vm3342, %v3322, %v1842
        %v3372 = vsel %vm3342, %v3323, %v1844
        %v3373 = vsel %vm3342, %v3324, %v1846
        %v3374 = vsel %vm3342, %v3325, %v1848
        %v3375 = vsel %vm3342, %v3326, %v1850
        %v3376 = vsel %vm3342, %v3327, %v1852
        %v3377 = vsel %vm3342, %v3328, %v1854
        %v3378 = vsel %vm3342, %v3329, %v1856
        %v3379 = vsel %vm3342, %v3330, %v1858
        %v3380 = vsel %vm3342, %v3331, %v1860
        %v3381 = vsel %vm3342, %v3332, %v1862
        %v3382 = vsel %vm3342, %v3333, %v1864
        %v3383 = vsel %vm3342, %v3334, %v1866
        %v3384 = vsel %vm3342, %v3335, %v1868
        %v3385 = vsel %vm3342, %v3336, %v1870
        %v3386 = vsel %vm3342, %v3337, %v1872
        %v3387 = vsel %vm3342, %v3338, %v1874
        %v3388 = vsel %vm3342, %v3339, %v1876
        %v3389 = vsel %vm3342, %v3340, %v1878
        %v3390 = vsel %vm3342, %v3341, %v1880
        %vm3391 = vcmask 326656
        %v3392 = vsel %vm3391, %v3343, %v1981
        %v3393 = vsel %vm3391, %v3344, %v1983
        %v3394 = vsel %vm3391, %v3345, %v1985
        %v3395 = vsel %vm3391, %v3346, %v1987
        %v3396 = vsel %vm3391, %v3347, %v1989
        %v3397 = vsel %vm3391, %v3348, %v1991
        %v3398 = vsel %vm3391, %v3349, %v1993
        %v3399 = vsel %vm3391, %v3350, %v1995
        %v3400 = vsel %vm3391, %v3351, %v1997
        %v3401 = vsel %vm3391, %v3352, %v1999
        %v3402 = vsel %vm3391, %v3353, %v2001
        %v3403 = vsel %vm3391, %v3354, %v2003
        %v3404 = vsel %vm3391, %v3355, %v2005
        %v3405 = vsel %vm3391, %v3356, %v2007
        %v3406 = vsel %vm3391, %v3357, %v2009
        %v3407 = vsel %vm3391, %v3358, %v2011
        %v3408 = vsel %vm3391, %v3359, %v2013
        %v3409 = vsel %vm3391, %v3360, %v2015
        %v3410 = vsel %vm3391, %v3361, %v2017
        %v3411 = vsel %vm3391, %v3362, %v2019
        %v3412 = vsel %vm3391, %v3363, %v2021
        %v3413 = vsel %vm3391, %v3364, %v2023
        %v3414 = vsel %vm3391, %v3365, %v2025
        %v3415 = vsel %vm3391, %v3366, %v2027
        %v3416 = vsel %vm3391, %v3367, %v2029
        %v3417 = vsel %vm3391, %v3368, %v2031
        %v3418 = vsel %vm3391, %v3369, %v2033
        %v3419 = vsel %vm3391, %v3370, %v2035
        %v3420 = vsel %vm3391, %v3371, %v2037
        %v3421 = vsel %vm3391, %v3372, %v2039
        %v3422 = vsel %vm3391, %v3373, %v2041
        %v3423 = vsel %vm3391, %v3374, %v2043
        %v3424 = vsel %vm3391, %v3375, %v2045
        %v3425 = vsel %vm3391, %v3376, %v2047
        %v3426 = vsel %vm3391, %v3377, %v2049
        %v3427 = vsel %vm3391, %v3378, %v2051
        %v3428 = vsel %vm3391, %v3379, %v2053
        %v3429 = vsel %vm3391, %v3380, %v2055
        %v3430 = vsel %vm3391, %v3381, %v2057
        %v3431 = vsel %vm3391, %v3382, %v2059
        %v3432 = vsel %vm3391, %v3383, %v2061
        %v3433 = vsel %vm3391, %v3384, %v2063
        %v3434 = vsel %vm3391, %v3385, %v2065
        %v3435 = vsel %vm3391, %v3386, %v2067
        %v3436 = vsel %vm3391, %v3387, %v2069
        %v3437 = vsel %vm3391, %v3388, %v2071
        %v3438 = vsel %vm3391, %v3389, %v2073
        %v3439 = vsel %vm3391, %v3390, %v2075
        %vm3440 = vcmask 359424
        %v3441 = vsel %vm3440, %v3392, %v2126
        %v3442 = vsel %vm3440, %v3393, %v2128
        %v3443 = vsel %vm3440, %v3394, %v2130
        %v3444 = vsel %vm3440, %v3395, %v2132
        %v3445 = vsel %vm3440, %v3396, %v2134
        %v3446 = vsel %vm3440, %v3397, %v2136
        %v3447 = vsel %vm3440, %v3398, %v2138
        %v3448 = vsel %vm3440, %v3399, %v2140
        %v3449 = vsel %vm3440, %v3400, %v2142
        %v3450 = vsel %vm3440, %v3401, %v2144
        %v3451 = vsel %vm3440, %v3402, %v2146
        %v3452 = vsel %vm3440, %v3403, %v2148
        %v3453 = vsel %vm3440, %v3404, %v2150
        %v3454 = vsel %vm3440, %v3405, %v2152
        %v3455 = vsel %vm3440, %v3406, %v2154
        %v3456 = vsel %vm3440, %v3407, %v2156
        %v3457 = vsel %vm3440, %v3408, %v2158
        %v3458 = vsel %vm3440, %v3409, %v2160
        %v3459 = vsel %vm3440, %v3410, %v2162
        %v3460 = vsel %vm3440, %v3411, %v2164
        %v3461 = vsel %vm3440, %v3412, %v2166
        %v3462 = vsel %vm3440, %v3413, %v2168
        %v3463 = vsel %vm3440, %v3414, %v2170
        %v3464 = vsel %vm3440, %v3415, %v2172
        %v3465 = vsel %vm3440, %v3416, %v2174
        %v3466 = vsel %vm3440, %v3417, %v2176
        %v3467 = vsel %vm3440, %v3418, %v2178
        %v3468 = vsel %vm3440, %v3419, %v2180
        %v3469 = vsel %vm3440, %v3420, %v2182
        %v3470 = vsel %vm3440, %v3421, %v2184
        %v3471 = vsel %vm3440, %v3422, %v2186
        %v3472 = vsel %vm3440, %v3423, %v2188
        %v3473 = vsel %vm3440, %v3424, %v2190
        %v3474 = vsel %vm3440, %v3425, %v2192
        %v3475 = vsel %vm3440, %v3426, %v2194
        %v3476 = vsel %vm3440, %v3427, %v2196
        %v3477 = vsel %vm3440, %v3428, %v2198
        %v3478 = vsel %vm3440, %v3429, %v2200
        %v3479 = vsel %vm3440, %v3430, %v2202
        %v3480 = vsel %vm3440, %v3431, %v2204
        %v3481 = vsel %vm3440, %v3432, %v2206
        %v3482 = vsel %vm3440, %v3433, %v2208
        %v3483 = vsel %vm3440, %v3434, %v2210
        %v3484 = vsel %vm3440, %v3435, %v2212
        %v3485 = vsel %vm3440, %v3436, %v2214
        %v3486 = vsel %vm3440, %v3437, %v2216
        %v3487 = vsel %vm3440, %v3438, %v2218
        %v3488 = vsel %vm3440, %v3439, %v2220
        %vm3489 = vcmask 392192
        %v3490 = vsel %vm3489, %v3441, %v2351
        %v3491 = vsel %vm3489, %v3442, %v2353
        %v3492 = vsel %vm3489, %v3443, %v2355
        %v3493 = vsel %vm3489, %v3444, %v2357
        %v3494 = vsel %vm3489, %v3445, %v2359
        %v3495 = vsel %vm3489, %v3446, %v2361
        %v3496 = vsel %vm3489, %v3447, %v2363
        %v3497 = vsel %vm3489, %v3448, %v2365
        %v3498 = vsel %vm3489, %v3449, %v2367
        %v3499 = vsel %vm3489, %v3450, %v2369
        %v3500 = vsel %vm3489, %v3451, %v2371
        %v3501 = vsel %vm3489, %v3452, %v2373
        %v3502 = vsel %vm3489, %v3453, %v2375
        %v3503 = vsel %vm3489, %v3454, %v2377
        %v3504 = vsel %vm3489, %v3455, %v2379
        %v3505 = vsel %vm3489, %v3456, %v2381
        %v3506 = vsel %vm3489, %v3457, %v2383
        %v3507 = vsel %vm3489, %v3458, %v2385
        %v3508 = vsel %vm3489, %v3459, %v2387
        %v3509 = vsel %vm3489, %v3460, %v2389
        %v3510 = vsel %vm3489, %v3461, %v2391
        %v3511 = vsel %vm3489, %v3462, %v2393
        %v3512 = vsel %vm3489, %v3463, %v2395
        %v3513 = vsel %vm3489, %v3464, %v2397
        %v3514 = vsel %vm3489, %v3465, %v2399
        %v3515 = vsel %vm3489, %v3466, %v2401
        %v3516 = vsel %vm3489, %v3467, %v2403
        %v3517 = vsel %vm3489, %v3468, %v2405
        %v3518 = vsel %vm3489, %v3469, %v2407
        %v3519 = vsel %vm3489, %v3470, %v2409
        %v3520 = vsel %vm3489, %v3471, %v2411
        %v3521 = vsel %vm3489, %v3472, %v2413
        %v3522 = vsel %vm3489, %v3473, %v2415
        %v3523 = vsel %vm3489, %v3474, %v2417
        %v3524 = vsel %vm3489, %v3475, %v2419
        %v3525 = vsel %vm3489, %v3476, %v2421
        %v3526 = vsel %vm3489, %v3477, %v2423
        %v3527 = vsel %vm3489, %v3478, %v2425
        %v3528 = vsel %vm3489, %v3479, %v2427
        %v3529 = vsel %vm3489, %v3480, %v2429
        %v3530 = vsel %vm3489, %v3481, %v2431
        %v3531 = vsel %vm3489, %v3482, %v2433
        %v3532 = vsel %vm3489, %v3483, %v2435
        %v3533 = vsel %vm3489, %v3484, %v2437
        %v3534 = vsel %vm3489, %v3485, %v2439
        %v3535 = vsel %vm3489, %v3486, %v2441
        %v3536 = vsel %vm3489, %v3487, %v2443
        %v3537 = vsel %vm3489, %v3488, %v2445
        %vm3538 = vcmask 424960
        %v3539 = vsel %vm3538, %v3490, %v2504
        %v3540 = vsel %vm3538, %v3491, %v2506
        %v3541 = vsel %vm3538, %v3492, %v2508
        %v3542 = vsel %vm3538, %v3493, %v2510
        %v3543 = vsel %vm3538, %v3494, %v2512
        %v3544 = vsel %vm3538, %v3495, %v2514
        %v3545 = vsel %vm3538, %v3496, %v2516
        %v3546 = vsel %vm3538, %v3497, %v2518
        %v3547 = vsel %vm3538, %v3498, %v2520
        %v3548 = vsel %vm3538, %v3499, %v2522
        %v3549 = vsel %vm3538, %v3500, %v2524
        %v3550 = vsel %vm3538, %v3501, %v2526
        %v3551 = vsel %vm3538, %v3502, %v2528
        %v3552 = vsel %vm3538, %v3503, %v2530
        %v3553 = vsel %vm3538, %v3504, %v2532
        %v3554 = vsel %vm3538, %v3505, %v2534
        %v3555 = vsel %vm3538, %v3506, %v2536
        %v3556 = vsel %vm3538, %v3507, %v2538
        %v3557 = vsel %vm3538, %v3508, %v2540
        %v3558 = vsel %vm3538, %v3509, %v2542
        %v3559 = vsel %vm3538, %v3510, %v2544
        %v3560 = vsel %vm3538, %v3511, %v2546
        %v3561 = vsel %vm3538, %v3512, %v2548
        %v3562 = vsel %vm3538, %v3513, %v2550
        %v3563 = vsel %vm3538, %v3514, %v2552
        %v3564 = vsel %vm3538, %v3515, %v2554
        %v3565 = vsel %vm3538, %v3516, %v2556
        %v3566 = vsel %vm3538, %v3517, %v2558
        %v3567 = vsel %vm3538, %v3518, %v2560
        %v3568 = vsel %vm3538, %v3519, %v2562
        %v3569 = vsel %vm3538, %v3520, %v2564
        %v3570 = vsel %vm3538, %v3521, %v2566
        %v3571 = vsel %vm3538, %v3522, %v2568
        %v3572 = vsel %vm3538, %v3523, %v2570
        %v3573 = vsel %vm3538, %v3524, %v2572
        %v3574 = vsel %vm3538, %v3525, %v2574
        %v3575 = vsel %vm3538, %v3526, %v2576
        %v3576 = vsel %vm3538, %v3527, %v2578
        %v3577 = vsel %vm3538, %v3528, %v2580
        %v3578 = vsel %vm3538, %v3529, %v2582
        %v3579 = vsel %vm3538, %v3530, %v2584
        %v3580 = vsel %vm3538, %v3531, %v2586
        %v3581 = vsel %vm3538, %v3532, %v2588
        %v3582 = vsel %vm3538, %v3533, %v2590
        %v3583 = vsel %vm3538, %v3534, %v2592
        %v3584 = vsel %vm3538, %v3535, %v2594
        %v3585 = vsel %vm3538, %v3536, %v2596
        %v3586 = vsel %vm3538, %v3537, %v2598
        %vm3587 = vcmask 457728
        %v3588 = vsel %vm3587, %v3539, %v2648
        %v3589 = vsel %vm3587, %v3540, %v2650
        %v3590 = vsel %vm3587, %v3541, %v2652
        %v3591 = vsel %vm3587, %v3542, %v2654
        %v3592 = vsel %vm3587, %v3543, %v2656
        %v3593 = vsel %vm3587, %v3544, %v2658
        %v3594 = vsel %vm3587, %v3545, %v2660
        %v3595 = vsel %vm3587, %v3546, %v2662
        %v3596 = vsel %vm3587, %v3547, %v2664
        %v3597 = vsel %vm3587, %v3548, %v2666
        %v3598 = vsel %vm3587, %v3549, %v2668
        %v3599 = vsel %vm3587, %v3550, %v2670
        %v3600 = vsel %vm3587, %v3551, %v2672
        %v3601 = vsel %vm3587, %v3552, %v2674
        %v3602 = vsel %vm3587, %v3553, %v2676
        %v3603 = vsel %vm3587, %v3554, %v2678
        %v3604 = vsel %vm3587, %v3555, %v2680
        %v3605 = vsel %vm3587, %v3556, %v2682
        %v3606 = vsel %vm3587, %v3557, %v2684
        %v3607 = vsel %vm3587, %v3558, %v2686
        %v3608 = vsel %vm3587, %v3559, %v2688
        %v3609 = vsel %vm3587, %v3560, %v2690
        %v3610 = vsel %vm3587, %v3561, %v2692
        %v3611 = vsel %vm3587, %v3562, %v2694
        %v3612 = vsel %vm3587, %v3563, %v2696
        %v3613 = vsel %vm3587, %v3564, %v2698
        %v3614 = vsel %vm3587, %v3565, %v2700
        %v3615 = vsel %vm3587, %v3566, %v2702
        %v3616 = vsel %vm3587, %v3567, %v2704
        %v3617 = vsel %vm3587, %v3568, %v2706
        %v3618 = vsel %vm3587, %v3569, %v2708
        %v3619 = vsel %vm3587, %v3570, %v2710
        %v3620 = vsel %vm3587, %v3571, %v2712
        %v3621 = vsel %vm3587, %v3572, %v2714
        %v3622 = vsel %vm3587, %v3573, %v2716
        %v3623 = vsel %vm3587, %v3574, %v2718
        %v3624 = vsel %vm3587, %v3575, %v2720
        %v3625 = vsel %vm3587, %v3576, %v2722
        %v3626 = vsel %vm3587, %v3577, %v2724
        %v3627 = vsel %vm3587, %v3578, %v2726
        %v3628 = vsel %vm3587, %v3579, %v2728
        %v3629 = vsel %vm3587, %v3580, %v2730
        %v3630 = vsel %vm3587, %v3581, %v2732
        %v3631 = vsel %vm3587, %v3582, %v2734
        %v3632 = vsel %vm3587, %v3583, %v2736
        %v3633 = vsel %vm3587, %v3584, %v2738
        %v3634 = vsel %vm3587, %v3585, %v2740
        %v3635 = vsel %vm3587, %v3586, %v2742
        %vm3636 = vcmask 490496
        %v3637 = vsel %vm3636, %v3588, %v2807
        %v3638 = vsel %vm3636, %v3589, %v2809
        %v3639 = vsel %vm3636, %v3590, %v2811
        %v3640 = vsel %vm3636, %v3591, %v2813
        %v3641 = vsel %vm3636, %v3592, %v2815
        %v3642 = vsel %vm3636, %v3593, %v2817
        %v3643 = vsel %vm3636, %v3594, %v2819
        %v3644 = vsel %vm3636, %v3595, %v2821
        %v3645 = vsel %vm3636, %v3596, %v2823
        %v3646 = vsel %vm3636, %v3597, %v2825
        %v3647 = vsel %vm3636, %v3598, %v2827
        %v3648 = vsel %vm3636, %v3599, %v2829
        %v3649 = vsel %vm3636, %v3600, %v2831
        %v3650 = vsel %vm3636, %v3601, %v2833
        %v3651 = vsel %vm3636, %v3602, %v2835
        %v3652 = vsel %vm3636, %v3603, %v2837
        %v3653 = vsel %vm3636, %v3604, %v2839
        %v3654 = vsel %vm3636, %v3605, %v2841
        %v3655 = vsel %vm3636, %v3606, %v2843
        %v3656 = vsel %vm3636, %v3607, %v2845
        %v3657 = vsel %vm3636, %v3608, %v2847
        %v3658 = vsel %vm3636, %v3609, %v2849
        %v3659 = vsel %vm3636, %v3610, %v2851
        %v3660 = vsel %vm3636, %v3611, %v2853
        %v3661 = vsel %vm3636, %v3612, %v2855
        %v3662 = vsel %vm3636, %v3613, %v2857
        %v3663 = vsel %vm3636, %v3614, %v2859
        %v3664 = vsel %vm3636, %v3615, %v2861
        %v3665 = vsel %vm3636, %v3616, %v2863
        %v3666 = vsel %vm3636, %v3617, %v2865
        %v3667 = vsel %vm3636, %v3618, %v2867
        %v3668 = vsel %vm3636, %v3619, %v2869
        %v3669 = vsel %vm3636, %v3620, %v2871
        %v3670 = vsel %vm3636, %v3621, %v2873
        %v3671 = vsel %vm3636, %v3622, %v2875
        %v3672 = vsel %vm3636, %v3623, %v2877
        %v3673 = vsel %vm3636, %v3624, %v2879
        %v3674 = vsel %vm3636, %v3625, %v2881
        %v3675 = vsel %vm3636, %v3626, %v2883
        %v3676 = vsel %vm3636, %v3627, %v2885
        %v3677 = vsel %vm3636, %v3628, %v2887
        %v3678 = vsel %vm3636, %v3629, %v2889
        %v3679 = vsel %vm3636, %v3630, %v2891
        %v3680 = vsel %vm3636, %v3631, %v2893
        %v3681 = vsel %vm3636, %v3632, %v2895
        %v3682 = vsel %vm3636, %v3633, %v2897
        %v3683 = vsel %vm3636, %v3634, %v2899
        %v3684 = vsel %vm3636, %v3635, %v2901
        %v3688 = vrot.slane %v362, 3
        %v3689 = vrot.slane %v363, 3
        %v3690 = vsel %vm2269, %v3688, %v3689
        %v3691 = vrot.slane %v364, 3
        %v3692 = vsel %vm2269, %v3689, %v3691
        %v3693 = vrot.slane %v365, 3
        %v3694 = vrot.slane %v366, 3
        %v3695 = vsel %vm2269, %v3693, %v3694
        %v3696 = vrot.slane %v367, 3
        %v3697 = vsel %vm2269, %v3694, %v3696
        %v3698 = vrot.slane %v368, 3
        %v3699 = vrot.slane %v369, 3
        %v3700 = vsel %vm2269, %v3698, %v3699
        %v3701 = vrot.slane %v370, 3
        %v3702 = vsel %vm2269, %v3699, %v3701
        %3703 = vrot.lane.b32.xlu0 %v2302, 4
        %v3704 = vpop.permute.xlu0 %3703
        %3705 = vrot.lane.b32.xlu0 %v2304, 4
        %v3706 = vpop.permute.xlu0 %3705
        %3707 = vrot.lane.b32.xlu0 %v2307, 4
        %v3708 = vpop.permute.xlu0 %3707
        %3709 = vrot.lane.b32.xlu0 %v2309, 4
        %v3710 = vpop.permute.xlu0 %3709
        %3711 = vrot.lane.b32.xlu0 %v2312, 4
        %v3712 = vpop.permute.xlu0 %3711
        %3713 = vrot.lane.b32.xlu0 %v2314, 4
        %v3714 = vpop.permute.xlu0 %3713
        %3715 = vrot.lane.b32.xlu0 %v2317, 4
        %v3716 = vpop.permute.xlu0 %3715
        %3717 = vrot.lane.b32.xlu0 %v2319, 4
        %v3718 = vpop.permute.xlu0 %3717
        %3719 = vrot.lane.b32.xlu0 %v2322, 4
        %v3720 = vpop.permute.xlu0 %3719
        %3721 = vrot.lane.b32.xlu0 %v2324, 4
        %v3722 = vpop.permute.xlu0 %3721
        %3723 = vrot.lane.b32.xlu0 %v2327, 4
        %v3724 = vpop.permute.xlu0 %3723
        %3725 = vrot.lane.b32.xlu0 %v2329, 4
        %v3726 = vpop.permute.xlu0 %3725
        %3727 = vrot.lane.b32.xlu0 %v2332, 4
        %v3728 = vpop.permute.xlu0 %3727
        %3729 = vrot.lane.b32.xlu0 %v2334, 4
        %v3730 = vpop.permute.xlu0 %3729
        %3731 = vrot.lane.b32.xlu0 %v2337, 4
        %v3732 = vpop.permute.xlu0 %3731
        %3733 = vrot.lane.b32.xlu0 %v2339, 4
        %v3734 = vpop.permute.xlu0 %3733
        %3735 = vrot.lane.b32.xlu0 %v2342, 4
        %v3736 = vpop.permute.xlu0 %3735
        %3737 = vrot.lane.b32.xlu0 %v2344, 4
        %v3738 = vpop.permute.xlu0 %3737
        %3739 = vrot.lane.b32.xlu0 %v2347, 4
        %v3740 = vpop.permute.xlu0 %3739
        %3741 = vrot.lane.b32.xlu0 %v2349, 4
        %v3742 = vpop.permute.xlu0 %3741
        %3743 = vrot.lane.b32.xlu0 %v2793, 4
        %v3744 = vpop.permute.xlu0 %3743
        %3745 = vrot.lane.b32.xlu0 %v2795, 4
        %v3746 = vpop.permute.xlu0 %3745
        %3747 = vrot.lane.b32.xlu0 %v2798, 4
        %v3748 = vpop.permute.xlu0 %3747
        %3749 = vrot.lane.b32.xlu0 %v2800, 4
        %v3750 = vpop.permute.xlu0 %3749
        %3751 = vrot.lane.b32.xlu0 %v2803, 4
        %v3752 = vpop.permute.xlu0 %3751
        %3753 = vrot.lane.b32.xlu0 %v2805, 4
        %v3754 = vpop.permute.xlu0 %3753
        %3755 = vrot.lane.b32.xlu0 %v3690, 4
        %v3756 = vpop.permute.xlu0 %3755
        %3757 = vrot.lane.b32.xlu0 %v3692, 4
        %v3758 = vpop.permute.xlu0 %3757
        %3759 = vrot.lane.b32.xlu0 %v3695, 4
        %v3760 = vpop.permute.xlu0 %3759
        %3761 = vrot.lane.b32.xlu0 %v3697, 4
        %v3762 = vpop.permute.xlu0 %3761
        %3763 = vrot.lane.b32.xlu0 %v3700, 4
        %v3764 = vpop.permute.xlu0 %3763
        %3765 = vrot.lane.b32.xlu0 %v3702, 4
        %v3766 = vpop.permute.xlu0 %3765
        %v3799 = vrot.slane %v368, 6
        %v3800 = vrot.slane %v369, 6
        %v3801 = vsel %vm419, %v3799, %v3800
        %v3802 = vrot.slane %v370, 6
        %v3803 = vsel %vm419, %v3800, %v3802
        %3804 = vrot.lane.b32.xlu0 %v447, 8
        %v3805 = vpop.permute.xlu0 %3804
        %3806 = vrot.lane.b32.xlu0 %v449, 8
        %v3807 = vpop.permute.xlu0 %3806
        %3808 = vrot.lane.b32.xlu0 %v452, 8
        %v3809 = vpop.permute.xlu0 %3808
        %3810 = vrot.lane.b32.xlu0 %v454, 8
        %v3811 = vpop.permute.xlu0 %3810
        %3812 = vrot.lane.b32.xlu0 %v457, 8
        %v3813 = vpop.permute.xlu0 %3812
        %3814 = vrot.lane.b32.xlu0 %v459, 8
        %v3815 = vpop.permute.xlu0 %3814
        %3816 = vrot.lane.b32.xlu0 %v462, 8
        %v3817 = vpop.permute.xlu0 %3816
        %3818 = vrot.lane.b32.xlu0 %v464, 8
        %v3819 = vpop.permute.xlu0 %3818
        %3820 = vrot.lane.b32.xlu0 %v467, 8
        %v3821 = vpop.permute.xlu0 %3820
        %3822 = vrot.lane.b32.xlu0 %v469, 8
        %v3823 = vpop.permute.xlu0 %3822
        %3824 = vrot.lane.b32.xlu0 %v472, 8
        %v3825 = vpop.permute.xlu0 %3824
        %3826 = vrot.lane.b32.xlu0 %v474, 8
        %v3827 = vpop.permute.xlu0 %3826
        %3828 = vrot.lane.b32.xlu0 %v477, 8
        %v3829 = vpop.permute.xlu0 %3828
        %3830 = vrot.lane.b32.xlu0 %v479, 8
        %v3831 = vpop.permute.xlu0 %3830
        %3832 = vrot.lane.b32.xlu0 %v482, 8
        %v3833 = vpop.permute.xlu0 %3832
        %3834 = vrot.lane.b32.xlu0 %v484, 8
        %v3835 = vpop.permute.xlu0 %3834
        %3836 = vrot.lane.b32.xlu0 %v487, 8
        %v3837 = vpop.permute.xlu0 %3836
        %3838 = vrot.lane.b32.xlu0 %v489, 8
        %v3839 = vpop.permute.xlu0 %3838
        %3840 = vrot.lane.b32.xlu0 %v492, 8
        %v3841 = vpop.permute.xlu0 %3840
        %3842 = vrot.lane.b32.xlu0 %v494, 8
        %v3843 = vpop.permute.xlu0 %3842
        %3844 = vrot.lane.b32.xlu0 %v497, 8
        %v3845 = vpop.permute.xlu0 %3844
        %3846 = vrot.lane.b32.xlu0 %v499, 8
        %v3847 = vpop.permute.xlu0 %3846
        %3848 = vrot.lane.b32.xlu0 %v1021, 8
        %v3849 = vpop.permute.xlu0 %3848
        %3850 = vrot.lane.b32.xlu0 %v1023, 8
        %v3851 = vpop.permute.xlu0 %3850
        %3852 = vrot.lane.b32.xlu0 %v1026, 8
        %v3853 = vpop.permute.xlu0 %3852
        %3854 = vrot.lane.b32.xlu0 %v1028, 8
        %v3855 = vpop.permute.xlu0 %3854
        %3856 = vrot.lane.b32.xlu0 %v1479, 8
        %v3857 = vpop.permute.xlu0 %3856
        %3858 = vrot.lane.b32.xlu0 %v1481, 8
        %v3859 = vpop.permute.xlu0 %3858
        %3860 = vrot.lane.b32.xlu0 %v1484, 8
        %v3861 = vpop.permute.xlu0 %3860
        %3862 = vrot.lane.b32.xlu0 %v1486, 8
        %v3863 = vpop.permute.xlu0 %3862
        %3864 = vrot.lane.b32.xlu0 %v3801, 8
        %v3865 = vpop.permute.xlu0 %3864
        %3866 = vrot.lane.b32.xlu0 %v3803, 8
        %v3867 = vpop.permute.xlu0 %3866
        %v3900 = vsel %vm2950, %v323, %v3704
        %v3901 = vsel %vm2950, %v324, %v3706
        %v3902 = vsel %vm2950, %v326, %v3708
        %v3903 = vsel %vm2950, %v327, %v3710
        %v3904 = vsel %vm2950, %v329, %v3712
        %v3905 = vsel %vm2950, %v330, %v3714
        %v3906 = vsel %vm2950, %v332, %v3716
        %v3907 = vsel %vm2950, %v333, %v3718
        %v3908 = vsel %vm2950, %v335, %v3720
        %v3909 = vsel %vm2950, %v336, %v3722
        %v3910 = vsel %vm2950, %v338, %v3724
        %v3911 = vsel %vm2950, %v339, %v3726
        %v3912 = vsel %vm2950, %v341, %v3728
        %v3913 = vsel %vm2950, %v342, %v3730
        %v3914 = vsel %vm2950, %v344, %v3732
        %v3915 = vsel %vm2950, %v345, %v3734
        %v3916 = vsel %vm2950, %v347, %v3736
        %v3917 = vsel %vm2950, %v348, %v3738
        %v3918 = vsel %vm2950, %v350, %v3740
        %v3919 = vsel %vm2950, %v351, %v3742
        %v3920 = vsel %vm2950, %v353, %v3744
        %v3921 = vsel %vm2950, %v354, %v3746
        %v3922 = vsel %vm2950, %v356, %v3748
        %v3923 = vsel %vm2950, %v357, %v3750
        %v3924 = vsel %vm2950, %v359, %v3752
        %v3925 = vsel %vm2950, %v360, %v3754
        %v3926 = vsel %vm2950, %v362, %v3756
        %v3927 = vsel %vm2950, %v363, %v3758
        %v3928 = vsel %vm2950, %v365, %v3760
        %v3929 = vsel %vm2950, %v366, %v3762
        %v3930 = vsel %vm2950, %v368, %v3764
        %v3931 = vsel %vm2950, %v369, %v3766
        %v3932 = vsel %vm2999, %v3900, %v3805
        %v3933 = vsel %vm2999, %v3901, %v3807
        %v3934 = vsel %vm2999, %v3902, %v3809
        %v3935 = vsel %vm2999, %v3903, %v3811
        %v3936 = vsel %vm2999, %v3904, %v3813
        %v3937 = vsel %vm2999, %v3905, %v3815
        %v3938 = vsel %vm2999, %v3906, %v3817
        %v3939 = vsel %vm2999, %v3907, %v3819
        %v3940 = vsel %vm2999, %v3908, %v3821
        %v3941 = vsel %vm2999, %v3909, %v3823
        %v3942 = vsel %vm2999, %v3910, %v3825
        %v3943 = vsel %vm2999, %v3911, %v3827
        %v3944 = vsel %vm2999, %v3912, %v3829
        %v3945 = vsel %vm2999, %v3913, %v3831
        %v3946 = vsel %vm2999, %v3914, %v3833
        %v3947 = vsel %vm2999, %v3915, %v3835
        %v3948 = vsel %vm2999, %v3916, %v3837
        %v3949 = vsel %vm2999, %v3917, %v3839
        %v3950 = vsel %vm2999, %v3918, %v3841
        %v3951 = vsel %vm2999, %v3919, %v3843
        %v3952 = vsel %vm2999, %v3920, %v3845
        %v3953 = vsel %vm2999, %v3921, %v3847
        %v3954 = vsel %vm2999, %v3922, %v3849
        %v3955 = vsel %vm2999, %v3923, %v3851
        %v3956 = vsel %vm2999, %v3924, %v3853
        %v3957 = vsel %vm2999, %v3925, %v3855
        %v3958 = vsel %vm2999, %v3926, %v3857
        %v3959 = vsel %vm2999, %v3927, %v3859
        %v3960 = vsel %vm2999, %v3928, %v3861
        %v3961 = vsel %vm2999, %v3929, %v3863
        %v3962 = vsel %vm2999, %v3930, %v3865
        %v3963 = vsel %vm2999, %v3931, %v3867
        %v3996 = vrot.slane %v3932, 5
        %v3997 = vrot.slane %v3933, 5
        %v3998 = vsel %vm1931, %v3996, %v3997
        %v3999 = vrot.slane %v3934, 5
        %v4000 = vrot.slane %v3935, 5
        %v4001 = vsel %vm1931, %v3999, %v4000
        %v4002 = vrot.slane %v3936, 5
        %v4003 = vrot.slane %v3937, 5
        %v4004 = vsel %vm1931, %v4002, %v4003
        %v4005 = vrot.slane %v3938, 5
        %v4006 = vrot.slane %v3939, 5
        %v4007 = vsel %vm1931, %v4005, %v4006
        %v4008 = vrot.slane %v3940, 5
        %v4009 = vrot.slane %v3941, 5
        %v4010 = vsel %vm1931, %v4008, %v4009
        %v4011 = vrot.slane %v3942, 5
        %v4012 = vrot.slane %v3943, 5
        %v4013 = vsel %vm1931, %v4011, %v4012
        %v4014 = vrot.slane %v3944, 5
        %v4015 = vrot.slane %v3945, 5
        %v4016 = vsel %vm1931, %v4014, %v4015
        %v4017 = vrot.slane %v3946, 5
        %v4018 = vrot.slane %v3947, 5
        %v4019 = vsel %vm1931, %v4017, %v4018
        %v4020 = vrot.slane %v3948, 5
        %v4021 = vrot.slane %v3949, 5
        %v4022 = vsel %vm1931, %v4020, %v4021
        %v4023 = vrot.slane %v3950, 5
        %v4024 = vrot.slane %v3951, 5
        %v4025 = vsel %vm1931, %v4023, %v4024
        %v4026 = vrot.slane %v3952, 5
        %v4027 = vrot.slane %v3953, 5
        %v4028 = vsel %vm1931, %v4026, %v4027
        %v4029 = vrot.slane %v3954, 5
        %v4030 = vrot.slane %v3955, 5
        %v4031 = vsel %vm1931, %v4029, %v4030
        %v4032 = vrot.slane %v3956, 5
        %v4033 = vrot.slane %v3957, 5
        %v4034 = vsel %vm1931, %v4032, %v4033
        %v4035 = vrot.slane %v3958, 5
        %v4036 = vrot.slane %v3959, 5
        %v4037 = vsel %vm1931, %v4035, %v4036
        %v4038 = vrot.slane %v3960, 5
        %v4039 = vrot.slane %v3961, 5
        %v4040 = vsel %vm1931, %v4038, %v4039
        %v4041 = vrot.slane %v3962, 5
        %v4042 = vrot.slane %v3963, 5
        %v4043 = vsel %vm1931, %v4041, %v4042
        %4044 = vrot.lane.b32.xlu0 %v3996, 64
        %v4045 = vpop.permute.xlu0 %4044
        %4046 = vrot.lane.b32.xlu0 %v3998, 64
        %v4047 = vpop.permute.xlu0 %4046
        %4048 = vrot.lane.b32.xlu0 %v3997, 64
        %v4049 = vpop.permute.xlu0 %4048
        %4050 = vrot.lane.b32.xlu0 %v3999, 64
        %v4051 = vpop.permute.xlu0 %4050
        %4052 = vrot.lane.b32.xlu0 %v4001, 64
        %v4053 = vpop.permute.xlu0 %4052
        %4054 = vrot.lane.b32.xlu0 %v4000, 64
        %v4055 = vpop.permute.xlu0 %4054
        %4056 = vrot.lane.b32.xlu0 %v4002, 64
        %v4057 = vpop.permute.xlu0 %4056
        %4058 = vrot.lane.b32.xlu0 %v4004, 64
        %v4059 = vpop.permute.xlu0 %4058
        %4060 = vrot.lane.b32.xlu0 %v4003, 64
        %v4061 = vpop.permute.xlu0 %4060
        %4062 = vrot.lane.b32.xlu0 %v4005, 64
        %v4063 = vpop.permute.xlu0 %4062
        %4064 = vrot.lane.b32.xlu0 %v4007, 64
        %v4065 = vpop.permute.xlu0 %4064
        %4066 = vrot.lane.b32.xlu0 %v4006, 64
        %v4067 = vpop.permute.xlu0 %4066
        %4068 = vrot.lane.b32.xlu0 %v4008, 64
        %v4069 = vpop.permute.xlu0 %4068
        %4070 = vrot.lane.b32.xlu0 %v4010, 64
        %v4071 = vpop.permute.xlu0 %4070
        %4072 = vrot.lane.b32.xlu0 %v4009, 64
        %v4073 = vpop.permute.xlu0 %4072
        %4074 = vrot.lane.b32.xlu0 %v4011, 64
        %v4075 = vpop.permute.xlu0 %4074
        %4076 = vrot.lane.b32.xlu0 %v4013, 64
        %v4077 = vpop.permute.xlu0 %4076
        %4078 = vrot.lane.b32.xlu0 %v4012, 64
        %v4079 = vpop.permute.xlu0 %4078
        %4080 = vrot.lane.b32.xlu0 %v4014, 64
        %v4081 = vpop.permute.xlu0 %4080
        %4082 = vrot.lane.b32.xlu0 %v4016, 64
        %v4083 = vpop.permute.xlu0 %4082
        %4084 = vrot.lane.b32.xlu0 %v4015, 64
        %v4085 = vpop.permute.xlu0 %4084
        %4086 = vrot.lane.b32.xlu0 %v4017, 64
        %v4087 = vpop.permute.xlu0 %4086
        %4088 = vrot.lane.b32.xlu0 %v4019, 64
        %v4089 = vpop.permute.xlu0 %4088
        %4090 = vrot.lane.b32.xlu0 %v4018, 64
        %v4091 = vpop.permute.xlu0 %4090
        %4092 = vrot.lane.b32.xlu0 %v4020, 64
        %v4093 = vpop.permute.xlu0 %4092
        %4094 = vrot.lane.b32.xlu0 %v4022, 64
        %v4095 = vpop.permute.xlu0 %4094
        %4096 = vrot.lane.b32.xlu0 %v4021, 64
        %v4097 = vpop.permute.xlu0 %4096
        %4098 = vrot.lane.b32.xlu0 %v4023, 64
        %v4099 = vpop.permute.xlu0 %4098
        %4100 = vrot.lane.b32.xlu0 %v4025, 64
        %v4101 = vpop.permute.xlu0 %4100
        %4102 = vrot.lane.b32.xlu0 %v4024, 64
        %v4103 = vpop.permute.xlu0 %4102
        %4104 = vrot.lane.b32.xlu0 %v4026, 64
        %v4105 = vpop.permute.xlu0 %4104
        %4106 = vrot.lane.b32.xlu0 %v4028, 64
        %v4107 = vpop.permute.xlu0 %4106
        %4108 = vrot.lane.b32.xlu0 %v4027, 64
        %v4109 = vpop.permute.xlu0 %4108
        %4110 = vrot.lane.b32.xlu0 %v4029, 64
        %v4111 = vpop.permute.xlu0 %4110
        %4112 = vrot.lane.b32.xlu0 %v4031, 64
        %v4113 = vpop.permute.xlu0 %4112
        %4114 = vrot.lane.b32.xlu0 %v4030, 64
        %v4115 = vpop.permute.xlu0 %4114
        %4116 = vrot.lane.b32.xlu0 %v4032, 64
        %v4117 = vpop.permute.xlu0 %4116
        %4118 = vrot.lane.b32.xlu0 %v4034, 64
        %v4119 = vpop.permute.xlu0 %4118
        %4120 = vrot.lane.b32.xlu0 %v4033, 64
        %v4121 = vpop.permute.xlu0 %4120
        %4122 = vrot.lane.b32.xlu0 %v4035, 64
        %v4123 = vpop.permute.xlu0 %4122
        %4124 = vrot.lane.b32.xlu0 %v4037, 64
        %v4125 = vpop.permute.xlu0 %4124
        %4126 = vrot.lane.b32.xlu0 %v4036, 64
        %v4127 = vpop.permute.xlu0 %4126
        %4128 = vrot.lane.b32.xlu0 %v4038, 64
        %v4129 = vpop.permute.xlu0 %4128
        %4130 = vrot.lane.b32.xlu0 %v4040, 64
        %v4131 = vpop.permute.xlu0 %4130
        %4132 = vrot.lane.b32.xlu0 %v4039, 64
        %v4133 = vpop.permute.xlu0 %4132
        %4134 = vrot.lane.b32.xlu0 %v4041, 64
        %v4135 = vpop.permute.xlu0 %4134
        %4136 = vrot.lane.b32.xlu0 %v4043, 64
        %v4137 = vpop.permute.xlu0 %4136
        %4138 = vrot.lane.b32.xlu0 %v4042, 64
        %v4139 = vpop.permute.xlu0 %4138
        %vm4188 = vcmask 523264
        %v4189 = vsel %vm4188, %v3637, %v4045
        %v4190 = vsel %vm4188, %v3638, %v4047
        %v4191 = vsel %vm4188, %v3639, %v4049
        %v4192 = vsel %vm4188, %v3640, %v4051
        %v4193 = vsel %vm4188, %v3641, %v4053
        %v4194 = vsel %vm4188, %v3642, %v4055
        %v4195 = vsel %vm4188, %v3643, %v4057
        %v4196 = vsel %vm4188, %v3644, %v4059
        %v4197 = vsel %vm4188, %v3645, %v4061
        %v4198 = vsel %vm4188, %v3646, %v4063
        %v4199 = vsel %vm4188, %v3647, %v4065
        %v4200 = vsel %vm4188, %v3648, %v4067
        %v4201 = vsel %vm4188, %v3649, %v4069
        %v4202 = vsel %vm4188, %v3650, %v4071
        %v4203 = vsel %vm4188, %v3651, %v4073
        %v4204 = vsel %vm4188, %v3652, %v4075
        %v4205 = vsel %vm4188, %v3653, %v4077
        %v4206 = vsel %vm4188, %v3654, %v4079
        %v4207 = vsel %vm4188, %v3655, %v4081
        %v4208 = vsel %vm4188, %v3656, %v4083
        %v4209 = vsel %vm4188, %v3657, %v4085
        %v4210 = vsel %vm4188, %v3658, %v4087
        %v4211 = vsel %vm4188, %v3659, %v4089
        %v4212 = vsel %vm4188, %v3660, %v4091
        %v4213 = vsel %vm4188, %v3661, %v4093
        %v4214 = vsel %vm4188, %v3662, %v4095
        %v4215 = vsel %vm4188, %v3663, %v4097
        %v4216 = vsel %vm4188, %v3664, %v4099
        %v4217 = vsel %vm4188, %v3665, %v4101
        %v4218 = vsel %vm4188, %v3666, %v4103
        %v4219 = vsel %vm4188, %v3667, %v4105
        %v4220 = vsel %vm4188, %v3668, %v4107
        %v4221 = vsel %vm4188, %v3669, %v4109
        %v4222 = vsel %vm4188, %v3670, %v4111
        %v4223 = vsel %vm4188, %v3671, %v4113
        %v4224 = vsel %vm4188, %v3672, %v4115
        %v4225 = vsel %vm4188, %v3673, %v4117
        %v4226 = vsel %vm4188, %v3674, %v4119
        %v4227 = vsel %vm4188, %v3675, %v4121
        %v4228 = vsel %vm4188, %v3676, %v4123
        %v4229 = vsel %vm4188, %v3677, %v4125
        %v4230 = vsel %vm4188, %v3678, %v4127
        %v4231 = vsel %vm4188, %v3679, %v4129
        %v4232 = vsel %vm4188, %v3680, %v4131
        %v4233 = vsel %vm4188, %v3681, %v4133
        %v4234 = vsel %vm4188, %v3682, %v4135
        %v4235 = vsel %vm4188, %v3683, %v4137
        %v4236 = vsel %vm4188, %v3684, %v4139
        %v4285 = vrot.slane %v4189, 3
        %v4286 = vrot.slane %v4190, 3
        %v4287 = vsel %vm2269, %v4285, %v4286
        %v4288 = vrot.slane %v4191, 3
        %v4289 = vsel %vm2269, %v4286, %v4288
        %v4290 = vrot.slane %v4192, 3
        %v4291 = vrot.slane %v4193, 3
        %v4292 = vsel %vm2269, %v4290, %v4291
        %v4293 = vrot.slane %v4194, 3
        %v4294 = vsel %vm2269, %v4291, %v4293
        %v4295 = vrot.slane %v4195, 3
        %v4296 = vrot.slane %v4196, 3
        %v4297 = vsel %vm2269, %v4295, %v4296
        %v4298 = vrot.slane %v4197, 3
        %v4299 = vsel %vm2269, %v4296, %v4298
        %v4300 = vrot.slane %v4198, 3
        %v4301 = vrot.slane %v4199, 3
        %v4302 = vsel %vm2269, %v4300, %v4301
        %v4303 = vrot.slane %v4200, 3
        %v4304 = vsel %vm2269, %v4301, %v4303
        %v4305 = vrot.slane %v4201, 3
        %v4306 = vrot.slane %v4202, 3
        %v4307 = vsel %vm2269, %v4305, %v4306
        %v4308 = vrot.slane %v4203, 3
        %v4309 = vsel %vm2269, %v4306, %v4308
        %v4310 = vrot.slane %v4204, 3
        %v4311 = vrot.slane %v4205, 3
        %v4312 = vsel %vm2269, %v4310, %v4311
        %v4313 = vrot.slane %v4206, 3
        %v4314 = vsel %vm2269, %v4311, %v4313
        %v4315 = vrot.slane %v4207, 3
        %v4316 = vrot.slane %v4208, 3
        %v4317 = vsel %vm2269, %v4315, %v4316
        %v4318 = vrot.slane %v4209, 3
        %v4319 = vsel %vm2269, %v4316, %v4318
        %v4320 = vrot.slane %v4210, 3
        %v4321 = vrot.slane %v4211, 3
        %v4322 = vsel %vm2269, %v4320, %v4321
        %v4323 = vrot.slane %v4212, 3
        %v4324 = vsel %vm2269, %v4321, %v4323
        %v4325 = vrot.slane %v4213, 3
        %v4326 = vrot.slane %v4214, 3
        %v4327 = vsel %vm2269, %v4325, %v4326
        %v4328 = vrot.slane %v4215, 3
        %v4329 = vsel %vm2269, %v4326, %v4328
        %v4330 = vrot.slane %v4216, 3
        %v4331 = vrot.slane %v4217, 3
        %v4332 = vsel %vm2269, %v4330, %v4331
        %v4333 = vrot.slane %v4218, 3
        %v4334 = vsel %vm2269, %v4331, %v4333
        %v4335 = vrot.slane %v4219, 3
        %v4336 = vrot.slane %v4220, 3
        %v4337 = vsel %vm2269, %v4335, %v4336
        %v4338 = vrot.slane %v4221, 3
        %v4339 = vsel %vm2269, %v4336, %v4338
        %v4340 = vrot.slane %v4222, 3
        %v4341 = vrot.slane %v4223, 3
        %v4342 = vsel %vm2269, %v4340, %v4341
        %v4343 = vrot.slane %v4224, 3
        %v4344 = vsel %vm2269, %v4341, %v4343
        %v4345 = vrot.slane %v4225, 3
        %v4346 = vrot.slane %v4226, 3
        %v4347 = vsel %vm2269, %v4345, %v4346
        %v4348 = vrot.slane %v4227, 3
        %v4349 = vsel %vm2269, %v4346, %v4348
        %v4350 = vrot.slane %v4228, 3
        %v4351 = vrot.slane %v4229, 3
        %v4352 = vsel %vm2269, %v4350, %v4351
        %v4353 = vrot.slane %v4230, 3
        %v4354 = vsel %vm2269, %v4351, %v4353
        %v4355 = vrot.slane %v4231, 3
        %v4356 = vrot.slane %v4232, 3
        %v4357 = vsel %vm2269, %v4355, %v4356
        %v4358 = vrot.slane %v4233, 3
        %v4359 = vsel %vm2269, %v4356, %v4358
        %v4360 = vrot.slane %v4234, 3
        %v4361 = vrot.slane %v4235, 3
        %v4362 = vsel %vm2269, %v4360, %v4361
        %v4363 = vrot.slane %v4236, 3
        %v4364 = vsel %vm2269, %v4361, %v4363
        %v4365 = vld [vmem:[%s1] sm:$0xff]
        %v4366 = vld [vmem:[%s1 + $0x8] sm:$0xff]
        %v4367 = vld [vmem:[%s1 + $0x10] sm:$0xff]
        %v4368 = vld [vmem:[%s1 + $0x18] sm:$0xff]
        %v4369 = vld [vmem:[%s1 + $0x20] sm:$0xff]
        %v4370 = vld [vmem:[%s1 + $0x28] sm:$0xff]
        %v4371 = vld [vmem:[%s1 + $0x30] sm:$0xff]
        %v4372 = vld [vmem:[%s1 + $0x38] sm:$0xff]
        %v4373 = vld [vmem:[%s1 + $0x40] sm:$0xff]
        %v4374 = vld [vmem:[%s1 + $0x48] sm:$0xf]
        %v4375 = vld [vmem:[%s2] sm:$0x1]
        %v4377 = vlaneseq
        %v4378 = vshrl.u32 %v4377, 7
        %v4379 = vsub.s32 0, %v4378
        %v4380 = vrot.slane %v4375, %v4379
        %vm4382 = vcmask 621568
        %v4383 = vsel %vm4382, %v4287, 0
        %v4385 = vsel %vm4382, %v4289, 0
        %v4387 = vsel %vm4382, %v4292, 0
        %v4389 = vsel %vm4382, %v4294, 0
        %v4391 = vsel %vm4382, %v4297, 0
        %v4393 = vsel %vm4382, %v4299, 0
        %v4395 = vsel %vm4382, %v4302, 0
        %v4397 = vsel %vm4382, %v4304, 0
        %v4399 = vsel %vm4382, %v4307, 0
        %v4401 = vsel %vm4382, %v4309, 0
        %v4403 = vsel %vm4382, %v4312, 0
        %v4405 = vsel %vm4382, %v4314, 0
        %v4407 = vsel %vm4382, %v4317, 0
        %v4409 = vsel %vm4382, %v4319, 0
        %v4411 = vsel %vm4382, %v4322, 0
        %v4413 = vsel %vm4382, %v4324, 0
        %v4415 = vsel %vm4382, %v4327, 0
        %v4417 = vsel %vm4382, %v4329, 0
        %v4419 = vsel %vm4382, %v4332, 0
        %v4421 = vsel %vm4382, %v4334, 0
        %v4423 = vsel %vm4382, %v4337, 0
        %v4425 = vsel %vm4382, %v4339, 0
        %v4427 = vsel %vm4382, %v4342, 0
        %v4429 = vsel %vm4382, %v4344, 0
        %v4431 = vsel %vm4382, %v4347, 0
        %v4433 = vsel %vm4382, %v4349, 0
        %v4435 = vsel %vm4382, %v4352, 0
        %v4437 = vsel %vm4382, %v4354, 0
        %v4439 = vsel %vm4382, %v4357, 0
        %v4441 = vsel %vm4382, %v4359, 0
        %v4443 = vsel %vm4382, %v4362, 0
        %v4445 = vsel %vm4382, %v4364, 0
        %vm4447 = vcmask 1043456
        %v4449 = vsel %vm4447, %v4374, 0
        %4451 = vmatprep.subr.mxu0 0.0
        %4452 = vmatpush1.msra.mxu0 %v4365
        %4453 = vmatprep.subr.mxu0 0.0
        %4454 = vmatpush1.msra.mxu0 %v4366
        %4455 = vmatprep.subr.mxu0 0.0
        %4456 = vmatpush1.msra.mxu0 %v4367
        %4457 = vmatprep.subr.mxu0 0.0
        %4458 = vmatpush1.msra.mxu0 %v4368
        %4459 = vmatprep.subr.mxu0 0.0
        %4460 = vmatpush1.msra.mxu0 %v4369
        %4461 = vmatprep.subr.mxu0 0.0
        %4462 = vmatpush1.msra.mxu0 %v4370
        %4463 = vmatprep.subr.mxu0 0.0
        %4464 = vmatpush1.msra.mxu0 %v4371
        %4465 = vmatprep.subr.mxu0 0.0
        %4466 = vmatpush1.msra.mxu0 %v4372
        %4467 = vmatprep.subr.mxu0 0.0
        %4468 = vmatpush1.msra.mxu0 %v4373
        %4469 = vmatprep.subr.mxu0 0.0
        %4470 = vmatpush1.msra.mxu0 %v4449
        %4471 = vmatprep.subr.mxu0 0.0
        %4472 = vmatpush1.msra.mxu0 0.0
        %4473 = vmatprep.subr.mxu0 0.0
        %4474 = vmatpush1.msra.mxu0 0.0
        %4475 = vmatprep.subr.mxu0 0.0
        %4476 = vmatpush1.msra.mxu0 0.0
        %4477 = vmatprep.subr.mxu0 0.0
        %4478 = vmatpush1.msra.mxu0 0.0
        %4479 = vmatprep.subr.mxu0 0.0
        %4480 = vmatpush1.msra.mxu0 0.0
        %4481 = vmatprep.subr.mxu0 0.0
        %4482 = vmatpush1.msra.mxu0 0.0
        %4483 = vmatprep.subr.mxu0 0.0
        %4484 = vmatpush1.msra.mxu0 0.0
        %4485 = vmatprep.subr.mxu0 0.0
        %4486 = vmatpush1.msra.mxu0 0.0
        %4487 = vmatprep.subr.mxu0 0.0
        %4488 = vmatpush1.msra.mxu0 0.0
        %4489 = vmatprep.subr.mxu0 0.0
        %4490 = vmatpush1.msra.mxu0 0.0
        %4491 = vmatprep.subr.mxu0 0.0
        %4492 = vmatpush1.msra.mxu0 0.0
        %4493 = vmatprep.subr.mxu0 0.0
        %4494 = vmatpush1.msra.mxu0 0.0
        %4495 = vmatprep.subr.mxu0 0.0
        %4496 = vmatpush1.msra.mxu0 0.0
        %4497 = vmatprep.subr.mxu0 0.0
        %4498 = vmatpush1.msra.mxu0 0.0
        %4499 = vmatprep.subr.mxu0 0.0
        %4500 = vmatpush1.msra.mxu0 0.0
        %4501 = vmatprep.subr.mxu0 0.0
        %4502 = vmatpush1.msra.mxu0 0.0
        %4503 = vmatprep.subr.mxu0 0.0
        %4504 = vmatpush1.msra.mxu0 0.0
        %4505 = vmatprep.subr.mxu0 0.0
        %4506 = vmatpush1.msra.mxu0 0.0
        %4507 = vmatprep.subr.mxu0 0.0
        %4508 = vmatpush1.msra.mxu0 0.0
        %4509 = vmatprep.subr.mxu0 0.0
        %4510 = vmatpush1.msra.mxu0 0.0
        %4511 = vmatprep.subr.mxu0 0.0
        %4512 = vmatpush1.msra.mxu0 0.0
        %4513 = vmatprep.subr.mxu0 0.0
        %4514 = vmatpush1.msra.mxu0 0.0
        %4515 = vmatprep.mubr.f32.mxu0 0.0
        %4516 = vmatmul.mubr.f32.gmra.mrb[0].mxu0 %v4383
        %v4517 = vpop.f32.mrb[0].mxu0
        %v4518 = vadd.f32 %v4380, %v4517
        %v4519 = vpop.f32.mrb[0].mxu0
        %4520 = vmatprep.mubr.f32.mxu0 0.0
        %4521 = vmatmul.mubr.f32.gmra.mrb[0].mxu0 %v4385
        %v4522 = vpop.f32.mrb[0].mxu0
        %v4523 = vadd.f32 %v4380, %v4522
        %v4524 = vpop.f32.mrb[0].mxu0
        %4525 = vmatprep.mubr.f32.mxu0 0.0
        %4526 = vmatmul.mubr.f32.gmra.mrb[0].mxu0 %v4387
        %v4527 = vpop.f32.mrb[0].mxu0
        %v4528 = vadd.f32 %v4380, %v4527
        %v4529 = vpop.f32.mrb[0].mxu0
        %4530 = vmatprep.mubr.f32.mxu0 0.0
        %4531 = vmatmul.mubr.f32.gmra.mrb[0].mxu0 %v4389
        %v4532 = vpop.f32.mrb[0].mxu0
        %v4533 = vadd.f32 %v4380, %v4532
        %v4534 = vpop.f32.mrb[0].mxu0
        %4535 = vmatprep.mubr.f32.mxu0 0.0
        %4536 = vmatmul.mubr.f32.gmra.mrb[0].mxu0 %v4391
        %v4537 = vpop.f32.mrb[0].mxu0
        %v4538 = vadd.f32 %v4380, %v4537
        %v4539 = vpop.f32.mrb[0].mxu0
        %4540 = vmatprep.mubr.f32.mxu0 0.0
        %4541 = vmatmul.mubr.f32.gmra.mrb[0].mxu0 %v4393
        %v4542 = vpop.f32.mrb[0].mxu0
        %v4543 = vadd.f32 %v4380, %v4542
        %v4544 = vpop.f32.mrb[0].mxu0
        %4545 = vmatprep.mubr.f32.mxu0 0.0
        %4546 = vmatmul.mubr.f32.gmra.mrb[0].mxu0 %v4395
        %v4547 = vpop.f32.mrb[0].mxu0
        %v4548 = vadd.f32 %v4380, %v4547
        %v4549 = vpop.f32.mrb[0].mxu0
        %4550 = vmatprep.mubr.f32.mxu0 0.0
        %4551 = vmatmul.mubr.f32.gmra.mrb[0].mxu0 %v4397
        %v4552 = vpop.f32.mrb[0].mxu0
        %v4553 = vadd.f32 %v4380, %v4552
        %v4554 = vpop.f32.mrb[0].mxu0
        %4555 = vmatprep.mubr.f32.mxu0 0.0
        %4556 = vmatmul.mubr.f32.gmra.mrb[0].mxu0 %v4399
        %v4557 = vpop.f32.mrb[0].mxu0
        %v4558 = vadd.f32 %v4380, %v4557
        %v4559 = vpop.f32.mrb[0].mxu0
        %4560 = vmatprep.mubr.f32.mxu0 0.0
        %4561 = vmatmul.mubr.f32.gmra.mrb[0].mxu0 %v4401
        %v4562 = vpop.f32.mrb[0].mxu0
        %v4563 = vadd.f32 %v4380, %v4562
        %v4564 = vpop.f32.mrb[0].mxu0
        %4565 = vmatprep.mubr.f32.mxu0 0.0
        %4566 = vmatmul.mubr.f32.gmra.mrb[0].mxu0 %v4403
        %v4567 = vpop.f32.mrb[0].mxu0
        %v4568 = vadd.f32 %v4380, %v4567
        %v4569 = vpop.f32.mrb[0].mxu0
        %4570 = vmatprep.mubr.f32.mxu0 0.0
        %4571 = vmatmul.mubr.f32.gmra.mrb[0].mxu0 %v4405
        %v4572 = vpop.f32.mrb[0].mxu0
        %v4573 = vadd.f32 %v4380, %v4572
        %v4574 = vpop.f32.mrb[0].mxu0
        %4575 = vmatprep.mubr.f32.mxu0 0.0
        %4576 = vmatmul.mubr.f32.gmra.mrb[0].mxu0 %v4407
        %v4577 = vpop.f32.mrb[0].mxu0
        %v4578 = vadd.f32 %v4380, %v4577
        %v4579 = vpop.f32.mrb[0].mxu0
        %4580 = vmatprep.mubr.f32.mxu0 0.0
        %4581 = vmatmul.mubr.f32.gmra.mrb[0].mxu0 %v4409
        %v4582 = vpop.f32.mrb[0].mxu0
        %v4583 = vadd.f32 %v4380, %v4582
        %v4584 = vpop.f32.mrb[0].mxu0
        %4585 = vmatprep.mubr.f32.mxu0 0.0
        %4586 = vmatmul.mubr.f32.gmra.mrb[0].mxu0 %v4411
        %v4587 = vpop.f32.mrb[0].mxu0
        %v4588 = vadd.f32 %v4380, %v4587
        %v4589 = vpop.f32.mrb[0].mxu0
        %4590 = vmatprep.mubr.f32.mxu0 0.0
        %4591 = vmatmul.mubr.f32.gmra.mrb[0].mxu0 %v4413
        %v4592 = vpop.f32.mrb[0].mxu0
        %v4593 = vadd.f32 %v4380, %v4592
        %v4594 = vpop.f32.mrb[0].mxu0
        %4595 = vmatprep.mubr.f32.mxu0 0.0
        %4596 = vmatmul.mubr.f32.gmra.mrb[0].mxu0 %v4415
        %v4597 = vpop.f32.mrb[0].mxu0
        %v4598 = vadd.f32 %v4380, %v4597
        %v4599 = vpop.f32.mrb[0].mxu0
        %4600 = vmatprep.mubr.f32.mxu0 0.0
        %4601 = vmatmul.mubr.f32.gmra.mrb[0].mxu0 %v4417
        %v4602 = vpop.f32.mrb[0].mxu0
        %v4603 = vadd.f32 %v4380, %v4602
        %v4604 = vpop.f32.mrb[0].mxu0
        %4605 = vmatprep.mubr.f32.mxu0 0.0
        %4606 = vmatmul.mubr.f32.gmra.mrb[0].mxu0 %v4419
        %v4607 = vpop.f32.mrb[0].mxu0
        %v4608 = vadd.f32 %v4380, %v4607
        %v4609 = vpop.f32.mrb[0].mxu0
        %4610 = vmatprep.mubr.f32.mxu0 0.0
        %4611 = vmatmul.mubr.f32.gmra.mrb[0].mxu0 %v4421
        %v4612 = vpop.f32.mrb[0].mxu0
        %v4613 = vadd.f32 %v4380, %v4612
        %v4614 = vpop.f32.mrb[0].mxu0
        %4615 = vmatprep.mubr.f32.mxu0 0.0
        %4616 = vmatmul.mubr.f32.gmra.mrb[0].mxu0 %v4423
        %v4617 = vpop.f32.mrb[0].mxu0
        %v4618 = vadd.f32 %v4380, %v4617
        %v4619 = vpop.f32.mrb[0].mxu0
        %4620 = vmatprep.mubr.f32.mxu0 0.0
        %4621 = vmatmul.mubr.f32.gmra.mrb[0].mxu0 %v4425
        %v4622 = vpop.f32.mrb[0].mxu0
        %v4623 = vadd.f32 %v4380, %v4622
        %v4624 = vpop.f32.mrb[0].mxu0
        %4625 = vmatprep.mubr.f32.mxu0 0.0
        %4626 = vmatmul.mubr.f32.gmra.mrb[0].mxu0 %v4427
        %v4627 = vpop.f32.mrb[0].mxu0
        %v4628 = vadd.f32 %v4380, %v4627
        %v4629 = vpop.f32.mrb[0].mxu0
        %4630 = vmatprep.mubr.f32.mxu0 0.0
        %4631 = vmatmul.mubr.f32.gmra.mrb[0].mxu0 %v4429
        %v4632 = vpop.f32.mrb[0].mxu0
        %v4633 = vadd.f32 %v4380, %v4632
        %v4634 = vpop.f32.mrb[0].mxu0
        %4635 = vmatprep.mubr.f32.mxu0 0.0
        %4636 = vmatmul.mubr.f32.gmra.mrb[0].mxu0 %v4431
        %v4637 = vpop.f32.mrb[0].mxu0
        %v4638 = vadd.f32 %v4380, %v4637
        %v4639 = vpop.f32.mrb[0].mxu0
        %4640 = vmatprep.mubr.f32.mxu0 0.0
        %4641 = vmatmul.mubr.f32.gmra.mrb[0].mxu0 %v4433
        %v4642 = vpop.f32.mrb[0].mxu0
        %v4643 = vadd.f32 %v4380, %v4642
        %v4644 = vpop.f32.mrb[0].mxu0
        %4645 = vmatprep.mubr.f32.mxu0 0.0
        %4646 = vmatmul.mubr.f32.gmra.mrb[0].mxu0 %v4435
        %v4647 = vpop.f32.mrb[0].mxu0
        %v4648 = vadd.f32 %v4380, %v4647
        %v4649 = vpop.f32.mrb[0].mxu0
        %4650 = vmatprep.mubr.f32.mxu0 0.0
        %4651 = vmatmul.mubr.f32.gmra.mrb[0].mxu0 %v4437
        %v4652 = vpop.f32.mrb[0].mxu0
        %v4653 = vadd.f32 %v4380, %v4652
        %v4654 = vpop.f32.mrb[0].mxu0
        %4655 = vmatprep.mubr.f32.mxu0 0.0
        %4656 = vmatmul.mubr.f32.gmra.mrb[0].mxu0 %v4439
        %v4657 = vpop.f32.mrb[0].mxu0
        %v4658 = vadd.f32 %v4380, %v4657
        %v4659 = vpop.f32.mrb[0].mxu0
        %4660 = vmatprep.mubr.f32.mxu0 0.0
        %4661 = vmatmul.mubr.f32.gmra.mrb[0].mxu0 %v4441
        %v4662 = vpop.f32.mrb[0].mxu0
        %v4663 = vadd.f32 %v4380, %v4662
        %v4664 = vpop.f32.mrb[0].mxu0
        %4665 = vmatprep.mubr.f32.mxu0 0.0
        %4666 = vmatmul.mubr.f32.gmra.mrb[0].mxu0 %v4443
        %v4667 = vpop.f32.mrb[0].mxu0
        %v4668 = vadd.f32 %v4380, %v4667
        %v4669 = vpop.f32.mrb[0].mxu0
        %4670 = vmatprep.mubr.f32.mxu0 0.0
        %4671 = vmatmul.mubr.f32.gmra.mrb[0].mxu0 %v4445
        %v4672 = vpop.f32.mrb[0].mxu0
        %v4673 = vadd.f32 %v4380, %v4672
        %v4674 = vpop.f32.mrb[0].mxu0
        %4675 = vdwg.mxu0
        %v4676 = vmax.f32 %v4518, 0.0
        %v4677 = vmax.f32 %v4523, 0.0
        %v4678 = vmax.f32 %v4528, 0.0
        %v4679 = vmax.f32 %v4533, 0.0
        %v4680 = vmax.f32 %v4538, 0.0
        %v4681 = vmax.f32 %v4543, 0.0
        %v4682 = vmax.f32 %v4548, 0.0
        %v4683 = vmax.f32 %v4553, 0.0
        %v4684 = vmax.f32 %v4558, 0.0
        %v4685 = vmax.f32 %v4563, 0.0
        %v4686 = vmax.f32 %v4568, 0.0
        %v4687 = vmax.f32 %v4573, 0.0
        %v4688 = vmax.f32 %v4578, 0.0
        %v4689 = vmax.f32 %v4583, 0.0
        %v4690 = vmax.f32 %v4588, 0.0
        %v4691 = vmax.f32 %v4593, 0.0
        %v4692 = vmax.f32 %v4598, 0.0
        %v4693 = vmax.f32 %v4603, 0.0
        %v4694 = vmax.f32 %v4608, 0.0
        %v4695 = vmax.f32 %v4613, 0.0
        %v4696 = vmax.f32 %v4618, 0.0
        %v4697 = vmax.f32 %v4623, 0.0
        %v4698 = vmax.f32 %v4628, 0.0
        %v4699 = vmax.f32 %v4633, 0.0
        %v4700 = vmax.f32 %v4638, 0.0
        %v4701 = vmax.f32 %v4643, 0.0
        %v4702 = vmax.f32 %v4648, 0.0
        %v4703 = vmax.f32 %v4653, 0.0
        %v4704 = vmax.f32 %v4658, 0.0
        %v4705 = vmax.f32 %v4663, 0.0
        %v4706 = vmax.f32 %v4668, 0.0
        %v4707 = vmax.f32 %v4673, 0.0
        %v4708 = vcombine.high %v305, %v305
        %v4710 = vunpack.c.l.s4 1983009808
        %v4711 = vunpack.c.0.s8 %v4710
        %v4712 = vlaneseq
        %v4713 = vshrl.u32 %v4712, 7
        %v4714 = vsub.s32 %v4711, %v4713
        %v4715 = vrot.slane %v305, %v4714
        %v4717 = vunpack.c.l.s4 1983009808
        %v4718 = vunpack.c.0.s8 %v4717
        %v4719 = vlaneseq
        %v4720 = vshrl.u32 %v4719, 7
        %v4721 = vsub.s32 %v4718, %v4720
        %v4722 = vrot.slane %v4708, %v4721
        %v4723 = vcombine.high %v4715, %v4715
        %v4724 = vcombine.high %v4722, %v4722
        %v4725 = vcombine.high %v306, %v306
        %v4727 = vunpack.c.l.s4 1983009808
        %v4728 = vunpack.c.0.s8 %v4727
        %v4729 = vlaneseq
        %v4730 = vshrl.u32 %v4729, 7
        %v4731 = vsub.s32 %v4728, %v4730
        %v4732 = vrot.slane %v306, %v4731
        %v4734 = vunpack.c.l.s4 1983009808
        %v4735 = vunpack.c.0.s8 %v4734
        %v4736 = vlaneseq
        %v4737 = vshrl.u32 %v4736, 7
        %v4738 = vsub.s32 %v4735, %v4737
        %v4739 = vrot.slane %v4725, %v4738
        %v4740 = vcombine.high %v4732, %v4732
        %v4741 = vcombine.high %v4739, %v4739
        %v4742 = vcombine.high %v307, %v307
        %v4744 = vunpack.c.l.s4 1983009808
        %v4745 = vunpack.c.0.s8 %v4744
        %v4746 = vlaneseq
        %v4747 = vshrl.u32 %v4746, 7
        %v4748 = vsub.s32 %v4745, %v4747
        %v4749 = vrot.slane %v307, %v4748
        %v4751 = vunpack.c.l.s4 1983009808
        %v4752 = vunpack.c.0.s8 %v4751
        %v4753 = vlaneseq
        %v4754 = vshrl.u32 %v4753, 7
        %v4755 = vsub.s32 %v4752, %v4754
        %v4756 = vrot.slane %v4742, %v4755
        %v4757 = vcombine.high %v4749, %v4749
        %v4758 = vcombine.high %v308, %v308
        %v4760 = vunpack.c.l.s4 1983009808
        %v4761 = vunpack.c.0.s8 %v4760
        %v4762 = vlaneseq
        %v4763 = vshrl.u32 %v4762, 7
        %v4764 = vsub.s32 %v4761, %v4763
        %v4765 = vrot.slane %v308, %v4764
        %v4767 = vunpack.c.l.s4 1983009808
        %v4768 = vunpack.c.0.s8 %v4767
        %v4769 = vlaneseq
        %v4770 = vshrl.u32 %v4769, 7
        %v4771 = vsub.s32 %v4768, %v4770
        %v4772 = vrot.slane %v4758, %v4771
        %v4773 = vcombine.high %v4765, %v4765
        %v4774 = vcombine.high %v4772, %v4772
        %v4775 = vcombine.high %v309, %v309
        %v4777 = vunpack.c.l.s4 1983009808
        %v4778 = vunpack.c.0.s8 %v4777
        %v4779 = vlaneseq
        %v4780 = vshrl.u32 %v4779, 7
        %v4781 = vsub.s32 %v4778, %v4780
        %v4782 = vrot.slane %v309, %v4781
        %v4784 = vunpack.c.l.s4 1983009808
        %v4785 = vunpack.c.0.s8 %v4784
        %v4786 = vlaneseq
        %v4787 = vshrl.u32 %v4786, 7
        %v4788 = vsub.s32 %v4785, %v4787
        %v4789 = vrot.slane %v4775, %v4788
        %v4790 = vcombine.high %v4782, %v4782
        %v4791 = vcombine.high %v4789, %v4789
        %v4792 = vcombine.high %v310, %v310
        %v4794 = vunpack.c.l.s4 1983009808
        %v4795 = vunpack.c.0.s8 %v4794
        %v4796 = vlaneseq
        %v4797 = vshrl.u32 %v4796, 7
        %v4798 = vsub.s32 %v4795, %v4797
        %v4799 = vrot.slane %v310, %v4798
        %v4801 = vunpack.c.l.s4 1983009808
        %v4802 = vunpack.c.0.s8 %v4801
        %v4803 = vlaneseq
        %v4804 = vshrl.u32 %v4803, 7
        %v4805 = vsub.s32 %v4802, %v4804
        %v4806 = vrot.slane %v4792, %v4805
        %v4807 = vcombine.high %v4799, %v4799
        %v4808 = vcombine.high %v311, %v311
        %v4810 = vunpack.c.l.s4 1983009808
        %v4811 = vunpack.c.0.s8 %v4810
        %v4812 = vlaneseq
        %v4813 = vshrl.u32 %v4812, 7
        %v4814 = vsub.s32 %v4811, %v4813
        %v4815 = vrot.slane %v311, %v4814
        %v4817 = vunpack.c.l.s4 1983009808
        %v4818 = vunpack.c.0.s8 %v4817
        %v4819 = vlaneseq
        %v4820 = vshrl.u32 %v4819, 7
        %v4821 = vsub.s32 %v4818, %v4820
        %v4822 = vrot.slane %v4808, %v4821
        %v4823 = vcombine.high %v4815, %v4815
        %v4824 = vcombine.high %v4822, %v4822
        %v4825 = vcombine.high %v312, %v312
        %v4827 = vunpack.c.l.s4 1983009808
        %v4828 = vunpack.c.0.s8 %v4827
        %v4829 = vlaneseq
        %v4830 = vshrl.u32 %v4829, 7
        %v4831 = vsub.s32 %v4828, %v4830
        %v4832 = vrot.slane %v312, %v4831
        %v4834 = vunpack.c.l.s4 1983009808
        %v4835 = vunpack.c.0.s8 %v4834
        %v4836 = vlaneseq
        %v4837 = vshrl.u32 %v4836, 7
        %v4838 = vsub.s32 %v4835, %v4837
        %v4839 = vrot.slane %v4825, %v4838
        %v4840 = vcombine.high %v4832, %v4832
        %v4841 = vcombine.high %v4839, %v4839
        %v4842 = vcombine.high %v313, %v313
        %v4844 = vunpack.c.l.s4 1983009808
        %v4845 = vunpack.c.0.s8 %v4844
        %v4846 = vlaneseq
        %v4847 = vshrl.u32 %v4846, 7
        %v4848 = vsub.s32 %v4845, %v4847
        %v4849 = vrot.slane %v313, %v4848
        %v4851 = vunpack.c.l.s4 1983009808
        %v4852 = vunpack.c.0.s8 %v4851
        %v4853 = vlaneseq
        %v4854 = vshrl.u32 %v4853, 7
        %v4855 = vsub.s32 %v4852, %v4854
        %v4856 = vrot.slane %v4842, %v4855
        %v4857 = vcombine.high %v4849, %v4849
        %v4858 = vcombine.high %v314, %v314
        %v4860 = vunpack.c.l.s4 1983009808
        %v4861 = vunpack.c.0.s8 %v4860
        %v4862 = vlaneseq
        %v4863 = vshrl.u32 %v4862, 7
        %v4864 = vsub.s32 %v4861, %v4863
        %v4865 = vrot.slane %v314, %v4864
        %v4867 = vunpack.c.l.s4 1983009808
        %v4868 = vunpack.c.0.s8 %v4867
        %v4869 = vlaneseq
        %v4870 = vshrl.u32 %v4869, 7
        %v4871 = vsub.s32 %v4868, %v4870
        %v4872 = vrot.slane %v4858, %v4871
        %v4873 = vcombine.high %v4865, %v4865
        %v4874 = vcombine.high %v4872, %v4872
        %v4875 = vcombine.high %v315, %v315
        %v4877 = vunpack.c.l.s4 1983009808
        %v4878 = vunpack.c.0.s8 %v4877
        %v4879 = vlaneseq
        %v4880 = vshrl.u32 %v4879, 7
        %v4881 = vsub.s32 %v4878, %v4880
        %v4882 = vrot.slane %v315, %v4881
        %v4884 = vunpack.c.l.s4 1983009808
        %v4885 = vunpack.c.0.s8 %v4884
        %v4886 = vlaneseq
        %v4887 = vshrl.u32 %v4886, 7
        %v4888 = vsub.s32 %v4885, %v4887
        %v4889 = vrot.slane %v4875, %v4888
        %v4890 = vcombine.high %v4882, %v4882
        %v4891 = vcombine.high %v4889, %v4889
        %v4892 = vcombine.high %v316, %v316
        %v4894 = vunpack.c.l.s4 1983009808
        %v4895 = vunpack.c.0.s8 %v4894
        %v4896 = vlaneseq
        %v4897 = vshrl.u32 %v4896, 7
        %v4898 = vsub.s32 %v4895, %v4897
        %v4899 = vrot.slane %v316, %v4898
        %v4901 = vunpack.c.l.s4 1983009808
        %v4902 = vunpack.c.0.s8 %v4901
        %v4903 = vlaneseq
        %v4904 = vshrl.u32 %v4903, 7
        %v4905 = vsub.s32 %v4902, %v4904
        %v4906 = vrot.slane %v4892, %v4905
        %v4907 = vcombine.high %v4899, %v4899
        %v4908 = vcombine.high %v317, %v317
        %v4910 = vunpack.c.l.s4 1983009808
        %v4911 = vunpack.c.0.s8 %v4910
        %v4912 = vlaneseq
        %v4913 = vshrl.u32 %v4912, 7
        %v4914 = vsub.s32 %v4911, %v4913
        %v4915 = vrot.slane %v317, %v4914
        %v4917 = vunpack.c.l.s4 1983009808
        %v4918 = vunpack.c.0.s8 %v4917
        %v4919 = vlaneseq
        %v4920 = vshrl.u32 %v4919, 7
        %v4921 = vsub.s32 %v4918, %v4920
        %v4922 = vrot.slane %v4908, %v4921
        %v4923 = vcombine.high %v4915, %v4915
        %v4924 = vcombine.high %v4922, %v4922
        %v4925 = vcombine.high %v318, %v318
        %v4927 = vunpack.c.l.s4 1983009808
        %v4928 = vunpack.c.0.s8 %v4927
        %v4929 = vlaneseq
        %v4930 = vshrl.u32 %v4929, 7
        %v4931 = vsub.s32 %v4928, %v4930
        %v4932 = vrot.slane %v318, %v4931
        %v4934 = vunpack.c.l.s4 1983009808
        %v4935 = vunpack.c.0.s8 %v4934
        %v4936 = vlaneseq
        %v4937 = vshrl.u32 %v4936, 7
        %v4938 = vsub.s32 %v4935, %v4937
        %v4939 = vrot.slane %v4925, %v4938
        %v4940 = vcombine.high %v4932, %v4932
        %v4941 = vcombine.high %v4939, %v4939
        %v4942 = vcombine.high %v319, %v319
        %v4944 = vunpack.c.l.s4 1983009808
        %v4945 = vunpack.c.0.s8 %v4944
        %v4946 = vlaneseq
        %v4947 = vshrl.u32 %v4946, 7
        %v4948 = vsub.s32 %v4945, %v4947
        %v4949 = vrot.slane %v319, %v4948
        %v4951 = vunpack.c.l.s4 1983009808
        %v4952 = vunpack.c.0.s8 %v4951
        %v4953 = vlaneseq
        %v4954 = vshrl.u32 %v4953, 7
        %v4955 = vsub.s32 %v4952, %v4954
        %v4956 = vrot.slane %v4942, %v4955
        %v4957 = vcombine.high %v4949, %v4949
        %v4958 = vcombine.high %v320, %v320
        %v4960 = vunpack.c.l.s4 1983009808
        %v4961 = vunpack.c.0.s8 %v4960
        %v4962 = vlaneseq
        %v4963 = vshrl.u32 %v4962, 7
        %v4964 = vsub.s32 %v4961, %v4963
        %v4965 = vrot.slane %v320, %v4964
        %v4967 = vunpack.c.l.s4 1983009808
        %v4968 = vunpack.c.0.s8 %v4967
        %v4969 = vlaneseq
        %v4970 = vshrl.u32 %v4969, 7
        %v4971 = vsub.s32 %v4968, %v4970
        %v4972 = vrot.slane %v4958, %v4971
        %v4973 = vcombine.high %v4965, %v4965
        %v4974 = vcombine.high %v4972, %v4972
        %v4975 = vcombine.high %v321, %v321
        %v4977 = vunpack.c.l.s4 1983009808
        %v4978 = vunpack.c.0.s8 %v4977
        %v4979 = vlaneseq
        %v4980 = vshrl.u32 %v4979, 7
        %v4981 = vsub.s32 %v4978, %v4980
        %v4982 = vrot.slane %v321, %v4981
        %v4984 = vunpack.c.l.s4 1983009808
        %v4985 = vunpack.c.0.s8 %v4984
        %v4986 = vlaneseq
        %v4987 = vshrl.u32 %v4986, 7
        %v4988 = vsub.s32 %v4985, %v4987
        %v4989 = vrot.slane %v4975, %v4988
        %v4990 = vcombine.high %v4982, %v4982
        %v4991 = vcombine.high %v4989, %v4989
        %v4992 = vcombine.high %v322, %v322
        %v4994 = vunpack.c.l.s4 1983009808
        %v4995 = vunpack.c.0.s8 %v4994
        %v4996 = vlaneseq
        %v4997 = vshrl.u32 %v4996, 7
        %v4998 = vsub.s32 %v4995, %v4997
        %v4999 = vrot.slane %v322, %v4998
        %v5001 = vunpack.c.l.s4 1983009808
        %v5002 = vunpack.c.0.s8 %v5001
        %v5003 = vlaneseq
        %v5004 = vshrl.u32 %v5003, 7
        %v5005 = vsub.s32 %v5002, %v5004
        %v5006 = vrot.slane %v4992, %v5005
        %v5007 = vcombine.high %v4999, %v4999
        %v5008 = vcombine.high %v323, %v323
        %v5010 = vunpack.c.l.s4 1983009808
        %v5011 = vunpack.c.0.s8 %v5010
        %v5012 = vlaneseq
        %v5013 = vshrl.u32 %v5012, 7
        %v5014 = vsub.s32 %v5011, %v5013
        %v5015 = vrot.slane %v323, %v5014
        %v5017 = vunpack.c.l.s4 1983009808
        %v5018 = vunpack.c.0.s8 %v5017
        %v5019 = vlaneseq
        %v5020 = vshrl.u32 %v5019, 7
        %v5021 = vsub.s32 %v5018, %v5020
        %v5022 = vrot.slane %v5008, %v5021
        %v5023 = vcombine.high %v5015, %v5015
        %v5024 = vcombine.high %v5022, %v5022
        %v5025 = vcombine.high %v324, %v324
        %v5027 = vunpack.c.l.s4 1983009808
        %v5028 = vunpack.c.0.s8 %v5027
        %v5029 = vlaneseq
        %v5030 = vshrl.u32 %v5029, 7
        %v5031 = vsub.s32 %v5028, %v5030
        %v5032 = vrot.slane %v324, %v5031
        %v5034 = vunpack.c.l.s4 1983009808
        %v5035 = vunpack.c.0.s8 %v5034
        %v5036 = vlaneseq
        %v5037 = vshrl.u32 %v5036, 7
        %v5038 = vsub.s32 %v5035, %v5037
        %v5039 = vrot.slane %v5025, %v5038
        %v5040 = vcombine.high %v5032, %v5032
        %v5041 = vcombine.high %v5039, %v5039
        %v5042 = vcombine.high %v325, %v325
        %v5044 = vunpack.c.l.s4 1983009808
        %v5045 = vunpack.c.0.s8 %v5044
        %v5046 = vlaneseq
        %v5047 = vshrl.u32 %v5046, 7
        %v5048 = vsub.s32 %v5045, %v5047
        %v5049 = vrot.slane %v325, %v5048
        %v5051 = vunpack.c.l.s4 1983009808
        %v5052 = vunpack.c.0.s8 %v5051
        %v5053 = vlaneseq
        %v5054 = vshrl.u32 %v5053, 7
        %v5055 = vsub.s32 %v5052, %v5054
        %v5056 = vrot.slane %v5042, %v5055
        %v5057 = vcombine.high %v5049, %v5049
        %v5058 = vcombine.high %v326, %v326
        %v5060 = vunpack.c.l.s4 1983009808
        %v5061 = vunpack.c.0.s8 %v5060
        %v5062 = vlaneseq
        %v5063 = vshrl.u32 %v5062, 7
        %v5064 = vsub.s32 %v5061, %v5063
        %v5065 = vrot.slane %v326, %v5064
        %v5067 = vunpack.c.l.s4 1983009808
        %v5068 = vunpack.c.0.s8 %v5067
        %v5069 = vlaneseq
        %v5070 = vshrl.u32 %v5069, 7
        %v5071 = vsub.s32 %v5068, %v5070
        %v5072 = vrot.slane %v5058, %v5071
        %v5073 = vcombine.high %v5065, %v5065
        %v5074 = vcombine.high %v5072, %v5072
        %v5075 = vcombine.high %v327, %v327
        %v5077 = vunpack.c.l.s4 1983009808
        %v5078 = vunpack.c.0.s8 %v5077
        %v5079 = vlaneseq
        %v5080 = vshrl.u32 %v5079, 7
        %v5081 = vsub.s32 %v5078, %v5080
        %v5082 = vrot.slane %v327, %v5081
        %v5084 = vunpack.c.l.s4 1983009808
        %v5085 = vunpack.c.0.s8 %v5084
        %v5086 = vlaneseq
        %v5087 = vshrl.u32 %v5086, 7
        %v5088 = vsub.s32 %v5085, %v5087
        %v5089 = vrot.slane %v5075, %v5088
        %v5090 = vcombine.high %v5082, %v5082
        %v5091 = vcombine.high %v5089, %v5089
        %v5092 = vcombine.high %v328, %v328
        %v5094 = vunpack.c.l.s4 1983009808
        %v5095 = vunpack.c.0.s8 %v5094
        %v5096 = vlaneseq
        %v5097 = vshrl.u32 %v5096, 7
        %v5098 = vsub.s32 %v5095, %v5097
        %v5099 = vrot.slane %v328, %v5098
        %v5101 = vunpack.c.l.s4 1983009808
        %v5102 = vunpack.c.0.s8 %v5101
        %v5103 = vlaneseq
        %v5104 = vshrl.u32 %v5103, 7
        %v5105 = vsub.s32 %v5102, %v5104
        %v5106 = vrot.slane %v5092, %v5105
        %v5107 = vcombine.high %v5099, %v5099
        %v5108 = vcombine.high %v329, %v329
        %v5110 = vunpack.c.l.s4 1983009808
        %v5111 = vunpack.c.0.s8 %v5110
        %v5112 = vlaneseq
        %v5113 = vshrl.u32 %v5112, 7
        %v5114 = vsub.s32 %v5111, %v5113
        %v5115 = vrot.slane %v329, %v5114
        %v5117 = vunpack.c.l.s4 1983009808
        %v5118 = vunpack.c.0.s8 %v5117
        %v5119 = vlaneseq
        %v5120 = vshrl.u32 %v5119, 7
        %v5121 = vsub.s32 %v5118, %v5120
        %v5122 = vrot.slane %v5108, %v5121
        %v5123 = vcombine.high %v5115, %v5115
        %v5124 = vcombine.high %v5122, %v5122
        %v5125 = vcombine.high %v330, %v330
        %v5127 = vunpack.c.l.s4 1983009808
        %v5128 = vunpack.c.0.s8 %v5127
        %v5129 = vlaneseq
        %v5130 = vshrl.u32 %v5129, 7
        %v5131 = vsub.s32 %v5128, %v5130
        %v5132 = vrot.slane %v330, %v5131
        %v5134 = vunpack.c.l.s4 1983009808
        %v5135 = vunpack.c.0.s8 %v5134
        %v5136 = vlaneseq
        %v5137 = vshrl.u32 %v5136, 7
        %v5138 = vsub.s32 %v5135, %v5137
        %v5139 = vrot.slane %v5125, %v5138
        %v5140 = vcombine.high %v5132, %v5132
        %v5141 = vcombine.high %v5139, %v5139
        %v5142 = vcombine.high %v331, %v331
        %v5144 = vunpack.c.l.s4 1983009808
        %v5145 = vunpack.c.0.s8 %v5144
        %v5146 = vlaneseq
        %v5147 = vshrl.u32 %v5146, 7
        %v5148 = vsub.s32 %v5145, %v5147
        %v5149 = vrot.slane %v331, %v5148
        %v5151 = vunpack.c.l.s4 1983009808
        %v5152 = vunpack.c.0.s8 %v5151
        %v5153 = vlaneseq
        %v5154 = vshrl.u32 %v5153, 7
        %v5155 = vsub.s32 %v5152, %v5154
        %v5156 = vrot.slane %v5142, %v5155
        %v5157 = vcombine.high %v5149, %v5149
        %v5158 = vcombine.high %v332, %v332
        %v5160 = vunpack.c.l.s4 1983009808
        %v5161 = vunpack.c.0.s8 %v5160
        %v5162 = vlaneseq
        %v5163 = vshrl.u32 %v5162, 7
        %v5164 = vsub.s32 %v5161, %v5163
        %v5165 = vrot.slane %v332, %v5164
        %v5167 = vunpack.c.l.s4 1983009808
        %v5168 = vunpack.c.0.s8 %v5167
        %v5169 = vlaneseq
        %v5170 = vshrl.u32 %v5169, 7
        %v5171 = vsub.s32 %v5168, %v5170
        %v5172 = vrot.slane %v5158, %v5171
        %v5173 = vcombine.high %v5165, %v5165
        %v5174 = vcombine.high %v5172, %v5172
        %v5175 = vcombine.high %v333, %v333
        %v5177 = vunpack.c.l.s4 1983009808
        %v5178 = vunpack.c.0.s8 %v5177
        %v5179 = vlaneseq
        %v5180 = vshrl.u32 %v5179, 7
        %v5181 = vsub.s32 %v5178, %v5180
        %v5182 = vrot.slane %v333, %v5181
        %v5184 = vunpack.c.l.s4 1983009808
        %v5185 = vunpack.c.0.s8 %v5184
        %v5186 = vlaneseq
        %v5187 = vshrl.u32 %v5186, 7
        %v5188 = vsub.s32 %v5185, %v5187
        %v5189 = vrot.slane %v5175, %v5188
        %v5190 = vcombine.high %v5182, %v5182
        %v5191 = vcombine.high %v5189, %v5189
        %v5192 = vcombine.high %v334, %v334
        %v5194 = vunpack.c.l.s4 1983009808
        %v5195 = vunpack.c.0.s8 %v5194
        %v5196 = vlaneseq
        %v5197 = vshrl.u32 %v5196, 7
        %v5198 = vsub.s32 %v5195, %v5197
        %v5199 = vrot.slane %v334, %v5198
        %v5201 = vunpack.c.l.s4 1983009808
        %v5202 = vunpack.c.0.s8 %v5201
        %v5203 = vlaneseq
        %v5204 = vshrl.u32 %v5203, 7
        %v5205 = vsub.s32 %v5202, %v5204
        %v5206 = vrot.slane %v5192, %v5205
        %v5207 = vcombine.high %v5199, %v5199
        %v5208 = vcombine.high %v335, %v335
        %v5210 = vunpack.c.l.s4 1983009808
        %v5211 = vunpack.c.0.s8 %v5210
        %v5212 = vlaneseq
        %v5213 = vshrl.u32 %v5212, 7
        %v5214 = vsub.s32 %v5211, %v5213
        %v5215 = vrot.slane %v335, %v5214
        %v5217 = vunpack.c.l.s4 1983009808
        %v5218 = vunpack.c.0.s8 %v5217
        %v5219 = vlaneseq
        %v5220 = vshrl.u32 %v5219, 7
        %v5221 = vsub.s32 %v5218, %v5220
        %v5222 = vrot.slane %v5208, %v5221
        %v5223 = vcombine.high %v5215, %v5215
        %v5224 = vcombine.high %v5222, %v5222
        %v5225 = vcombine.high %v336, %v336
        %v5227 = vunpack.c.l.s4 1983009808
        %v5228 = vunpack.c.0.s8 %v5227
        %v5229 = vlaneseq
        %v5230 = vshrl.u32 %v5229, 7
        %v5231 = vsub.s32 %v5228, %v5230
        %v5232 = vrot.slane %v336, %v5231
        %v5234 = vunpack.c.l.s4 1983009808
        %v5235 = vunpack.c.0.s8 %v5234
        %v5236 = vlaneseq
        %v5237 = vshrl.u32 %v5236, 7
        %v5238 = vsub.s32 %v5235, %v5237
        %v5239 = vrot.slane %v5225, %v5238
        %v5240 = vcombine.high %v5232, %v5232
        %v5241 = vcombine.high %v5239, %v5239
        %v5242 = vcombine.high %v337, %v337
        %v5244 = vunpack.c.l.s4 1983009808
        %v5245 = vunpack.c.0.s8 %v5244
        %v5246 = vlaneseq
        %v5247 = vshrl.u32 %v5246, 7
        %v5248 = vsub.s32 %v5245, %v5247
        %v5249 = vrot.slane %v337, %v5248
        %v5251 = vunpack.c.l.s4 1983009808
        %v5252 = vunpack.c.0.s8 %v5251
        %v5253 = vlaneseq
        %v5254 = vshrl.u32 %v5253, 7
        %v5255 = vsub.s32 %v5252, %v5254
        %v5256 = vrot.slane %v5242, %v5255
        %v5257 = vcombine.high %v5249, %v5249
        %v5258 = vcombine.high %v338, %v338
        %v5260 = vunpack.c.l.s4 1983009808
        %v5261 = vunpack.c.0.s8 %v5260
        %v5262 = vlaneseq
        %v5263 = vshrl.u32 %v5262, 7
        %v5264 = vsub.s32 %v5261, %v5263
        %v5265 = vrot.slane %v338, %v5264
        %v5267 = vunpack.c.l.s4 1983009808
        %v5268 = vunpack.c.0.s8 %v5267
        %v5269 = vlaneseq
        %v5270 = vshrl.u32 %v5269, 7
        %v5271 = vsub.s32 %v5268, %v5270
        %v5272 = vrot.slane %v5258, %v5271
        %v5273 = vcombine.high %v5265, %v5265
        %v5274 = vcombine.high %v5272, %v5272
        %v5275 = vcombine.high %v339, %v339
        %v5277 = vunpack.c.l.s4 1983009808
        %v5278 = vunpack.c.0.s8 %v5277
        %v5279 = vlaneseq
        %v5280 = vshrl.u32 %v5279, 7
        %v5281 = vsub.s32 %v5278, %v5280
        %v5282 = vrot.slane %v339, %v5281
        %v5284 = vunpack.c.l.s4 1983009808
        %v5285 = vunpack.c.0.s8 %v5284
        %v5286 = vlaneseq
        %v5287 = vshrl.u32 %v5286, 7
        %v5288 = vsub.s32 %v5285, %v5287
        %v5289 = vrot.slane %v5275, %v5288
        %v5290 = vcombine.high %v5282, %v5282
        %v5291 = vcombine.high %v5289, %v5289
        %v5292 = vcombine.high %v340, %v340
        %v5294 = vunpack.c.l.s4 1983009808
        %v5295 = vunpack.c.0.s8 %v5294
        %v5296 = vlaneseq
        %v5297 = vshrl.u32 %v5296, 7
        %v5298 = vsub.s32 %v5295, %v5297
        %v5299 = vrot.slane %v340, %v5298
        %v5301 = vunpack.c.l.s4 1983009808
        %v5302 = vunpack.c.0.s8 %v5301
        %v5303 = vlaneseq
        %v5304 = vshrl.u32 %v5303, 7
        %v5305 = vsub.s32 %v5302, %v5304
        %v5306 = vrot.slane %v5292, %v5305
        %v5307 = vcombine.high %v5299, %v5299
        %v5308 = vcombine.high %v341, %v341
        %v5310 = vunpack.c.l.s4 1983009808
        %v5311 = vunpack.c.0.s8 %v5310
        %v5312 = vlaneseq
        %v5313 = vshrl.u32 %v5312, 7
        %v5314 = vsub.s32 %v5311, %v5313
        %v5315 = vrot.slane %v341, %v5314
        %v5317 = vunpack.c.l.s4 1983009808
        %v5318 = vunpack.c.0.s8 %v5317
        %v5319 = vlaneseq
        %v5320 = vshrl.u32 %v5319, 7
        %v5321 = vsub.s32 %v5318, %v5320
        %v5322 = vrot.slane %v5308, %v5321
        %v5323 = vcombine.high %v5315, %v5315
        %v5324 = vcombine.high %v5322, %v5322
        %v5325 = vcombine.high %v342, %v342
        %v5327 = vunpack.c.l.s4 1983009808
        %v5328 = vunpack.c.0.s8 %v5327
        %v5329 = vlaneseq
        %v5330 = vshrl.u32 %v5329, 7
        %v5331 = vsub.s32 %v5328, %v5330
        %v5332 = vrot.slane %v342, %v5331
        %v5334 = vunpack.c.l.s4 1983009808
        %v5335 = vunpack.c.0.s8 %v5334
        %v5336 = vlaneseq
        %v5337 = vshrl.u32 %v5336, 7
        %v5338 = vsub.s32 %v5335, %v5337
        %v5339 = vrot.slane %v5325, %v5338
        %v5340 = vcombine.high %v5332, %v5332
        %v5341 = vcombine.high %v5339, %v5339
        %v5342 = vcombine.high %v343, %v343
        %v5344 = vunpack.c.l.s4 1983009808
        %v5345 = vunpack.c.0.s8 %v5344
        %v5346 = vlaneseq
        %v5347 = vshrl.u32 %v5346, 7
        %v5348 = vsub.s32 %v5345, %v5347
        %v5349 = vrot.slane %v343, %v5348
        %v5351 = vunpack.c.l.s4 1983009808
        %v5352 = vunpack.c.0.s8 %v5351
        %v5353 = vlaneseq
        %v5354 = vshrl.u32 %v5353, 7
        %v5355 = vsub.s32 %v5352, %v5354
        %v5356 = vrot.slane %v5342, %v5355
        %v5357 = vcombine.high %v5349, %v5349
        %v5358 = vcombine.high %v344, %v344
        %v5360 = vunpack.c.l.s4 1983009808
        %v5361 = vunpack.c.0.s8 %v5360
        %v5362 = vlaneseq
        %v5363 = vshrl.u32 %v5362, 7
        %v5364 = vsub.s32 %v5361, %v5363
        %v5365 = vrot.slane %v344, %v5364
        %v5367 = vunpack.c.l.s4 1983009808
        %v5368 = vunpack.c.0.s8 %v5367
        %v5369 = vlaneseq
        %v5370 = vshrl.u32 %v5369, 7
        %v5371 = vsub.s32 %v5368, %v5370
        %v5372 = vrot.slane %v5358, %v5371
        %v5373 = vcombine.high %v5365, %v5365
        %v5374 = vcombine.high %v5372, %v5372
        %v5375 = vcombine.high %v345, %v345
        %v5377 = vunpack.c.l.s4 1983009808
        %v5378 = vunpack.c.0.s8 %v5377
        %v5379 = vlaneseq
        %v5380 = vshrl.u32 %v5379, 7
        %v5381 = vsub.s32 %v5378, %v5380
        %v5382 = vrot.slane %v345, %v5381
        %v5384 = vunpack.c.l.s4 1983009808
        %v5385 = vunpack.c.0.s8 %v5384
        %v5386 = vlaneseq
        %v5387 = vshrl.u32 %v5386, 7
        %v5388 = vsub.s32 %v5385, %v5387
        %v5389 = vrot.slane %v5375, %v5388
        %v5390 = vcombine.high %v5382, %v5382
        %v5391 = vcombine.high %v5389, %v5389
        %v5392 = vcombine.high %v346, %v346
        %v5394 = vunpack.c.l.s4 1983009808
        %v5395 = vunpack.c.0.s8 %v5394
        %v5396 = vlaneseq
        %v5397 = vshrl.u32 %v5396, 7
        %v5398 = vsub.s32 %v5395, %v5397
        %v5399 = vrot.slane %v346, %v5398
        %v5401 = vunpack.c.l.s4 1983009808
        %v5402 = vunpack.c.0.s8 %v5401
        %v5403 = vlaneseq
        %v5404 = vshrl.u32 %v5403, 7
        %v5405 = vsub.s32 %v5402, %v5404
        %v5406 = vrot.slane %v5392, %v5405
        %v5407 = vcombine.high %v5399, %v5399
        %v5408 = vcombine.high %v347, %v347
        %v5410 = vunpack.c.l.s4 1983009808
        %v5411 = vunpack.c.0.s8 %v5410
        %v5412 = vlaneseq
        %v5413 = vshrl.u32 %v5412, 7
        %v5414 = vsub.s32 %v5411, %v5413
        %v5415 = vrot.slane %v347, %v5414
        %v5417 = vunpack.c.l.s4 1983009808
        %v5418 = vunpack.c.0.s8 %v5417
        %v5419 = vlaneseq
        %v5420 = vshrl.u32 %v5419, 7
        %v5421 = vsub.s32 %v5418, %v5420
        %v5422 = vrot.slane %v5408, %v5421
        %v5423 = vcombine.high %v5415, %v5415
        %v5424 = vcombine.high %v5422, %v5422
        %v5425 = vcombine.high %v348, %v348
        %v5427 = vunpack.c.l.s4 1983009808
        %v5428 = vunpack.c.0.s8 %v5427
        %v5429 = vlaneseq
        %v5430 = vshrl.u32 %v5429, 7
        %v5431 = vsub.s32 %v5428, %v5430
        %v5432 = vrot.slane %v348, %v5431
        %v5434 = vunpack.c.l.s4 1983009808
        %v5435 = vunpack.c.0.s8 %v5434
        %v5436 = vlaneseq
        %v5437 = vshrl.u32 %v5436, 7
        %v5438 = vsub.s32 %v5435, %v5437
        %v5439 = vrot.slane %v5425, %v5438
        %v5440 = vcombine.high %v5432, %v5432
        %v5441 = vcombine.high %v5439, %v5439
        %v5442 = vcombine.high %v349, %v349
        %v5444 = vunpack.c.l.s4 1983009808
        %v5445 = vunpack.c.0.s8 %v5444
        %v5446 = vlaneseq
        %v5447 = vshrl.u32 %v5446, 7
        %v5448 = vsub.s32 %v5445, %v5447
        %v5449 = vrot.slane %v349, %v5448
        %v5451 = vunpack.c.l.s4 1983009808
        %v5452 = vunpack.c.0.s8 %v5451
        %v5453 = vlaneseq
        %v5454 = vshrl.u32 %v5453, 7
        %v5455 = vsub.s32 %v5452, %v5454
        %v5456 = vrot.slane %v5442, %v5455
        %v5457 = vcombine.high %v5449, %v5449
        %v5458 = vcombine.high %v350, %v350
        %v5460 = vunpack.c.l.s4 1983009808
        %v5461 = vunpack.c.0.s8 %v5460
        %v5462 = vlaneseq
        %v5463 = vshrl.u32 %v5462, 7
        %v5464 = vsub.s32 %v5461, %v5463
        %v5465 = vrot.slane %v350, %v5464
        %v5467 = vunpack.c.l.s4 1983009808
        %v5468 = vunpack.c.0.s8 %v5467
        %v5469 = vlaneseq
        %v5470 = vshrl.u32 %v5469, 7
        %v5471 = vsub.s32 %v5468, %v5470
        %v5472 = vrot.slane %v5458, %v5471
        %v5473 = vcombine.high %v5465, %v5465
        %v5474 = vcombine.high %v5472, %v5472
        %v5475 = vcombine.high %v351, %v351
        %v5477 = vunpack.c.l.s4 1983009808
        %v5478 = vunpack.c.0.s8 %v5477
        %v5479 = vlaneseq
        %v5480 = vshrl.u32 %v5479, 7
        %v5481 = vsub.s32 %v5478, %v5480
        %v5482 = vrot.slane %v351, %v5481
        %v5484 = vunpack.c.l.s4 1983009808
        %v5485 = vunpack.c.0.s8 %v5484
        %v5486 = vlaneseq
        %v5487 = vshrl.u32 %v5486, 7
        %v5488 = vsub.s32 %v5485, %v5487
        %v5489 = vrot.slane %v5475, %v5488
        %v5490 = vcombine.high %v5482, %v5482
        %v5491 = vcombine.high %v5489, %v5489
        %v5492 = vcombine.high %v352, %v352
        %v5494 = vunpack.c.l.s4 1983009808
        %v5495 = vunpack.c.0.s8 %v5494
        %v5496 = vlaneseq
        %v5497 = vshrl.u32 %v5496, 7
        %v5498 = vsub.s32 %v5495, %v5497
        %v5499 = vrot.slane %v352, %v5498
        %v5501 = vunpack.c.l.s4 1983009808
        %v5502 = vunpack.c.0.s8 %v5501
        %v5503 = vlaneseq
        %v5504 = vshrl.u32 %v5503, 7
        %v5505 = vsub.s32 %v5502, %v5504
        %v5506 = vrot.slane %v5492, %v5505
        %v5507 = vcombine.high %v5499, %v5499
        %v5508 = vcombine.high %v353, %v353
        %v5510 = vunpack.c.l.s4 1983009808
        %v5511 = vunpack.c.0.s8 %v5510
        %v5512 = vlaneseq
        %v5513 = vshrl.u32 %v5512, 7
        %v5514 = vsub.s32 %v5511, %v5513
        %v5515 = vrot.slane %v353, %v5514
        %v5517 = vunpack.c.l.s4 1983009808
        %v5518 = vunpack.c.0.s8 %v5517
        %v5519 = vlaneseq
        %v5520 = vshrl.u32 %v5519, 7
        %v5521 = vsub.s32 %v5518, %v5520
        %v5522 = vrot.slane %v5508, %v5521
        %v5523 = vcombine.high %v5515, %v5515
        %v5524 = vcombine.high %v5522, %v5522
        %v5525 = vcombine.high %v354, %v354
        %v5527 = vunpack.c.l.s4 1983009808
        %v5528 = vunpack.c.0.s8 %v5527
        %v5529 = vlaneseq
        %v5530 = vshrl.u32 %v5529, 7
        %v5531 = vsub.s32 %v5528, %v5530
        %v5532 = vrot.slane %v354, %v5531
        %v5534 = vunpack.c.l.s4 1983009808
        %v5535 = vunpack.c.0.s8 %v5534
        %v5536 = vlaneseq
        %v5537 = vshrl.u32 %v5536, 7
        %v5538 = vsub.s32 %v5535, %v5537
        %v5539 = vrot.slane %v5525, %v5538
        %v5540 = vcombine.high %v5532, %v5532
        %v5541 = vcombine.high %v5539, %v5539
        %v5542 = vcombine.high %v355, %v355
        %v5544 = vunpack.c.l.s4 1983009808
        %v5545 = vunpack.c.0.s8 %v5544
        %v5546 = vlaneseq
        %v5547 = vshrl.u32 %v5546, 7
        %v5548 = vsub.s32 %v5545, %v5547
        %v5549 = vrot.slane %v355, %v5548
        %v5551 = vunpack.c.l.s4 1983009808
        %v5552 = vunpack.c.0.s8 %v5551
        %v5553 = vlaneseq
        %v5554 = vshrl.u32 %v5553, 7
        %v5555 = vsub.s32 %v5552, %v5554
        %v5556 = vrot.slane %v5542, %v5555
        %v5557 = vcombine.high %v5549, %v5549
        %v5558 = vcombine.high %v356, %v356
        %v5560 = vunpack.c.l.s4 1983009808
        %v5561 = vunpack.c.0.s8 %v5560
        %v5562 = vlaneseq
        %v5563 = vshrl.u32 %v5562, 7
        %v5564 = vsub.s32 %v5561, %v5563
        %v5565 = vrot.slane %v356, %v5564
        %v5567 = vunpack.c.l.s4 1983009808
        %v5568 = vunpack.c.0.s8 %v5567
        %v5569 = vlaneseq
        %v5570 = vshrl.u32 %v5569, 7
        %v5571 = vsub.s32 %v5568, %v5570
        %v5572 = vrot.slane %v5558, %v5571
        %v5573 = vcombine.high %v5565, %v5565
        %v5574 = vcombine.high %v5572, %v5572
        %v5575 = vcombine.high %v357, %v357
        %v5577 = vunpack.c.l.s4 1983009808
        %v5578 = vunpack.c.0.s8 %v5577
        %v5579 = vlaneseq
        %v5580 = vshrl.u32 %v5579, 7
        %v5581 = vsub.s32 %v5578, %v5580
        %v5582 = vrot.slane %v357, %v5581
        %v5584 = vunpack.c.l.s4 1983009808
        %v5585 = vunpack.c.0.s8 %v5584
        %v5586 = vlaneseq
        %v5587 = vshrl.u32 %v5586, 7
        %v5588 = vsub.s32 %v5585, %v5587
        %v5589 = vrot.slane %v5575, %v5588
        %v5590 = vcombine.high %v5582, %v5582
        %v5591 = vcombine.high %v5589, %v5589
        %v5592 = vcombine.high %v358, %v358
        %v5594 = vunpack.c.l.s4 1983009808
        %v5595 = vunpack.c.0.s8 %v5594
        %v5596 = vlaneseq
        %v5597 = vshrl.u32 %v5596, 7
        %v5598 = vsub.s32 %v5595, %v5597
        %v5599 = vrot.slane %v358, %v5598
        %v5601 = vunpack.c.l.s4 1983009808
        %v5602 = vunpack.c.0.s8 %v5601
        %v5603 = vlaneseq
        %v5604 = vshrl.u32 %v5603, 7
        %v5605 = vsub.s32 %v5602, %v5604
        %v5606 = vrot.slane %v5592, %v5605
        %v5607 = vcombine.high %v5599, %v5599
        %v5608 = vcombine.high %v359, %v359
        %v5610 = vunpack.c.l.s4 1983009808
        %v5611 = vunpack.c.0.s8 %v5610
        %v5612 = vlaneseq
        %v5613 = vshrl.u32 %v5612, 7
        %v5614 = vsub.s32 %v5611, %v5613
        %v5615 = vrot.slane %v359, %v5614
        %v5617 = vunpack.c.l.s4 1983009808
        %v5618 = vunpack.c.0.s8 %v5617
        %v5619 = vlaneseq
        %v5620 = vshrl.u32 %v5619, 7
        %v5621 = vsub.s32 %v5618, %v5620
        %v5622 = vrot.slane %v5608, %v5621
        %v5623 = vcombine.high %v5615, %v5615
        %v5624 = vcombine.high %v5622, %v5622
        %v5625 = vcombine.high %v360, %v360
        %v5627 = vunpack.c.l.s4 1983009808
        %v5628 = vunpack.c.0.s8 %v5627
        %v5629 = vlaneseq
        %v5630 = vshrl.u32 %v5629, 7
        %v5631 = vsub.s32 %v5628, %v5630
        %v5632 = vrot.slane %v360, %v5631
        %v5634 = vunpack.c.l.s4 1983009808
        %v5635 = vunpack.c.0.s8 %v5634
        %v5636 = vlaneseq
        %v5637 = vshrl.u32 %v5636, 7
        %v5638 = vsub.s32 %v5635, %v5637
        %v5639 = vrot.slane %v5625, %v5638
        %v5640 = vcombine.high %v5632, %v5632
        %v5641 = vcombine.high %v5639, %v5639
        %v5642 = vcombine.high %v361, %v361
        %v5644 = vunpack.c.l.s4 1983009808
        %v5645 = vunpack.c.0.s8 %v5644
        %v5646 = vlaneseq
        %v5647 = vshrl.u32 %v5646, 7
        %v5648 = vsub.s32 %v5645, %v5647
        %v5649 = vrot.slane %v361, %v5648
        %v5651 = vunpack.c.l.s4 1983009808
        %v5652 = vunpack.c.0.s8 %v5651
        %v5653 = vlaneseq
        %v5654 = vshrl.u32 %v5653, 7
        %v5655 = vsub.s32 %v5652, %v5654
        %v5656 = vrot.slane %v5642, %v5655
        %v5657 = vcombine.high %v5649, %v5649
        %v5658 = vcombine.high %v362, %v362
        %v5660 = vunpack.c.l.s4 1983009808
        %v5661 = vunpack.c.0.s8 %v5660
        %v5662 = vlaneseq
        %v5663 = vshrl.u32 %v5662, 7
        %v5664 = vsub.s32 %v5661, %v5663
        %v5665 = vrot.slane %v362, %v5664
        %v5667 = vunpack.c.l.s4 1983009808
        %v5668 = vunpack.c.0.s8 %v5667
        %v5669 = vlaneseq
        %v5670 = vshrl.u32 %v5669, 7
        %v5671 = vsub.s32 %v5668, %v5670
        %v5672 = vrot.slane %v5658, %v5671
        %v5673 = vcombine.high %v5665, %v5665
        %v5674 = vcombine.high %v5672, %v5672
        %v5675 = vcombine.high %v363, %v363
        %v5677 = vunpack.c.l.s4 1983009808
        %v5678 = vunpack.c.0.s8 %v5677
        %v5679 = vlaneseq
        %v5680 = vshrl.u32 %v5679, 7
        %v5681 = vsub.s32 %v5678, %v5680
        %v5682 = vrot.slane %v363, %v5681
        %v5684 = vunpack.c.l.s4 1983009808
        %v5685 = vunpack.c.0.s8 %v5684
        %v5686 = vlaneseq
        %v5687 = vshrl.u32 %v5686, 7
        %v5688 = vsub.s32 %v5685, %v5687
        %v5689 = vrot.slane %v5675, %v5688
        %v5690 = vcombine.high %v5682, %v5682
        %v5691 = vcombine.high %v5689, %v5689
        %v5692 = vcombine.high %v364, %v364
        %v5694 = vunpack.c.l.s4 1983009808
        %v5695 = vunpack.c.0.s8 %v5694
        %v5696 = vlaneseq
        %v5697 = vshrl.u32 %v5696, 7
        %v5698 = vsub.s32 %v5695, %v5697
        %v5699 = vrot.slane %v364, %v5698
        %v5701 = vunpack.c.l.s4 1983009808
        %v5702 = vunpack.c.0.s8 %v5701
        %v5703 = vlaneseq
        %v5704 = vshrl.u32 %v5703, 7
        %v5705 = vsub.s32 %v5702, %v5704
        %v5706 = vrot.slane %v5692, %v5705
        %v5707 = vcombine.high %v5699, %v5699
        %v5708 = vcombine.high %v365, %v365
        %v5710 = vunpack.c.l.s4 1983009808
        %v5711 = vunpack.c.0.s8 %v5710
        %v5712 = vlaneseq
        %v5713 = vshrl.u32 %v5712, 7
        %v5714 = vsub.s32 %v5711, %v5713
        %v5715 = vrot.slane %v365, %v5714
        %v5717 = vunpack.c.l.s4 1983009808
        %v5718 = vunpack.c.0.s8 %v5717
        %v5719 = vlaneseq
        %v5720 = vshrl.u32 %v5719, 7
        %v5721 = vsub.s32 %v5718, %v5720
        %v5722 = vrot.slane %v5708, %v5721
        %v5723 = vcombine.high %v5715, %v5715
        %v5724 = vcombine.high %v5722, %v5722
        %v5725 = vcombine.high %v366, %v366
        %v5727 = vunpack.c.l.s4 1983009808
        %v5728 = vunpack.c.0.s8 %v5727
        %v5729 = vlaneseq
        %v5730 = vshrl.u32 %v5729, 7
        %v5731 = vsub.s32 %v5728, %v5730
        %v5732 = vrot.slane %v366, %v5731
        %v5734 = vunpack.c.l.s4 1983009808
        %v5735 = vunpack.c.0.s8 %v5734
        %v5736 = vlaneseq
        %v5737 = vshrl.u32 %v5736, 7
        %v5738 = vsub.s32 %v5735, %v5737
        %v5739 = vrot.slane %v5725, %v5738
        %v5740 = vcombine.high %v5732, %v5732
        %v5741 = vcombine.high %v5739, %v5739
        %v5742 = vcombine.high %v367, %v367
        %v5744 = vunpack.c.l.s4 1983009808
        %v5745 = vunpack.c.0.s8 %v5744
        %v5746 = vlaneseq
        %v5747 = vshrl.u32 %v5746, 7
        %v5748 = vsub.s32 %v5745, %v5747
        %v5749 = vrot.slane %v367, %v5748
        %v5751 = vunpack.c.l.s4 1983009808
        %v5752 = vunpack.c.0.s8 %v5751
        %v5753 = vlaneseq
        %v5754 = vshrl.u32 %v5753, 7
        %v5755 = vsub.s32 %v5752, %v5754
        %v5756 = vrot.slane %v5742, %v5755
        %v5757 = vcombine.high %v5749, %v5749
        %v5758 = vcombine.high %v368, %v368
        %v5760 = vunpack.c.l.s4 1983009808
        %v5761 = vunpack.c.0.s8 %v5760
        %v5762 = vlaneseq
        %v5763 = vshrl.u32 %v5762, 7
        %v5764 = vsub.s32 %v5761, %v5763
        %v5765 = vrot.slane %v368, %v5764
        %v5767 = vunpack.c.l.s4 1983009808
        %v5768 = vunpack.c.0.s8 %v5767
        %v5769 = vlaneseq
        %v5770 = vshrl.u32 %v5769, 7
        %v5771 = vsub.s32 %v5768, %v5770
        %v5772 = vrot.slane %v5758, %v5771
        %v5773 = vcombine.high %v5765, %v5765
        %v5774 = vcombine.high %v5772, %v5772
        %v5775 = vcombine.high %v369, %v369
        %v5777 = vunpack.c.l.s4 1983009808
        %v5778 = vunpack.c.0.s8 %v5777
        %v5779 = vlaneseq
        %v5780 = vshrl.u32 %v5779, 7
        %v5781 = vsub.s32 %v5778, %v5780
        %v5782 = vrot.slane %v369, %v5781
        %v5784 = vunpack.c.l.s4 1983009808
        %v5785 = vunpack.c.0.s8 %v5784
        %v5786 = vlaneseq
        %v5787 = vshrl.u32 %v5786, 7
        %v5788 = vsub.s32 %v5785, %v5787
        %v5789 = vrot.slane %v5775, %v5788
        %v5790 = vcombine.high %v5782, %v5782
        %v5791 = vcombine.high %v5789, %v5789
        %v5792 = vcombine.high %v370, %v370
        %v5794 = vunpack.c.l.s4 1983009808
        %v5795 = vunpack.c.0.s8 %v5794
        %v5796 = vlaneseq
        %v5797 = vshrl.u32 %v5796, 7
        %v5798 = vsub.s32 %v5795, %v5797
        %v5799 = vrot.slane %v370, %v5798
        %v5801 = vunpack.c.l.s4 1983009808
        %v5802 = vunpack.c.0.s8 %v5801
        %v5803 = vlaneseq
        %v5804 = vshrl.u32 %v5803, 7
        %v5805 = vsub.s32 %v5802, %v5804
        %v5806 = vrot.slane %v5792, %v5805
        %v5807 = vcombine.high %v5799, %v5799
        %v5808 = vcombine.low %v4715, %v4723
        %v5809 = vcombine.low %v4722, %v4724
        %v5811 = vunpack.c.l.s4 1983009808
        %v5812 = vunpack.c.0.s8 %v5811
        %v5813 = vlaneseq
        %v5814 = vshrl.u32 %v5813, 7
        %v5815 = vsub.s32 %v5812, %v5814
        %v5816 = vrot.slane %v5808, %v5815
        %v5818 = vunpack.c.l.s4 1983009808
        %v5819 = vunpack.c.0.s8 %v5818
        %v5820 = vlaneseq
        %v5821 = vshrl.u32 %v5820, 7
        %v5822 = vsub.s32 %v5819, %v5821
        %v5823 = vrot.slane %v5809, %v5822
        %v5824 = vcombine.low %v5816, %v5823
        %v5825 = vcombine.low %v4732, %v4740
        %v5826 = vcombine.low %v4739, %v4741
        %v5828 = vunpack.c.l.s4 1983009808
        %v5829 = vunpack.c.0.s8 %v5828
        %v5830 = vlaneseq
        %v5831 = vshrl.u32 %v5830, 7
        %v5832 = vsub.s32 %v5829, %v5831
        %v5833 = vrot.slane %v5825, %v5832
        %v5835 = vunpack.c.l.s4 1983009808
        %v5836 = vunpack.c.0.s8 %v5835
        %v5837 = vlaneseq
        %v5838 = vshrl.u32 %v5837, 7
        %v5839 = vsub.s32 %v5836, %v5838
        %v5840 = vrot.slane %v5826, %v5839
        %v5841 = vcombine.low %v5833, %v5840
        %v5842 = vcombine.low %v4749, %v4757
        %v5843 = vcombine.low %v4756, %v4765
        %v5845 = vunpack.c.l.s4 1983009808
        %v5846 = vunpack.c.0.s8 %v5845
        %v5847 = vlaneseq
        %v5848 = vshrl.u32 %v5847, 7
        %v5849 = vsub.s32 %v5846, %v5848
        %v5850 = vrot.slane %v5842, %v5849
        %v5852 = vunpack.c.l.s4 1983009808
        %v5853 = vunpack.c.0.s8 %v5852
        %v5854 = vlaneseq
        %v5855 = vshrl.u32 %v5854, 7
        %v5856 = vsub.s32 %v5853, %v5855
        %v5857 = vrot.slane %v5843, %v5856
        %v5858 = vcombine.low %v5850, %v5857
        %v5859 = vcombine.low %v4773, %v4772
        %v5860 = vcombine.low %v4774, %v4782
        %v5862 = vunpack.c.l.s4 1983009808
        %v5863 = vunpack.c.0.s8 %v5862
        %v5864 = vlaneseq
        %v5865 = vshrl.u32 %v5864, 7
        %v5866 = vsub.s32 %v5863, %v5865
        %v5867 = vrot.slane %v5859, %v5866
        %v5869 = vunpack.c.l.s4 1983009808
        %v5870 = vunpack.c.0.s8 %v5869
        %v5871 = vlaneseq
        %v5872 = vshrl.u32 %v5871, 7
        %v5873 = vsub.s32 %v5870, %v5872
        %v5874 = vrot.slane %v5860, %v5873
        %v5875 = vcombine.low %v5867, %v5874
        %v5876 = vcombine.low %v4790, %v4789
        %v5877 = vcombine.low %v4791, %v4799
        %v5879 = vunpack.c.l.s4 1983009808
        %v5880 = vunpack.c.0.s8 %v5879
        %v5881 = vlaneseq
        %v5882 = vshrl.u32 %v5881, 7
        %v5883 = vsub.s32 %v5880, %v5882
        %v5884 = vrot.slane %v5876, %v5883
        %v5886 = vunpack.c.l.s4 1983009808
        %v5887 = vunpack.c.0.s8 %v5886
        %v5888 = vlaneseq
        %v5889 = vshrl.u32 %v5888, 7
        %v5890 = vsub.s32 %v5887, %v5889
        %v5891 = vrot.slane %v5877, %v5890
        %v5892 = vcombine.low %v5884, %v5891
        %v5893 = vcombine.low %v4807, %v4806
        %v5894 = vcombine.low %v4815, %v4823
        %v5896 = vunpack.c.l.s4 1983009808
        %v5897 = vunpack.c.0.s8 %v5896
        %v5898 = vlaneseq
        %v5899 = vshrl.u32 %v5898, 7
        %v5900 = vsub.s32 %v5897, %v5899
        %v5901 = vrot.slane %v5893, %v5900
        %v5903 = vunpack.c.l.s4 1983009808
        %v5904 = vunpack.c.0.s8 %v5903
        %v5905 = vlaneseq
        %v5906 = vshrl.u32 %v5905, 7
        %v5907 = vsub.s32 %v5904, %v5906
        %v5908 = vrot.slane %v5894, %v5907
        %v5909 = vcombine.low %v5901, %v5908
        %v5910 = vcombine.low %v4822, %v4824
        %v5911 = vcombine.low %v4832, %v4840
        %v5913 = vunpack.c.l.s4 1983009808
        %v5914 = vunpack.c.0.s8 %v5913
        %v5915 = vlaneseq
        %v5916 = vshrl.u32 %v5915, 7
        %v5917 = vsub.s32 %v5914, %v5916
        %v5918 = vrot.slane %v5910, %v5917
        %v5920 = vunpack.c.l.s4 1983009808
        %v5921 = vunpack.c.0.s8 %v5920
        %v5922 = vlaneseq
        %v5923 = vshrl.u32 %v5922, 7
        %v5924 = vsub.s32 %v5921, %v5923
        %v5925 = vrot.slane %v5911, %v5924
        %v5926 = vcombine.low %v5918, %v5925
        %v5927 = vcombine.low %v4839, %v4841
        %v5928 = vcombine.low %v4849, %v4857
        %v5930 = vunpack.c.l.s4 1983009808
        %v5931 = vunpack.c.0.s8 %v5930
        %v5932 = vlaneseq
        %v5933 = vshrl.u32 %v5932, 7
        %v5934 = vsub.s32 %v5931, %v5933
        %v5935 = vrot.slane %v5927, %v5934
        %v5937 = vunpack.c.l.s4 1983009808
        %v5938 = vunpack.c.0.s8 %v5937
        %v5939 = vlaneseq
        %v5940 = vshrl.u32 %v5939, 7
        %v5941 = vsub.s32 %v5938, %v5940
        %v5942 = vrot.slane %v5928, %v5941
        %v5943 = vcombine.low %v5935, %v5942
        %v5944 = vcombine.low %v4856, %v4865
        %v5945 = vcombine.low %v4873, %v4872
        %v5947 = vunpack.c.l.s4 1983009808
        %v5948 = vunpack.c.0.s8 %v5947
        %v5949 = vlaneseq
        %v5950 = vshrl.u32 %v5949, 7
        %v5951 = vsub.s32 %v5948, %v5950
        %v5952 = vrot.slane %v5944, %v5951
        %v5954 = vunpack.c.l.s4 1983009808
        %v5955 = vunpack.c.0.s8 %v5954
        %v5956 = vlaneseq
        %v5957 = vshrl.u32 %v5956, 7
        %v5958 = vsub.s32 %v5955, %v5957
        %v5959 = vrot.slane %v5945, %v5958
        %v5960 = vcombine.low %v5952, %v5959
        %v5961 = vcombine.low %v4874, %v4882
        %v5962 = vcombine.low %v4890, %v4889
        %v5964 = vunpack.c.l.s4 1983009808
        %v5965 = vunpack.c.0.s8 %v5964
        %v5966 = vlaneseq
        %v5967 = vshrl.u32 %v5966, 7
        %v5968 = vsub.s32 %v5965, %v5967
        %v5969 = vrot.slane %v5961, %v5968
        %v5971 = vunpack.c.l.s4 1983009808
        %v5972 = vunpack.c.0.s8 %v5971
        %v5973 = vlaneseq
        %v5974 = vshrl.u32 %v5973, 7
        %v5975 = vsub.s32 %v5972, %v5974
        %v5976 = vrot.slane %v5962, %v5975
        %v5977 = vcombine.low %v5969, %v5976
        %v5978 = vcombine.low %v4891, %v4899
        %v5979 = vcombine.low %v4907, %v4906
        %v5981 = vunpack.c.l.s4 1983009808
        %v5982 = vunpack.c.0.s8 %v5981
        %v5983 = vlaneseq
        %v5984 = vshrl.u32 %v5983, 7
        %v5985 = vsub.s32 %v5982, %v5984
        %v5986 = vrot.slane %v5978, %v5985
        %v5988 = vunpack.c.l.s4 1983009808
        %v5989 = vunpack.c.0.s8 %v5988
        %v5990 = vlaneseq
        %v5991 = vshrl.u32 %v5990, 7
        %v5992 = vsub.s32 %v5989, %v5991
        %v5993 = vrot.slane %v5979, %v5992
        %v5994 = vcombine.low %v5986, %v5993
        %v5995 = vcombine.low %v4915, %v4923
        %v5996 = vcombine.low %v4922, %v4924
        %v5998 = vunpack.c.l.s4 1983009808
        %v5999 = vunpack.c.0.s8 %v5998
        %v6000 = vlaneseq
        %v6001 = vshrl.u32 %v6000, 7
        %v6002 = vsub.s32 %v5999, %v6001
        %v6003 = vrot.slane %v5995, %v6002
        %v6005 = vunpack.c.l.s4 1983009808
        %v6006 = vunpack.c.0.s8 %v6005
        %v6007 = vlaneseq
        %v6008 = vshrl.u32 %v6007, 7
        %v6009 = vsub.s32 %v6006, %v6008
        %v6010 = vrot.slane %v5996, %v6009
        %v6011 = vcombine.low %v6003, %v6010
        %v6012 = vcombine.low %v4932, %v4940
        %v6013 = vcombine.low %v4939, %v4941
        %v6015 = vunpack.c.l.s4 1983009808
        %v6016 = vunpack.c.0.s8 %v6015
        %v6017 = vlaneseq
        %v6018 = vshrl.u32 %v6017, 7
        %v6019 = vsub.s32 %v6016, %v6018
        %v6020 = vrot.slane %v6012, %v6019
        %v6022 = vunpack.c.l.s4 1983009808
        %v6023 = vunpack.c.0.s8 %v6022
        %v6024 = vlaneseq
        %v6025 = vshrl.u32 %v6024, 7
        %v6026 = vsub.s32 %v6023, %v6025
        %v6027 = vrot.slane %v6013, %v6026
        %v6028 = vcombine.low %v6020, %v6027
        %v6029 = vcombine.low %v4949, %v4957
        %v6030 = vcombine.low %v4956, %v4965
        %v6032 = vunpack.c.l.s4 1983009808
        %v6033 = vunpack.c.0.s8 %v6032
        %v6034 = vlaneseq
        %v6035 = vshrl.u32 %v6034, 7
        %v6036 = vsub.s32 %v6033, %v6035
        %v6037 = vrot.slane %v6029, %v6036
        %v6039 = vunpack.c.l.s4 1983009808
        %v6040 = vunpack.c.0.s8 %v6039
        %v6041 = vlaneseq
        %v6042 = vshrl.u32 %v6041, 7
        %v6043 = vsub.s32 %v6040, %v6042
        %v6044 = vrot.slane %v6030, %v6043
        %v6045 = vcombine.low %v6037, %v6044
        %v6046 = vcombine.low %v4973, %v4972
        %v6047 = vcombine.low %v4974, %v4982
        %v6049 = vunpack.c.l.s4 1983009808
        %v6050 = vunpack.c.0.s8 %v6049
        %v6051 = vlaneseq
        %v6052 = vshrl.u32 %v6051, 7
        %v6053 = vsub.s32 %v6050, %v6052
        %v6054 = vrot.slane %v6046, %v6053
        %v6056 = vunpack.c.l.s4 1983009808
        %v6057 = vunpack.c.0.s8 %v6056
        %v6058 = vlaneseq
        %v6059 = vshrl.u32 %v6058, 7
        %v6060 = vsub.s32 %v6057, %v6059
        %v6061 = vrot.slane %v6047, %v6060
        %v6062 = vcombine.low %v6054, %v6061
        %v6063 = vcombine.low %v4990, %v4989
        %v6064 = vcombine.low %v4991, %v4999
        %v6066 = vunpack.c.l.s4 1983009808
        %v6067 = vunpack.c.0.s8 %v6066
        %v6068 = vlaneseq
        %v6069 = vshrl.u32 %v6068, 7
        %v6070 = vsub.s32 %v6067, %v6069
        %v6071 = vrot.slane %v6063, %v6070
        %v6073 = vunpack.c.l.s4 1983009808
        %v6074 = vunpack.c.0.s8 %v6073
        %v6075 = vlaneseq
        %v6076 = vshrl.u32 %v6075, 7
        %v6077 = vsub.s32 %v6074, %v6076
        %v6078 = vrot.slane %v6064, %v6077
        %v6079 = vcombine.low %v6071, %v6078
        %v6080 = vcombine.low %v5007, %v5006
        %v6081 = vcombine.low %v5015, %v5023
        %v6083 = vunpack.c.l.s4 1983009808
        %v6084 = vunpack.c.0.s8 %v6083
        %v6085 = vlaneseq
        %v6086 = vshrl.u32 %v6085, 7
        %v6087 = vsub.s32 %v6084, %v6086
        %v6088 = vrot.slane %v6080, %v6087
        %v6090 = vunpack.c.l.s4 1983009808
        %v6091 = vunpack.c.0.s8 %v6090
        %v6092 = vlaneseq
        %v6093 = vshrl.u32 %v6092, 7
        %v6094 = vsub.s32 %v6091, %v6093
        %v6095 = vrot.slane %v6081, %v6094
        %v6096 = vcombine.low %v6088, %v6095
        %v6097 = vcombine.low %v5022, %v5024
        %v6098 = vcombine.low %v5032, %v5040
        %v6100 = vunpack.c.l.s4 1983009808
        %v6101 = vunpack.c.0.s8 %v6100
        %v6102 = vlaneseq
        %v6103 = vshrl.u32 %v6102, 7
        %v6104 = vsub.s32 %v6101, %v6103
        %v6105 = vrot.slane %v6097, %v6104
        %v6107 = vunpack.c.l.s4 1983009808
        %v6108 = vunpack.c.0.s8 %v6107
        %v6109 = vlaneseq
        %v6110 = vshrl.u32 %v6109, 7
        %v6111 = vsub.s32 %v6108, %v6110
        %v6112 = vrot.slane %v6098, %v6111
        %v6113 = vcombine.low %v6105, %v6112
        %v6114 = vcombine.low %v5039, %v5041
        %v6115 = vcombine.low %v5049, %v5057
        %v6117 = vunpack.c.l.s4 1983009808
        %v6118 = vunpack.c.0.s8 %v6117
        %v6119 = vlaneseq
        %v6120 = vshrl.u32 %v6119, 7
        %v6121 = vsub.s32 %v6118, %v6120
        %v6122 = vrot.slane %v6114, %v6121
        %v6124 = vunpack.c.l.s4 1983009808
        %v6125 = vunpack.c.0.s8 %v6124
        %v6126 = vlaneseq
        %v6127 = vshrl.u32 %v6126, 7
        %v6128 = vsub.s32 %v6125, %v6127
        %v6129 = vrot.slane %v6115, %v6128
        %v6130 = vcombine.low %v6122, %v6129
        %v6131 = vcombine.low %v5056, %v5065
        %v6132 = vcombine.low %v5073, %v5072
        %v6134 = vunpack.c.l.s4 1983009808
        %v6135 = vunpack.c.0.s8 %v6134
        %v6136 = vlaneseq
        %v6137 = vshrl.u32 %v6136, 7
        %v6138 = vsub.s32 %v6135, %v6137
        %v6139 = vrot.slane %v6131, %v6138
        %v6141 = vunpack.c.l.s4 1983009808
        %v6142 = vunpack.c.0.s8 %v6141
        %v6143 = vlaneseq
        %v6144 = vshrl.u32 %v6143, 7
        %v6145 = vsub.s32 %v6142, %v6144
        %v6146 = vrot.slane %v6132, %v6145
        %v6147 = vcombine.low %v6139, %v6146
        %v6148 = vcombine.low %v5074, %v5082
        %v6149 = vcombine.low %v5090, %v5089
        %v6151 = vunpack.c.l.s4 1983009808
        %v6152 = vunpack.c.0.s8 %v6151
        %v6153 = vlaneseq
        %v6154 = vshrl.u32 %v6153, 7
        %v6155 = vsub.s32 %v6152, %v6154
        %v6156 = vrot.slane %v6148, %v6155
        %v6158 = vunpack.c.l.s4 1983009808
        %v6159 = vunpack.c.0.s8 %v6158
        %v6160 = vlaneseq
        %v6161 = vshrl.u32 %v6160, 7
        %v6162 = vsub.s32 %v6159, %v6161
        %v6163 = vrot.slane %v6149, %v6162
        %v6164 = vcombine.low %v6156, %v6163
        %v6165 = vcombine.low %v5091, %v5099
        %v6166 = vcombine.low %v5107, %v5106
        %v6168 = vunpack.c.l.s4 1983009808
        %v6169 = vunpack.c.0.s8 %v6168
        %v6170 = vlaneseq
        %v6171 = vshrl.u32 %v6170, 7
        %v6172 = vsub.s32 %v6169, %v6171
        %v6173 = vrot.slane %v6165, %v6172
        %v6175 = vunpack.c.l.s4 1983009808
        %v6176 = vunpack.c.0.s8 %v6175
        %v6177 = vlaneseq
        %v6178 = vshrl.u32 %v6177, 7
        %v6179 = vsub.s32 %v6176, %v6178
        %v6180 = vrot.slane %v6166, %v6179
        %v6181 = vcombine.low %v6173, %v6180
        %v6182 = vcombine.low %v5115, %v5123
        %v6183 = vcombine.low %v5122, %v5124
        %v6185 = vunpack.c.l.s4 1983009808
        %v6186 = vunpack.c.0.s8 %v6185
        %v6187 = vlaneseq
        %v6188 = vshrl.u32 %v6187, 7
        %v6189 = vsub.s32 %v6186, %v6188
        %v6190 = vrot.slane %v6182, %v6189
        %v6192 = vunpack.c.l.s4 1983009808
        %v6193 = vunpack.c.0.s8 %v6192
        %v6194 = vlaneseq
        %v6195 = vshrl.u32 %v6194, 7
        %v6196 = vsub.s32 %v6193, %v6195
        %v6197 = vrot.slane %v6183, %v6196
        %v6198 = vcombine.low %v6190, %v6197
        %v6199 = vcombine.low %v5132, %v5140
        %v6200 = vcombine.low %v5139, %v5141
        %v6202 = vunpack.c.l.s4 1983009808
        %v6203 = vunpack.c.0.s8 %v6202
        %v6204 = vlaneseq
        %v6205 = vshrl.u32 %v6204, 7
        %v6206 = vsub.s32 %v6203, %v6205
        %v6207 = vrot.slane %v6199, %v6206
        %v6209 = vunpack.c.l.s4 1983009808
        %v6210 = vunpack.c.0.s8 %v6209
        %v6211 = vlaneseq
        %v6212 = vshrl.u32 %v6211, 7
        %v6213 = vsub.s32 %v6210, %v6212
        %v6214 = vrot.slane %v6200, %v6213
        %v6215 = vcombine.low %v6207, %v6214
        %v6216 = vcombine.low %v5149, %v5157
        %v6217 = vcombine.low %v5156, %v5165
        %v6219 = vunpack.c.l.s4 1983009808
        %v6220 = vunpack.c.0.s8 %v6219
        %v6221 = vlaneseq
        %v6222 = vshrl.u32 %v6221, 7
        %v6223 = vsub.s32 %v6220, %v6222
        %v6224 = vrot.slane %v6216, %v6223
        %v6226 = vunpack.c.l.s4 1983009808
        %v6227 = vunpack.c.0.s8 %v6226
        %v6228 = vlaneseq
        %v6229 = vshrl.u32 %v6228, 7
        %v6230 = vsub.s32 %v6227, %v6229
        %v6231 = vrot.slane %v6217, %v6230
        %v6232 = vcombine.low %v6224, %v6231
        %v6233 = vcombine.low %v5173, %v5172
        %v6234 = vcombine.low %v5174, %v5182
        %v6236 = vunpack.c.l.s4 1983009808
        %v6237 = vunpack.c.0.s8 %v6236
        %v6238 = vlaneseq
        %v6239 = vshrl.u32 %v6238, 7
        %v6240 = vsub.s32 %v6237, %v6239
        %v6241 = vrot.slane %v6233, %v6240
        %v6243 = vunpack.c.l.s4 1983009808
        %v6244 = vunpack.c.0.s8 %v6243
        %v6245 = vlaneseq
        %v6246 = vshrl.u32 %v6245, 7
        %v6247 = vsub.s32 %v6244, %v6246
        %v6248 = vrot.slane %v6234, %v6247
        %v6249 = vcombine.low %v6241, %v6248
        %v6250 = vcombine.low %v5190, %v5189
        %v6251 = vcombine.low %v5191, %v5199
        %v6253 = vunpack.c.l.s4 1983009808
        %v6254 = vunpack.c.0.s8 %v6253
        %v6255 = vlaneseq
        %v6256 = vshrl.u32 %v6255, 7
        %v6257 = vsub.s32 %v6254, %v6256
        %v6258 = vrot.slane %v6250, %v6257
        %v6260 = vunpack.c.l.s4 1983009808
        %v6261 = vunpack.c.0.s8 %v6260
        %v6262 = vlaneseq
        %v6263 = vshrl.u32 %v6262, 7
        %v6264 = vsub.s32 %v6261, %v6263
        %v6265 = vrot.slane %v6251, %v6264
        %v6266 = vcombine.low %v6258, %v6265
        %v6267 = vcombine.low %v5207, %v5206
        %v6268 = vcombine.low %v5215, %v5223
        %v6270 = vunpack.c.l.s4 1983009808
        %v6271 = vunpack.c.0.s8 %v6270
        %v6272 = vlaneseq
        %v6273 = vshrl.u32 %v6272, 7
        %v6274 = vsub.s32 %v6271, %v6273
        %v6275 = vrot.slane %v6267, %v6274
        %v6277 = vunpack.c.l.s4 1983009808
        %v6278 = vunpack.c.0.s8 %v6277
        %v6279 = vlaneseq
        %v6280 = vshrl.u32 %v6279, 7
        %v6281 = vsub.s32 %v6278, %v6280
        %v6282 = vrot.slane %v6268, %v6281
        %v6283 = vcombine.low %v6275, %v6282
        %v6284 = vcombine.low %v5222, %v5224
        %v6285 = vcombine.low %v5232, %v5240
        %v6287 = vunpack.c.l.s4 1983009808
        %v6288 = vunpack.c.0.s8 %v6287
        %v6289 = vlaneseq
        %v6290 = vshrl.u32 %v6289, 7
        %v6291 = vsub.s32 %v6288, %v6290
        %v6292 = vrot.slane %v6284, %v6291
        %v6294 = vunpack.c.l.s4 1983009808
        %v6295 = vunpack.c.0.s8 %v6294
        %v6296 = vlaneseq
        %v6297 = vshrl.u32 %v6296, 7
        %v6298 = vsub.s32 %v6295, %v6297
        %v6299 = vrot.slane %v6285, %v6298
        %v6300 = vcombine.low %v6292, %v6299
        %v6301 = vcombine.low %v5239, %v5241
        %v6302 = vcombine.low %v5249, %v5257
        %v6304 = vunpack.c.l.s4 1983009808
        %v6305 = vunpack.c.0.s8 %v6304
        %v6306 = vlaneseq
        %v6307 = vshrl.u32 %v6306, 7
        %v6308 = vsub.s32 %v6305, %v6307
        %v6309 = vrot.slane %v6301, %v6308
        %v6311 = vunpack.c.l.s4 1983009808
        %v6312 = vunpack.c.0.s8 %v6311
        %v6313 = vlaneseq
        %v6314 = vshrl.u32 %v6313, 7
        %v6315 = vsub.s32 %v6312, %v6314
        %v6316 = vrot.slane %v6302, %v6315
        %v6317 = vcombine.low %v6309, %v6316
        %v6318 = vcombine.low %v5256, %v5265
        %v6319 = vcombine.low %v5273, %v5272
        %v6321 = vunpack.c.l.s4 1983009808
        %v6322 = vunpack.c.0.s8 %v6321
        %v6323 = vlaneseq
        %v6324 = vshrl.u32 %v6323, 7
        %v6325 = vsub.s32 %v6322, %v6324
        %v6326 = vrot.slane %v6318, %v6325
        %v6328 = vunpack.c.l.s4 1983009808
        %v6329 = vunpack.c.0.s8 %v6328
        %v6330 = vlaneseq
        %v6331 = vshrl.u32 %v6330, 7
        %v6332 = vsub.s32 %v6329, %v6331
        %v6333 = vrot.slane %v6319, %v6332
        %v6334 = vcombine.low %v6326, %v6333
        %v6335 = vcombine.low %v5274, %v5282
        %v6336 = vcombine.low %v5290, %v5289
        %v6338 = vunpack.c.l.s4 1983009808
        %v6339 = vunpack.c.0.s8 %v6338
        %v6340 = vlaneseq
        %v6341 = vshrl.u32 %v6340, 7
        %v6342 = vsub.s32 %v6339, %v6341
        %v6343 = vrot.slane %v6335, %v6342
        %v6345 = vunpack.c.l.s4 1983009808
        %v6346 = vunpack.c.0.s8 %v6345
        %v6347 = vlaneseq
        %v6348 = vshrl.u32 %v6347, 7
        %v6349 = vsub.s32 %v6346, %v6348
        %v6350 = vrot.slane %v6336, %v6349
        %v6351 = vcombine.low %v6343, %v6350
        %v6352 = vcombine.low %v5291, %v5299
        %v6353 = vcombine.low %v5307, %v5306
        %v6355 = vunpack.c.l.s4 1983009808
        %v6356 = vunpack.c.0.s8 %v6355
        %v6357 = vlaneseq
        %v6358 = vshrl.u32 %v6357, 7
        %v6359 = vsub.s32 %v6356, %v6358
        %v6360 = vrot.slane %v6352, %v6359
        %v6362 = vunpack.c.l.s4 1983009808
        %v6363 = vunpack.c.0.s8 %v6362
        %v6364 = vlaneseq
        %v6365 = vshrl.u32 %v6364, 7
        %v6366 = vsub.s32 %v6363, %v6365
        %v6367 = vrot.slane %v6353, %v6366
        %v6368 = vcombine.low %v6360, %v6367
        %v6369 = vcombine.low %v5315, %v5323
        %v6370 = vcombine.low %v5322, %v5324
        %v6372 = vunpack.c.l.s4 1983009808
        %v6373 = vunpack.c.0.s8 %v6372
        %v6374 = vlaneseq
        %v6375 = vshrl.u32 %v6374, 7
        %v6376 = vsub.s32 %v6373, %v6375
        %v6377 = vrot.slane %v6369, %v6376
        %v6379 = vunpack.c.l.s4 1983009808
        %v6380 = vunpack.c.0.s8 %v6379
        %v6381 = vlaneseq
        %v6382 = vshrl.u32 %v6381, 7
        %v6383 = vsub.s32 %v6380, %v6382
        %v6384 = vrot.slane %v6370, %v6383
        %v6385 = vcombine.low %v6377, %v6384
        %v6386 = vcombine.low %v5332, %v5340
        %v6387 = vcombine.low %v5339, %v5341
        %v6389 = vunpack.c.l.s4 1983009808
        %v6390 = vunpack.c.0.s8 %v6389
        %v6391 = vlaneseq
        %v6392 = vshrl.u32 %v6391, 7
        %v6393 = vsub.s32 %v6390, %v6392
        %v6394 = vrot.slane %v6386, %v6393
        %v6396 = vunpack.c.l.s4 1983009808
        %v6397 = vunpack.c.0.s8 %v6396
        %v6398 = vlaneseq
        %v6399 = vshrl.u32 %v6398, 7
        %v6400 = vsub.s32 %v6397, %v6399
        %v6401 = vrot.slane %v6387, %v6400
        %v6402 = vcombine.low %v6394, %v6401
        %v6403 = vcombine.low %v5349, %v5357
        %v6404 = vcombine.low %v5356, %v5365
        %v6406 = vunpack.c.l.s4 1983009808
        %v6407 = vunpack.c.0.s8 %v6406
        %v6408 = vlaneseq
        %v6409 = vshrl.u32 %v6408, 7
        %v6410 = vsub.s32 %v6407, %v6409
        %v6411 = vrot.slane %v6403, %v6410
        %v6413 = vunpack.c.l.s4 1983009808
        %v6414 = vunpack.c.0.s8 %v6413
        %v6415 = vlaneseq
        %v6416 = vshrl.u32 %v6415, 7
        %v6417 = vsub.s32 %v6414, %v6416
        %v6418 = vrot.slane %v6404, %v6417
        %v6419 = vcombine.low %v6411, %v6418
        %v6420 = vcombine.low %v5373, %v5372
        %v6421 = vcombine.low %v5374, %v5382
        %v6423 = vunpack.c.l.s4 1983009808
        %v6424 = vunpack.c.0.s8 %v6423
        %v6425 = vlaneseq
        %v6426 = vshrl.u32 %v6425, 7
        %v6427 = vsub.s32 %v6424, %v6426
        %v6428 = vrot.slane %v6420, %v6427
        %v6430 = vunpack.c.l.s4 1983009808
        %v6431 = vunpack.c.0.s8 %v6430
        %v6432 = vlaneseq
        %v6433 = vshrl.u32 %v6432, 7
        %v6434 = vsub.s32 %v6431, %v6433
        %v6435 = vrot.slane %v6421, %v6434
        %v6436 = vcombine.low %v6428, %v6435
        %v6437 = vcombine.low %v5390, %v5389
        %v6438 = vcombine.low %v5391, %v5399
        %v6440 = vunpack.c.l.s4 1983009808
        %v6441 = vunpack.c.0.s8 %v6440
        %v6442 = vlaneseq
        %v6443 = vshrl.u32 %v6442, 7
        %v6444 = vsub.s32 %v6441, %v6443
        %v6445 = vrot.slane %v6437, %v6444
        %v6447 = vunpack.c.l.s4 1983009808
        %v6448 = vunpack.c.0.s8 %v6447
        %v6449 = vlaneseq
        %v6450 = vshrl.u32 %v6449, 7
        %v6451 = vsub.s32 %v6448, %v6450
        %v6452 = vrot.slane %v6438, %v6451
        %v6453 = vcombine.low %v6445, %v6452
        %v6454 = vcombine.low %v5407, %v5406
        %v6455 = vcombine.low %v5415, %v5423
        %v6457 = vunpack.c.l.s4 1983009808
        %v6458 = vunpack.c.0.s8 %v6457
        %v6459 = vlaneseq
        %v6460 = vshrl.u32 %v6459, 7
        %v6461 = vsub.s32 %v6458, %v6460
        %v6462 = vrot.slane %v6454, %v6461
        %v6464 = vunpack.c.l.s4 1983009808
        %v6465 = vunpack.c.0.s8 %v6464
        %v6466 = vlaneseq
        %v6467 = vshrl.u32 %v6466, 7
        %v6468 = vsub.s32 %v6465, %v6467
        %v6469 = vrot.slane %v6455, %v6468
        %v6470 = vcombine.low %v6462, %v6469
        %v6471 = vcombine.low %v5422, %v5424
        %v6472 = vcombine.low %v5432, %v5440
        %v6474 = vunpack.c.l.s4 1983009808
        %v6475 = vunpack.c.0.s8 %v6474
        %v6476 = vlaneseq
        %v6477 = vshrl.u32 %v6476, 7
        %v6478 = vsub.s32 %v6475, %v6477
        %v6479 = vrot.slane %v6471, %v6478
        %v6481 = vunpack.c.l.s4 1983009808
        %v6482 = vunpack.c.0.s8 %v6481
        %v6483 = vlaneseq
        %v6484 = vshrl.u32 %v6483, 7
        %v6485 = vsub.s32 %v6482, %v6484
        %v6486 = vrot.slane %v6472, %v6485
        %v6487 = vcombine.low %v6479, %v6486
        %v6488 = vcombine.low %v5439, %v5441
        %v6489 = vcombine.low %v5449, %v5457
        %v6491 = vunpack.c.l.s4 1983009808
        %v6492 = vunpack.c.0.s8 %v6491
        %v6493 = vlaneseq
        %v6494 = vshrl.u32 %v6493, 7
        %v6495 = vsub.s32 %v6492, %v6494
        %v6496 = vrot.slane %v6488, %v6495
        %v6498 = vunpack.c.l.s4 1983009808
        %v6499 = vunpack.c.0.s8 %v6498
        %v6500 = vlaneseq
        %v6501 = vshrl.u32 %v6500, 7
        %v6502 = vsub.s32 %v6499, %v6501
        %v6503 = vrot.slane %v6489, %v6502
        %v6504 = vcombine.low %v6496, %v6503
        %v6505 = vcombine.low %v5456, %v5465
        %v6506 = vcombine.low %v5473, %v5472
        %v6508 = vunpack.c.l.s4 1983009808
        %v6509 = vunpack.c.0.s8 %v6508
        %v6510 = vlaneseq
        %v6511 = vshrl.u32 %v6510, 7
        %v6512 = vsub.s32 %v6509, %v6511
        %v6513 = vrot.slane %v6505, %v6512
        %v6515 = vunpack.c.l.s4 1983009808
        %v6516 = vunpack.c.0.s8 %v6515
        %v6517 = vlaneseq
        %v6518 = vshrl.u32 %v6517, 7
        %v6519 = vsub.s32 %v6516, %v6518
        %v6520 = vrot.slane %v6506, %v6519
        %v6521 = vcombine.low %v6513, %v6520
        %v6522 = vcombine.low %v5474, %v5482
        %v6523 = vcombine.low %v5490, %v5489
        %v6525 = vunpack.c.l.s4 1983009808
        %v6526 = vunpack.c.0.s8 %v6525
        %v6527 = vlaneseq
        %v6528 = vshrl.u32 %v6527, 7
        %v6529 = vsub.s32 %v6526, %v6528
        %v6530 = vrot.slane %v6522, %v6529
        %v6532 = vunpack.c.l.s4 1983009808
        %v6533 = vunpack.c.0.s8 %v6532
        %v6534 = vlaneseq
        %v6535 = vshrl.u32 %v6534, 7
        %v6536 = vsub.s32 %v6533, %v6535
        %v6537 = vrot.slane %v6523, %v6536
        %v6538 = vcombine.low %v6530, %v6537
        %v6539 = vcombine.low %v5491, %v5499
        %v6540 = vcombine.low %v5507, %v5506
        %v6542 = vunpack.c.l.s4 1983009808
        %v6543 = vunpack.c.0.s8 %v6542
        %v6544 = vlaneseq
        %v6545 = vshrl.u32 %v6544, 7
        %v6546 = vsub.s32 %v6543, %v6545
        %v6547 = vrot.slane %v6539, %v6546
        %v6549 = vunpack.c.l.s4 1983009808
        %v6550 = vunpack.c.0.s8 %v6549
        %v6551 = vlaneseq
        %v6552 = vshrl.u32 %v6551, 7
        %v6553 = vsub.s32 %v6550, %v6552
        %v6554 = vrot.slane %v6540, %v6553
        %v6555 = vcombine.low %v6547, %v6554
        %v6556 = vcombine.low %v5515, %v5523
        %v6557 = vcombine.low %v5522, %v5524
        %v6559 = vunpack.c.l.s4 1983009808
        %v6560 = vunpack.c.0.s8 %v6559
        %v6561 = vlaneseq
        %v6562 = vshrl.u32 %v6561, 7
        %v6563 = vsub.s32 %v6560, %v6562
        %v6564 = vrot.slane %v6556, %v6563
        %v6566 = vunpack.c.l.s4 1983009808
        %v6567 = vunpack.c.0.s8 %v6566
        %v6568 = vlaneseq
        %v6569 = vshrl.u32 %v6568, 7
        %v6570 = vsub.s32 %v6567, %v6569
        %v6571 = vrot.slane %v6557, %v6570
        %v6572 = vcombine.low %v6564, %v6571
        %v6573 = vcombine.low %v5532, %v5540
        %v6574 = vcombine.low %v5539, %v5541
        %v6576 = vunpack.c.l.s4 1983009808
        %v6577 = vunpack.c.0.s8 %v6576
        %v6578 = vlaneseq
        %v6579 = vshrl.u32 %v6578, 7
        %v6580 = vsub.s32 %v6577, %v6579
        %v6581 = vrot.slane %v6573, %v6580
        %v6583 = vunpack.c.l.s4 1983009808
        %v6584 = vunpack.c.0.s8 %v6583
        %v6585 = vlaneseq
        %v6586 = vshrl.u32 %v6585, 7
        %v6587 = vsub.s32 %v6584, %v6586
        %v6588 = vrot.slane %v6574, %v6587
        %v6589 = vcombine.low %v6581, %v6588
        %v6590 = vcombine.low %v5549, %v5557
        %v6591 = vcombine.low %v5556, %v5565
        %v6593 = vunpack.c.l.s4 1983009808
        %v6594 = vunpack.c.0.s8 %v6593
        %v6595 = vlaneseq
        %v6596 = vshrl.u32 %v6595, 7
        %v6597 = vsub.s32 %v6594, %v6596
        %v6598 = vrot.slane %v6590, %v6597
        %v6600 = vunpack.c.l.s4 1983009808
        %v6601 = vunpack.c.0.s8 %v6600
        %v6602 = vlaneseq
        %v6603 = vshrl.u32 %v6602, 7
        %v6604 = vsub.s32 %v6601, %v6603
        %v6605 = vrot.slane %v6591, %v6604
        %v6606 = vcombine.low %v6598, %v6605
        %v6607 = vcombine.low %v5573, %v5572
        %v6608 = vcombine.low %v5574, %v5582
        %v6610 = vunpack.c.l.s4 1983009808
        %v6611 = vunpack.c.0.s8 %v6610
        %v6612 = vlaneseq
        %v6613 = vshrl.u32 %v6612, 7
        %v6614 = vsub.s32 %v6611, %v6613
        %v6615 = vrot.slane %v6607, %v6614
        %v6617 = vunpack.c.l.s4 1983009808
        %v6618 = vunpack.c.0.s8 %v6617
        %v6619 = vlaneseq
        %v6620 = vshrl.u32 %v6619, 7
        %v6621 = vsub.s32 %v6618, %v6620
        %v6622 = vrot.slane %v6608, %v6621
        %v6623 = vcombine.low %v6615, %v6622
        %v6624 = vcombine.low %v5590, %v5589
        %v6625 = vcombine.low %v5591, %v5599
        %v6627 = vunpack.c.l.s4 1983009808
        %v6628 = vunpack.c.0.s8 %v6627
        %v6629 = vlaneseq
        %v6630 = vshrl.u32 %v6629, 7
        %v6631 = vsub.s32 %v6628, %v6630
        %v6632 = vrot.slane %v6624, %v6631
        %v6634 = vunpack.c.l.s4 1983009808
        %v6635 = vunpack.c.0.s8 %v6634
        %v6636 = vlaneseq
        %v6637 = vshrl.u32 %v6636, 7
        %v6638 = vsub.s32 %v6635, %v6637
        %v6639 = vrot.slane %v6625, %v6638
        %v6640 = vcombine.low %v6632, %v6639
        %v6641 = vcombine.low %v5607, %v5606
        %v6642 = vcombine.low %v5615, %v5623
        %v6644 = vunpack.c.l.s4 1983009808
        %v6645 = vunpack.c.0.s8 %v6644
        %v6646 = vlaneseq
        %v6647 = vshrl.u32 %v6646, 7
        %v6648 = vsub.s32 %v6645, %v6647
        %v6649 = vrot.slane %v6641, %v6648
        %v6651 = vunpack.c.l.s4 1983009808
        %v6652 = vunpack.c.0.s8 %v6651
        %v6653 = vlaneseq
        %v6654 = vshrl.u32 %v6653, 7
        %v6655 = vsub.s32 %v6652, %v6654
        %v6656 = vrot.slane %v6642, %v6655
        %v6657 = vcombine.low %v6649, %v6656
        %v6658 = vcombine.low %v5622, %v5624
        %v6659 = vcombine.low %v5632, %v5640
        %v6661 = vunpack.c.l.s4 1983009808
        %v6662 = vunpack.c.0.s8 %v6661
        %v6663 = vlaneseq
        %v6664 = vshrl.u32 %v6663, 7
        %v6665 = vsub.s32 %v6662, %v6664
        %v6666 = vrot.slane %v6658, %v6665
        %v6668 = vunpack.c.l.s4 1983009808
        %v6669 = vunpack.c.0.s8 %v6668
        %v6670 = vlaneseq
        %v6671 = vshrl.u32 %v6670, 7
        %v6672 = vsub.s32 %v6669, %v6671
        %v6673 = vrot.slane %v6659, %v6672
        %v6674 = vcombine.low %v6666, %v6673
        %v6675 = vcombine.low %v5639, %v5641
        %v6676 = vcombine.low %v5649, %v5657
        %v6678 = vunpack.c.l.s4 1983009808
        %v6679 = vunpack.c.0.s8 %v6678
        %v6680 = vlaneseq
        %v6681 = vshrl.u32 %v6680, 7
        %v6682 = vsub.s32 %v6679, %v6681
        %v6683 = vrot.slane %v6675, %v6682
        %v6685 = vunpack.c.l.s4 1983009808
        %v6686 = vunpack.c.0.s8 %v6685
        %v6687 = vlaneseq
        %v6688 = vshrl.u32 %v6687, 7
        %v6689 = vsub.s32 %v6686, %v6688
        %v6690 = vrot.slane %v6676, %v6689
        %v6691 = vcombine.low %v6683, %v6690
        %v6692 = vcombine.low %v5656, %v5665
        %v6693 = vcombine.low %v5673, %v5672
        %v6695 = vunpack.c.l.s4 1983009808
        %v6696 = vunpack.c.0.s8 %v6695
        %v6697 = vlaneseq
        %v6698 = vshrl.u32 %v6697, 7
        %v6699 = vsub.s32 %v6696, %v6698
        %v6700 = vrot.slane %v6692, %v6699
        %v6702 = vunpack.c.l.s4 1983009808
        %v6703 = vunpack.c.0.s8 %v6702
        %v6704 = vlaneseq
        %v6705 = vshrl.u32 %v6704, 7
        %v6706 = vsub.s32 %v6703, %v6705
        %v6707 = vrot.slane %v6693, %v6706
        %v6708 = vcombine.low %v6700, %v6707
        %v6709 = vcombine.low %v5674, %v5682
        %v6710 = vcombine.low %v5690, %v5689
        %v6712 = vunpack.c.l.s4 1983009808
        %v6713 = vunpack.c.0.s8 %v6712
        %v6714 = vlaneseq
        %v6715 = vshrl.u32 %v6714, 7
        %v6716 = vsub.s32 %v6713, %v6715
        %v6717 = vrot.slane %v6709, %v6716
        %v6719 = vunpack.c.l.s4 1983009808
        %v6720 = vunpack.c.0.s8 %v6719
        %v6721 = vlaneseq
        %v6722 = vshrl.u32 %v6721, 7
        %v6723 = vsub.s32 %v6720, %v6722
        %v6724 = vrot.slane %v6710, %v6723
        %v6725 = vcombine.low %v6717, %v6724
        %v6726 = vcombine.low %v5691, %v5699
        %v6727 = vcombine.low %v5707, %v5706
        %v6729 = vunpack.c.l.s4 1983009808
        %v6730 = vunpack.c.0.s8 %v6729
        %v6731 = vlaneseq
        %v6732 = vshrl.u32 %v6731, 7
        %v6733 = vsub.s32 %v6730, %v6732
        %v6734 = vrot.slane %v6726, %v6733
        %v6736 = vunpack.c.l.s4 1983009808
        %v6737 = vunpack.c.0.s8 %v6736
        %v6738 = vlaneseq
        %v6739 = vshrl.u32 %v6738, 7
        %v6740 = vsub.s32 %v6737, %v6739
        %v6741 = vrot.slane %v6727, %v6740
        %v6742 = vcombine.low %v6734, %v6741
        %v6743 = vcombine.low %v5715, %v5723
        %v6744 = vcombine.low %v5722, %v5724
        %v6746 = vunpack.c.l.s4 1983009808
        %v6747 = vunpack.c.0.s8 %v6746
        %v6748 = vlaneseq
        %v6749 = vshrl.u32 %v6748, 7
        %v6750 = vsub.s32 %v6747, %v6749
        %v6751 = vrot.slane %v6743, %v6750
        %v6753 = vunpack.c.l.s4 1983009808
        %v6754 = vunpack.c.0.s8 %v6753
        %v6755 = vlaneseq
        %v6756 = vshrl.u32 %v6755, 7
        %v6757 = vsub.s32 %v6754, %v6756
        %v6758 = vrot.slane %v6744, %v6757
        %v6759 = vcombine.low %v6751, %v6758
        %v6760 = vcombine.low %v5732, %v5740
        %v6761 = vcombine.low %v5739, %v5741
        %v6763 = vunpack.c.l.s4 1983009808
        %v6764 = vunpack.c.0.s8 %v6763
        %v6765 = vlaneseq
        %v6766 = vshrl.u32 %v6765, 7
        %v6767 = vsub.s32 %v6764, %v6766
        %v6768 = vrot.slane %v6760, %v6767
        %v6770 = vunpack.c.l.s4 1983009808
        %v6771 = vunpack.c.0.s8 %v6770
        %v6772 = vlaneseq
        %v6773 = vshrl.u32 %v6772, 7
        %v6774 = vsub.s32 %v6771, %v6773
        %v6775 = vrot.slane %v6761, %v6774
        %v6776 = vcombine.low %v6768, %v6775
        %v6777 = vcombine.low %v5749, %v5757
        %v6778 = vcombine.low %v5756, %v5765
        %v6780 = vunpack.c.l.s4 1983009808
        %v6781 = vunpack.c.0.s8 %v6780
        %v6782 = vlaneseq
        %v6783 = vshrl.u32 %v6782, 7
        %v6784 = vsub.s32 %v6781, %v6783
        %v6785 = vrot.slane %v6777, %v6784
        %v6787 = vunpack.c.l.s4 1983009808
        %v6788 = vunpack.c.0.s8 %v6787
        %v6789 = vlaneseq
        %v6790 = vshrl.u32 %v6789, 7
        %v6791 = vsub.s32 %v6788, %v6790
        %v6792 = vrot.slane %v6778, %v6791
        %v6793 = vcombine.low %v6785, %v6792
        %v6794 = vcombine.low %v5773, %v5772
        %v6795 = vcombine.low %v5774, %v5782
        %v6797 = vunpack.c.l.s4 1983009808
        %v6798 = vunpack.c.0.s8 %v6797
        %v6799 = vlaneseq
        %v6800 = vshrl.u32 %v6799, 7
        %v6801 = vsub.s32 %v6798, %v6800
        %v6802 = vrot.slane %v6794, %v6801
        %v6804 = vunpack.c.l.s4 1983009808
        %v6805 = vunpack.c.0.s8 %v6804
        %v6806 = vlaneseq
        %v6807 = vshrl.u32 %v6806, 7
        %v6808 = vsub.s32 %v6805, %v6807
        %v6809 = vrot.slane %v6795, %v6808
        %v6810 = vcombine.low %v6802, %v6809
        %v6811 = vcombine.low %v5790, %v5789
        %v6812 = vcombine.low %v5791, %v5799
        %v6814 = vunpack.c.l.s4 1983009808
        %v6815 = vunpack.c.0.s8 %v6814
        %v6816 = vlaneseq
        %v6817 = vshrl.u32 %v6816, 7
        %v6818 = vsub.s32 %v6815, %v6817
        %v6819 = vrot.slane %v6811, %v6818
        %v6821 = vunpack.c.l.s4 1983009808
        %v6822 = vunpack.c.0.s8 %v6821
        %v6823 = vlaneseq
        %v6824 = vshrl.u32 %v6823, 7
        %v6825 = vsub.s32 %v6822, %v6824
        %v6826 = vrot.slane %v6812, %v6825
        %v6827 = vcombine.low %v6819, %v6826
        %v6828 = vcombine.low %v5807, %v5806
        %v6830 = vunpack.c.l.s4 1983009808
        %v6831 = vunpack.c.0.s8 %v6830
        %v6832 = vlaneseq
        %v6833 = vshrl.u32 %v6832, 7
        %v6834 = vsub.s32 %v6831, %v6833
        %v6835 = vrot.slane %v6828, %v6834
        %v6897 = vsel %vm2950, %v5824, 0.0
        %v6898 = vsel %vm2950, %v5841, 0.0
        %v6899 = vadd.f32 %v6897, %v6898
        %v6900 = vsel %vm2950, %v5858, 0.0
        %v6901 = vadd.f32 %v6899, %v6900
        %v6902 = vsel %vm2950, %v5875, 0.0
        %v6903 = vadd.f32 %v6901, %v6902
        %v6904 = vsel %vm2950, %v5892, 0.0
        %v6905 = vadd.f32 %v6903, %v6904
        %v6906 = vsel %vm2950, %v5909, 0.0
        %v6907 = vadd.f32 %v6905, %v6906
        %v6908 = vsel %vm2950, %v5926, 0.0
        %v6909 = vadd.f32 %v6907, %v6908
        %v6910 = vsel %vm2950, %v5943, 0.0
        %v6911 = vadd.f32 %v6909, %v6910
        %v6912 = vsel %vm2950, %v5960, 0.0
        %v6913 = vadd.f32 %v6911, %v6912
        %v6914 = vsel %vm2950, %v5977, 0.0
        %v6915 = vadd.f32 %v6913, %v6914
        %v6916 = vsel %vm2950, %v5994, 0.0
        %v6917 = vadd.f32 %v6915, %v6916
        %v6918 = vsel %vm2950, %v6011, 0.0
        %v6919 = vadd.f32 %v6917, %v6918
        %v6920 = vsel %vm2950, %v6028, 0.0
        %v6921 = vadd.f32 %v6919, %v6920
        %v6922 = vsel %vm2950, %v6045, 0.0
        %v6923 = vadd.f32 %v6921, %v6922
        %v6924 = vsel %vm2950, %v6062, 0.0
        %v6925 = vadd.f32 %v6923, %v6924
        %v6926 = vsel %vm2950, %v6079, 0.0
        %v6927 = vadd.f32 %v6925, %v6926
        %v6928 = vsel %vm2950, %v6096, 0.0
        %v6929 = vadd.f32 %v6927, %v6928
        %v6930 = vsel %vm2950, %v6113, 0.0
        %v6931 = vadd.f32 %v6929, %v6930
        %v6932 = vsel %vm2950, %v6130, 0.0
        %v6933 = vadd.f32 %v6931, %v6932
        %v6934 = vsel %vm2950, %v6147, 0.0
        %v6935 = vadd.f32 %v6933, %v6934
        %v6936 = vsel %vm2950, %v6164, 0.0
        %v6937 = vadd.f32 %v6935, %v6936
        %v6938 = vsel %vm2950, %v6181, 0.0
        %v6939 = vadd.f32 %v6937, %v6938
        %v6940 = vsel %vm2950, %v6198, 0.0
        %v6941 = vadd.f32 %v6939, %v6940
        %v6942 = vsel %vm2950, %v6215, 0.0
        %v6943 = vadd.f32 %v6941, %v6942
        %v6944 = vsel %vm2950, %v6232, 0.0
        %v6945 = vadd.f32 %v6943, %v6944
        %v6946 = vsel %vm2950, %v6249, 0.0
        %v6947 = vadd.f32 %v6945, %v6946
        %v6948 = vsel %vm2950, %v6266, 0.0
        %v6949 = vadd.f32 %v6947, %v6948
        %v6950 = vsel %vm2950, %v6283, 0.0
        %v6951 = vadd.f32 %v6949, %v6950
        %v6952 = vsel %vm2950, %v6300, 0.0
        %v6953 = vadd.f32 %v6951, %v6952
        %v6954 = vsel %vm2950, %v6317, 0.0
        %v6955 = vadd.f32 %v6953, %v6954
        %v6956 = vsel %vm2950, %v6334, 0.0
        %v6957 = vadd.f32 %v6955, %v6956
        %v6958 = vsel %vm2950, %v6351, 0.0
        %v6959 = vadd.f32 %v6957, %v6958
        %v6960 = vsel %vm2950, %v6368, 0.0
        %v6961 = vadd.f32 %v6959, %v6960
        %v6962 = vsel %vm2950, %v6385, 0.0
        %v6963 = vadd.f32 %v6961, %v6962
        %v6964 = vsel %vm2950, %v6402, 0.0
        %v6965 = vadd.f32 %v6963, %v6964
        %v6966 = vsel %vm2950, %v6419, 0.0
        %v6967 = vadd.f32 %v6965, %v6966
        %v6968 = vsel %vm2950, %v6436, 0.0
        %v6969 = vadd.f32 %v6967, %v6968
        %v6970 = vsel %vm2950, %v6453, 0.0
        %v6971 = vadd.f32 %v6969, %v6970
        %v6972 = vsel %vm2950, %v6470, 0.0
        %v6973 = vadd.f32 %v6971, %v6972
        %v6974 = vsel %vm2950, %v6487, 0.0
        %v6975 = vadd.f32 %v6973, %v6974
        %v6976 = vsel %vm2950, %v6504, 0.0
        %v6977 = vadd.f32 %v6975, %v6976
        %v6978 = vsel %vm2950, %v6521, 0.0
        %v6979 = vadd.f32 %v6977, %v6978
        %v6980 = vsel %vm2950, %v6538, 0.0
        %v6981 = vadd.f32 %v6979, %v6980
        %v6982 = vsel %vm2950, %v6555, 0.0
        %v6983 = vadd.f32 %v6981, %v6982
        %v6984 = vsel %vm2950, %v6572, 0.0
        %v6985 = vadd.f32 %v6983, %v6984
        %v6986 = vsel %vm2950, %v6589, 0.0
        %v6987 = vadd.f32 %v6985, %v6986
        %v6988 = vsel %vm2950, %v6606, 0.0
        %v6989 = vadd.f32 %v6987, %v6988
        %v6990 = vsel %vm2950, %v6623, 0.0
        %v6991 = vadd.f32 %v6989, %v6990
        %v6992 = vsel %vm2950, %v6640, 0.0
        %v6993 = vadd.f32 %v6991, %v6992
        %v6994 = vsel %vm2950, %v6657, 0.0
        %v6995 = vadd.f32 %v6993, %v6994
        %v6996 = vsel %vm2950, %v6674, 0.0
        %v6997 = vadd.f32 %v6995, %v6996
        %v6998 = vsel %vm2950, %v6691, 0.0
        %v6999 = vadd.f32 %v6997, %v6998
        %v7000 = vsel %vm2950, %v6708, 0.0
        %v7001 = vadd.f32 %v6999, %v7000
        %v7002 = vsel %vm2950, %v6725, 0.0
        %v7003 = vadd.f32 %v7001, %v7002
        %v7004 = vsel %vm2950, %v6742, 0.0
        %v7005 = vadd.f32 %v7003, %v7004
        %v7006 = vsel %vm2950, %v6759, 0.0
        %v7007 = vadd.f32 %v7005, %v7006
        %v7008 = vsel %vm2950, %v6776, 0.0
        %v7009 = vadd.f32 %v7007, %v7008
        %v7010 = vsel %vm2950, %v6793, 0.0
        %v7011 = vadd.f32 %v7009, %v7010
        %v7012 = vsel %vm2950, %v6810, 0.0
        %v7013 = vadd.f32 %v7011, %v7012
        %v7014 = vsel %vm2950, %v6827, 0.0
        %v7015 = vadd.f32 %v7013, %v7014
        %vm7016 = vcmask 27648
        %v7017 = vsel %vm7016, %v6835, 0.0
        %v7018 = vadd.f32 %v7015, %v7017
        %v7019 = vrot.slane %v7018, 4
        %v7020 = vadd.f32 %v7018, %v7019
        %v7021 = vrot.slane %v7020, 2
        %v7022 = vadd.f32 %v7020, %v7021
        %v7023 = vrot.slane %v7022, 1
        %v7024 = vadd.f32 %v7022, %v7023
        %v7025 = vmul.f32 %v7024, 0.00390625
        %v7026 = vld [vmem:[%s3] sm:$0xf]
        %v7027 = vld [vmem:[%s4] sm:$0x1]
        %v7029 = vsel %vm2950, %v7025, 0
        %v7032 = vsel %vm4447, %v7026, 0
        %7034 = vmatprep.subr.mxu0 0.0
        %7035 = vmatpush1.msra.mxu0 %v7032
        %7036 = vmatprep.subr.mxu0 0.0
        %7037 = vmatpush1.msra.mxu0 0.0
        %7038 = vmatprep.subr.mxu0 0.0
        %7039 = vmatpush1.msra.mxu0 0.0
        %7040 = vmatprep.subr.mxu0 0.0
        %7041 = vmatpush1.msra.mxu0 0.0
        %7042 = vmatprep.subr.mxu0 0.0
        %7043 = vmatpush1.msra.mxu0 0.0
        %7044 = vmatprep.subr.mxu0 0.0
        %7045 = vmatpush1.msra.mxu0 0.0
        %7046 = vmatprep.subr.mxu0 0.0
        %7047 = vmatpush1.msra.mxu0 0.0
        %7048 = vmatprep.subr.mxu0 0.0
        %7049 = vmatpush1.msra.mxu0 0.0
        %7050 = vmatprep.subr.mxu0 0.0
        %7051 = vmatpush1.msra.mxu0 0.0
        %7052 = vmatprep.subr.mxu0 0.0
        %7053 = vmatpush1.msra.mxu0 0.0
        %7054 = vmatprep.subr.mxu0 0.0
        %7055 = vmatpush1.msra.mxu0 0.0
        %7056 = vmatprep.subr.mxu0 0.0
        %7057 = vmatpush1.msra.mxu0 0.0
        %7058 = vmatprep.subr.mxu0 0.0
        %7059 = vmatpush1.msra.mxu0 0.0
        %7060 = vmatprep.subr.mxu0 0.0
        %7061 = vmatpush1.msra.mxu0 0.0
        %7062 = vmatprep.subr.mxu0 0.0
        %7063 = vmatpush1.msra.mxu0 0.0
        %7064 = vmatprep.subr.mxu0 0.0
        %7065 = vmatpush1.msra.mxu0 0.0
        %7066 = vmatprep.subr.mxu0 0.0
        %7067 = vmatpush1.msra.mxu0 0.0
        %7068 = vmatprep.subr.mxu0 0.0
        %7069 = vmatpush1.msra.mxu0 0.0
        %7070 = vmatprep.subr.mxu0 0.0
        %7071 = vmatpush1.msra.mxu0 0.0
        %7072 = vmatprep.subr.mxu0 0.0
        %7073 = vmatpush1.msra.mxu0 0.0
        %7074 = vmatprep.subr.mxu0 0.0
        %7075 = vmatpush1.msra.mxu0 0.0
        %7076 = vmatprep.subr.mxu0 0.0
        %7077 = vmatpush1.msra.mxu0 0.0
        %7078 = vmatprep.subr.mxu0 0.0
        %7079 = vmatpush1.msra.mxu0 0.0
        %7080 = vmatprep.subr.mxu0 0.0
        %7081 = vmatpush1.msra.mxu0 0.0
        %7082 = vmatprep.subr.mxu0 0.0
        %7083 = vmatpush1.msra.mxu0 0.0
        %7084 = vmatprep.subr.mxu0 0.0
        %7085 = vmatpush1.msra.mxu0 0.0
        %7086 = vmatprep.subr.mxu0 0.0
        %7087 = vmatpush1.msra.mxu0 0.0
        %7088 = vmatprep.subr.mxu0 0.0
        %7089 = vmatpush1.msra.mxu0 0.0
        %7090 = vmatprep.subr.mxu0 0.0
        %7091 = vmatpush1.msra.mxu0 0.0
        %7092 = vmatprep.subr.mxu0 0.0
        %7093 = vmatpush1.msra.mxu0 0.0
        %7094 = vmatprep.subr.mxu0 0.0
        %7095 = vmatpush1.msra.mxu0 0.0
        %7096 = vmatprep.subr.mxu0 0.0
        %7097 = vmatpush1.msra.mxu0 0.0
        %7098 = vmatprep.mubr.f32.mxu0 0.0
        %7099 = vmatmul.mubr.f32.gmra.mrb[0].mxu0 %v7029
        %v7100 = vpop.f32.mrb[0].mxu0
        %v7101 = vadd.f32 %v7027, %v7100
        %v7102 = vpop.f32.mrb[0].mxu0
        %7103 = vdwg.mxu0
        %v7104 = vmax.f32 %v7101, 0.0
        %v7105 = vld [vmem:[%s5] sm:$0xff]
        %v7106 = vld [vmem:[%s5 + $0x8] sm:$0xff]
        %v7107 = vld [vmem:[%s5 + $0x10] sm:$0xff]
        %v7108 = vld [vmem:[%s5 + $0x18] sm:$0xff]
        %v7109 = vld [vmem:[%s5 + $0x20] sm:$0xff]
        %v7110 = vld [vmem:[%s5 + $0x28] sm:$0xff]
        %v7111 = vld [vmem:[%s5 + $0x30] sm:$0xff]
        %v7112 = vld [vmem:[%s5 + $0x38] sm:$0xff]
        %v7113 = vld [vmem:[%s5 + $0x40] sm:$0xff]
        %v7114 = vld [vmem:[%s5 + $0x48] sm:$0xff]
        %v7115 = vld [vmem:[%s5 + $0x50] sm:$0xff]
        %v7116 = vld [vmem:[%s5 + $0x58] sm:$0xff]
        %v7117 = vld [vmem:[%s5 + $0x60] sm:$0xff]
        %v7118 = vld [vmem:[%s5 + $0x68] sm:$0xff]
        %v7119 = vld [vmem:[%s5 + $0x70] sm:$0xff]
        %v7120 = vld [vmem:[%s5 + $0x78] sm:$0xff]
        %v7121 = vld [vmem:[%s6] sm:$0xff]
        %v7122 = vld [vmem:[%s6 + $0x8] sm:$0xff]
        %v7123 = vld [vmem:[%s6 + $0x10] sm:$0xff]
        %v7124 = vld [vmem:[%s6 + $0x18] sm:$0xff]
        %v7125 = vld [vmem:[%s6 + $0x20] sm:$0xff]
        %v7126 = vld [vmem:[%s6 + $0x28] sm:$0xff]
        %v7127 = vld [vmem:[%s6 + $0x30] sm:$0xff]
        %v7128 = vld [vmem:[%s6 + $0x38] sm:$0xff]
        %v7129 = vld [vmem:[%s6 + $0x40] sm:$0xff]
        %v7130 = vld [vmem:[%s6 + $0x48] sm:$0xff]
        %v7131 = vld [vmem:[%s6 + $0x50] sm:$0xff]
        %v7132 = vld [vmem:[%s6 + $0x58] sm:$0xff]
        %v7133 = vld [vmem:[%s6 + $0x60] sm:$0xff]
        %v7134 = vld [vmem:[%s6 + $0x68] sm:$0xff]
        %v7135 = vld [vmem:[%s6 + $0x70] sm:$0xff]
        %v7136 = vld [vmem:[%s6 + $0x78] sm:$0xff]
        %7137 = vmatprep.subr.mxu0 0.0
        %7138 = vmatpush1.msra.mxu0 %v7121
        %7139 = vmatprep.subr.mxu0 0.0
        %7140 = vmatpush1.msra.mxu0 %v7122
        %7141 = vmatprep.subr.mxu0 0.0
        %7142 = vmatpush1.msra.mxu0 %v7123
        %7143 = vmatprep.subr.mxu0 0.0
        %7144 = vmatpush1.msra.mxu0 %v7124
        %7145 = vmatprep.subr.mxu0 0.0
        %7146 = vmatpush1.msra.mxu0 %v7125
        %7147 = vmatprep.subr.mxu0 0.0
        %7148 = vmatpush1.msra.mxu0 %v7126
        %7149 = vmatprep.subr.mxu0 0.0
        %7150 = vmatpush1.msra.mxu0 %v7127
        %7151 = vmatprep.subr.mxu0 0.0
        %7152 = vmatpush1.msra.mxu0 %v7128
        %7153 = vmatprep.subr.mxu0 0.0
        %7154 = vmatpush1.msra.mxu0 %v7129
        %7155 = vmatprep.subr.mxu0 0.0
        %7156 = vmatpush1.msra.mxu0 %v7130
        %7157 = vmatprep.subr.mxu0 0.0
        %7158 = vmatpush1.msra.mxu0 %v7131
        %7159 = vmatprep.subr.mxu0 0.0
        %7160 = vmatpush1.msra.mxu0 %v7132
        %7161 = vmatprep.subr.mxu0 0.0
        %7162 = vmatpush1.msra.mxu0 %v7133
        %7163 = vmatprep.subr.mxu0 0.0
        %7164 = vmatpush1.msra.mxu0 %v7134
        %7165 = vmatprep.subr.mxu0 0.0
        %7166 = vmatpush1.msra.mxu0 %v7135
        %7167 = vmatprep.subr.mxu0 0.0
        %7168 = vmatpush1.msra.mxu0 %v7136
        %7169 = vmatprep.subr.mxu0 0.0
        %7170 = vmatpush1.msra.mxu0 0.0
        %7171 = vmatprep.subr.mxu0 0.0
        %7172 = vmatpush1.msra.mxu0 0.0
        %7173 = vmatprep.subr.mxu0 0.0
        %7174 = vmatpush1.msra.mxu0 0.0
        %7175 = vmatprep.subr.mxu0 0.0
        %7176 = vmatpush1.msra.mxu0 0.0
        %7177 = vmatprep.subr.mxu0 0.0
        %7178 = vmatpush1.msra.mxu0 0.0
        %7179 = vmatprep.subr.mxu0 0.0
        %7180 = vmatpush1.msra.mxu0 0.0
        %7181 = vmatprep.subr.mxu0 0.0
        %7182 = vmatpush1.msra.mxu0 0.0
        %7183 = vmatprep.subr.mxu0 0.0
        %7184 = vmatpush1.msra.mxu0 0.0
        %7185 = vmatprep.subr.mxu0 0.0
        %7186 = vmatpush1.msra.mxu0 0.0
        %7187 = vmatprep.subr.mxu0 0.0
        %7188 = vmatpush1.msra.mxu0 0.0
        %7189 = vmatprep.subr.mxu0 0.0
        %7190 = vmatpush1.msra.mxu0 0.0
        %7191 = vmatprep.subr.mxu0 0.0
        %7192 = vmatpush1.msra.mxu0 0.0
        %7193 = vmatprep.subr.mxu0 0.0
        %7194 = vmatpush1.msra.mxu0 0.0
        %7195 = vmatprep.subr.mxu0 0.0
        %7196 = vmatpush1.msra.mxu0 0.0
        %7197 = vmatprep.subr.mxu0 0.0
        %7198 = vmatpush1.msra.mxu0 0.0
        %7199 = vmatprep.subr.mxu0 0.0
        %7200 = vmatpush1.msra.mxu0 0.0
        %7201 = vmatprep.mubr.f32.mxu0 0.0
        %7202 = vmatmul.mubr.f32.gmra.mrb[0].mxu0 %v7104
        %v7203 = vpop.f32.mrb[0].mxu0
        %v7204 = vadd.f32 0.0, %v7203
        %v7205 = vpop.f32.mrb[0].mxu0
        %7206 = vdwg.mxu0
        %v7207 = vlaneseq
        %v7208 = vshrl.u32 %v7207, 7
        %v7209 = vsub.s32 0, %v7208
        %v7210 = vrot.slane %v7204, %v7209
        %7211 = vmatprep.subr.mxu0 0.0
        %7212 = vmatpush1.msra.mxu0 %v7105
        %7213 = vmatprep.subr.mxu0 0.0
        %7214 = vmatpush1.msra.mxu0 %v7106
        %7215 = vmatprep.subr.mxu0 0.0
        %7216 = vmatpush1.msra.mxu0 %v7107
        %7217 = vmatprep.subr.mxu0 0.0
        %7218 = vmatpush1.msra.mxu0 %v7108
        %7219 = vmatprep.subr.mxu0 0.0
        %7220 = vmatpush1.msra.mxu0 %v7109
        %7221 = vmatprep.subr.mxu0 0.0
        %7222 = vmatpush1.msra.mxu0 %v7110
        %7223 = vmatprep.subr.mxu0 0.0
        %7224 = vmatpush1.msra.mxu0 %v7111
        %7225 = vmatprep.subr.mxu0 0.0
        %7226 = vmatpush1.msra.mxu0 %v7112
        %7227 = vmatprep.subr.mxu0 0.0
        %7228 = vmatpush1.msra.mxu0 %v7113
        %7229 = vmatprep.subr.mxu0 0.0
        %7230 = vmatpush1.msra.mxu0 %v7114
        %7231 = vmatprep.subr.mxu0 0.0
        %7232 = vmatpush1.msra.mxu0 %v7115
        %7233 = vmatprep.subr.mxu0 0.0
        %7234 = vmatpush1.msra.mxu0 %v7116
        %7235 = vmatprep.subr.mxu0 0.0
        %7236 = vmatpush1.msra.mxu0 %v7117
        %7237 = vmatprep.subr.mxu0 0.0
        %7238 = vmatpush1.msra.mxu0 %v7118
        %7239 = vmatprep.subr.mxu0 0.0
        %7240 = vmatpush1.msra.mxu0 %v7119
        %7241 = vmatprep.subr.mxu0 0.0
        %7242 = vmatpush1.msra.mxu0 %v7120
        %7243 = vmatprep.subr.mxu0 0.0
        %7244 = vmatpush1.msra.mxu0 0.0
        %7245 = vmatprep.subr.mxu0 0.0
        %7246 = vmatpush1.msra.mxu0 0.0
        %7247 = vmatprep.subr.mxu0 0.0
        %7248 = vmatpush1.msra.mxu0 0.0
        %7249 = vmatprep.subr.mxu0 0.0
        %7250 = vmatpush1.msra.mxu0 0.0
        %7251 = vmatprep.subr.mxu0 0.0
        %7252 = vmatpush1.msra.mxu0 0.0
        %7253 = vmatprep.subr.mxu0 0.0
        %7254 = vmatpush1.msra.mxu0 0.0
        %7255 = vmatprep.subr.mxu0 0.0
        %7256 = vmatpush1.msra.mxu0 0.0
        %7257 = vmatprep.subr.mxu0 0.0
        %7258 = vmatpush1.msra.mxu0 0.0
        %7259 = vmatprep.subr.mxu0 0.0
        %7260 = vmatpush1.msra.mxu0 0.0
        %7261 = vmatprep.subr.mxu0 0.0
        %7262 = vmatpush1.msra.mxu0 0.0
        %7263 = vmatprep.subr.mxu0 0.0
        %7264 = vmatpush1.msra.mxu0 0.0
        %7265 = vmatprep.subr.mxu0 0.0
        %7266 = vmatpush1.msra.mxu0 0.0
        %7267 = vmatprep.subr.mxu0 0.0
        %7268 = vmatpush1.msra.mxu0 0.0
        %7269 = vmatprep.subr.mxu0 0.0
        %7270 = vmatpush1.msra.mxu0 0.0
        %7271 = vmatprep.subr.mxu0 0.0
        %7272 = vmatpush1.msra.mxu0 0.0
        %7273 = vmatprep.subr.mxu0 0.0
        %7274 = vmatpush1.msra.mxu0 0.0
        %7275 = vmatprep.mubr.f32.mxu0 0.0
        %7276 = vmatmul.mubr.f32.gmra.mrb[0].mxu0 %v4676
        %v7277 = vpop.f32.mrb[0].mxu0
        %v7278 = vadd.f32 %v7210, %v7277
        %v7279 = vpop.f32.mrb[0].mxu0
        %7280 = vmatprep.mubr.f32.mxu0 0.0
        %7281 = vmatmul.mubr.f32.gmra.mrb[0].mxu0 %v4677
        %v7282 = vpop.f32.mrb[0].mxu0
        %v7283 = vadd.f32 %v7210, %v7282
        %v7284 = vpop.f32.mrb[0].mxu0
        %7285 = vmatprep.mubr.f32.mxu0 0.0
        %7286 = vmatmul.mubr.f32.gmra.mrb[0].mxu0 %v4678
        %v7287 = vpop.f32.mrb[0].mxu0
        %v7288 = vadd.f32 %v7210, %v7287
        %v7289 = vpop.f32.mrb[0].mxu0
        %7290 = vmatprep.mubr.f32.mxu0 0.0
        %7291 = vmatmul.mubr.f32.gmra.mrb[0].mxu0 %v4679
        %v7292 = vpop.f32.mrb[0].mxu0
        %v7293 = vadd.f32 %v7210, %v7292
        %v7294 = vpop.f32.mrb[0].mxu0
        %7295 = vmatprep.mubr.f32.mxu0 0.0
        %7296 = vmatmul.mubr.f32.gmra.mrb[0].mxu0 %v4680
        %v7297 = vpop.f32.mrb[0].mxu0
        %v7298 = vadd.f32 %v7210, %v7297
        %v7299 = vpop.f32.mrb[0].mxu0
        %7300 = vmatprep.mubr.f32.mxu0 0.0
        %7301 = vmatmul.mubr.f32.gmra.mrb[0].mxu0 %v4681
        %v7302 = vpop.f32.mrb[0].mxu0
        %v7303 = vadd.f32 %v7210, %v7302
        %v7304 = vpop.f32.mrb[0].mxu0
        %7305 = vmatprep.mubr.f32.mxu0 0.0
        %7306 = vmatmul.mubr.f32.gmra.mrb[0].mxu0 %v4682
        %v7307 = vpop.f32.mrb[0].mxu0
        %v7308 = vadd.f32 %v7210, %v7307
        %v7309 = vpop.f32.mrb[0].mxu0
        %7310 = vmatprep.mubr.f32.mxu0 0.0
        %7311 = vmatmul.mubr.f32.gmra.mrb[0].mxu0 %v4683
        %v7312 = vpop.f32.mrb[0].mxu0
        %v7313 = vadd.f32 %v7210, %v7312
        %v7314 = vpop.f32.mrb[0].mxu0
        %7315 = vmatprep.mubr.f32.mxu0 0.0
        %7316 = vmatmul.mubr.f32.gmra.mrb[0].mxu0 %v4684
        %v7317 = vpop.f32.mrb[0].mxu0
        %v7318 = vadd.f32 %v7210, %v7317
        %v7319 = vpop.f32.mrb[0].mxu0
        %7320 = vmatprep.mubr.f32.mxu0 0.0
        %7321 = vmatmul.mubr.f32.gmra.mrb[0].mxu0 %v4685
        %v7322 = vpop.f32.mrb[0].mxu0
        %v7323 = vadd.f32 %v7210, %v7322
        %v7324 = vpop.f32.mrb[0].mxu0
        %7325 = vmatprep.mubr.f32.mxu0 0.0
        %7326 = vmatmul.mubr.f32.gmra.mrb[0].mxu0 %v4686
        %v7327 = vpop.f32.mrb[0].mxu0
        %v7328 = vadd.f32 %v7210, %v7327
        %v7329 = vpop.f32.mrb[0].mxu0
        %7330 = vmatprep.mubr.f32.mxu0 0.0
        %7331 = vmatmul.mubr.f32.gmra.mrb[0].mxu0 %v4687
        %v7332 = vpop.f32.mrb[0].mxu0
        %v7333 = vadd.f32 %v7210, %v7332
        %v7334 = vpop.f32.mrb[0].mxu0
        %7335 = vmatprep.mubr.f32.mxu0 0.0
        %7336 = vmatmul.mubr.f32.gmra.mrb[0].mxu0 %v4688
        %v7337 = vpop.f32.mrb[0].mxu0
        %v7338 = vadd.f32 %v7210, %v7337
        %v7339 = vpop.f32.mrb[0].mxu0
        %7340 = vmatprep.mubr.f32.mxu0 0.0
        %7341 = vmatmul.mubr.f32.gmra.mrb[0].mxu0 %v4689
        %v7342 = vpop.f32.mrb[0].mxu0
        %v7343 = vadd.f32 %v7210, %v7342
        %v7344 = vpop.f32.mrb[0].mxu0
        %7345 = vmatprep.mubr.f32.mxu0 0.0
        %7346 = vmatmul.mubr.f32.gmra.mrb[0].mxu0 %v4690
        %v7347 = vpop.f32.mrb[0].mxu0
        %v7348 = vadd.f32 %v7210, %v7347
        %v7349 = vpop.f32.mrb[0].mxu0
        %7350 = vmatprep.mubr.f32.mxu0 0.0
        %7351 = vmatmul.mubr.f32.gmra.mrb[0].mxu0 %v4691
        %v7352 = vpop.f32.mrb[0].mxu0
        %v7353 = vadd.f32 %v7210, %v7352
        %v7354 = vpop.f32.mrb[0].mxu0
        %7355 = vmatprep.mubr.f32.mxu0 0.0
        %7356 = vmatmul.mubr.f32.gmra.mrb[0].mxu0 %v4692
        %v7357 = vpop.f32.mrb[0].mxu0
        %v7358 = vadd.f32 %v7210, %v7357
        %v7359 = vpop.f32.mrb[0].mxu0
        %7360 = vmatprep.mubr.f32.mxu0 0.0
        %7361 = vmatmul.mubr.f32.gmra.mrb[0].mxu0 %v4693
        %v7362 = vpop.f32.mrb[0].mxu0
        %v7363 = vadd.f32 %v7210, %v7362
        %v7364 = vpop.f32.mrb[0].mxu0
        %7365 = vmatprep.mubr.f32.mxu0 0.0
        %7366 = vmatmul.mubr.f32.gmra.mrb[0].mxu0 %v4694
        %v7367 = vpop.f32.mrb[0].mxu0
        %v7368 = vadd.f32 %v7210, %v7367
        %v7369 = vpop.f32.mrb[0].mxu0
        %7370 = vmatprep.mubr.f32.mxu0 0.0
        %7371 = vmatmul.mubr.f32.gmra.mrb[0].mxu0 %v4695
        %v7372 = vpop.f32.mrb[0].mxu0
        %v7373 = vadd.f32 %v7210, %v7372
        %v7374 = vpop.f32.mrb[0].mxu0
        %7375 = vmatprep.mubr.f32.mxu0 0.0
        %7376 = vmatmul.mubr.f32.gmra.mrb[0].mxu0 %v4696
        %v7377 = vpop.f32.mrb[0].mxu0
        %v7378 = vadd.f32 %v7210, %v7377
        %v7379 = vpop.f32.mrb[0].mxu0
        %7380 = vmatprep.mubr.f32.mxu0 0.0
        %7381 = vmatmul.mubr.f32.gmra.mrb[0].mxu0 %v4697
        %v7382 = vpop.f32.mrb[0].mxu0
        %v7383 = vadd.f32 %v7210, %v7382
        %v7384 = vpop.f32.mrb[0].mxu0
        %7385 = vmatprep.mubr.f32.mxu0 0.0
        %7386 = vmatmul.mubr.f32.gmra.mrb[0].mxu0 %v4698
        %v7387 = vpop.f32.mrb[0].mxu0
        %v7388 = vadd.f32 %v7210, %v7387
        %v7389 = vpop.f32.mrb[0].mxu0
        %7390 = vmatprep.mubr.f32.mxu0 0.0
        %7391 = vmatmul.mubr.f32.gmra.mrb[0].mxu0 %v4699
        %v7392 = vpop.f32.mrb[0].mxu0
        %v7393 = vadd.f32 %v7210, %v7392
        %v7394 = vpop.f32.mrb[0].mxu0
        %7395 = vmatprep.mubr.f32.mxu0 0.0
        %7396 = vmatmul.mubr.f32.gmra.mrb[0].mxu0 %v4700
        %v7397 = vpop.f32.mrb[0].mxu0
        %v7398 = vadd.f32 %v7210, %v7397
        %v7399 = vpop.f32.mrb[0].mxu0
        %7400 = vmatprep.mubr.f32.mxu0 0.0
        %7401 = vmatmul.mubr.f32.gmra.mrb[0].mxu0 %v4701
        %v7402 = vpop.f32.mrb[0].mxu0
        %v7403 = vadd.f32 %v7210, %v7402
        %v7404 = vpop.f32.mrb[0].mxu0
        %7405 = vmatprep.mubr.f32.mxu0 0.0
        %7406 = vmatmul.mubr.f32.gmra.mrb[0].mxu0 %v4702
        %v7407 = vpop.f32.mrb[0].mxu0
        %v7408 = vadd.f32 %v7210, %v7407
        %v7409 = vpop.f32.mrb[0].mxu0
        %7410 = vmatprep.mubr.f32.mxu0 0.0
        %7411 = vmatmul.mubr.f32.gmra.mrb[0].mxu0 %v4703
        %v7412 = vpop.f32.mrb[0].mxu0
        %v7413 = vadd.f32 %v7210, %v7412
        %v7414 = vpop.f32.mrb[0].mxu0
        %7415 = vmatprep.mubr.f32.mxu0 0.0
        %7416 = vmatmul.mubr.f32.gmra.mrb[0].mxu0 %v4704
        %v7417 = vpop.f32.mrb[0].mxu0
        %v7418 = vadd.f32 %v7210, %v7417
        %v7419 = vpop.f32.mrb[0].mxu0
        %7420 = vmatprep.mubr.f32.mxu0 0.0
        %7421 = vmatmul.mubr.f32.gmra.mrb[0].mxu0 %v4705
        %v7422 = vpop.f32.mrb[0].mxu0
        %v7423 = vadd.f32 %v7210, %v7422
        %v7424 = vpop.f32.mrb[0].mxu0
        %7425 = vmatprep.mubr.f32.mxu0 0.0
        %7426 = vmatmul.mubr.f32.gmra.mrb[0].mxu0 %v4706
        %v7427 = vpop.f32.mrb[0].mxu0
        %v7428 = vadd.f32 %v7210, %v7427
        %v7429 = vpop.f32.mrb[0].mxu0
        %7430 = vmatprep.mubr.f32.mxu0 0.0
        %7431 = vmatmul.mubr.f32.gmra.mrb[0].mxu0 %v4707
        %v7432 = vpop.f32.mrb[0].mxu0
        %v7433 = vadd.f32 %v7210, %v7432
        %v7434 = vpop.f32.mrb[0].mxu0
        %7435 = vdwg.mxu0
        %v7436 = vld [vmem:[%s7] sm:$0x1]
        %v7438 = vlaneseq
        %v7439 = vshrl.u32 %v7438, 7
        %v7440 = vsub.s32 0, %v7439
        %v7441 = vrot.slane %v7436, %v7440
        %v7443 = vadd.f32 %v7278, %v7441
        %v7444 = vadd.f32 %v7283, %v7441
        %v7445 = vadd.f32 %v7288, %v7441
        %v7446 = vadd.f32 %v7293, %v7441
        %v7447 = vadd.f32 %v7298, %v7441
        %v7448 = vadd.f32 %v7303, %v7441
        %v7449 = vadd.f32 %v7308, %v7441
        %v7450 = vadd.f32 %v7313, %v7441
        %v7451 = vadd.f32 %v7318, %v7441
        %v7452 = vadd.f32 %v7323, %v7441
        %v7453 = vadd.f32 %v7328, %v7441
        %v7454 = vadd.f32 %v7333, %v7441
        %v7455 = vadd.f32 %v7338, %v7441
        %v7456 = vadd.f32 %v7343, %v7441
        %v7457 = vadd.f32 %v7348, %v7441
        %v7458 = vadd.f32 %v7353, %v7441
        %v7459 = vadd.f32 %v7358, %v7441
        %v7460 = vadd.f32 %v7363, %v7441
        %v7461 = vadd.f32 %v7368, %v7441
        %v7462 = vadd.f32 %v7373, %v7441
        %v7463 = vadd.f32 %v7378, %v7441
        %v7464 = vadd.f32 %v7383, %v7441
        %v7465 = vadd.f32 %v7388, %v7441
        %v7466 = vadd.f32 %v7393, %v7441
        %v7467 = vadd.f32 %v7398, %v7441
        %v7468 = vadd.f32 %v7403, %v7441
        %v7469 = vadd.f32 %v7408, %v7441
        %v7470 = vadd.f32 %v7413, %v7441
        %v7471 = vadd.f32 %v7418, %v7441
        %v7472 = vadd.f32 %v7423, %v7441
        %v7473 = vadd.f32 %v7428, %v7441
        %v7474 = vadd.f32 %v7433, %v7441
        %v7475 = vmax.f32 %v7443, 0.0
        %v7476 = vmax.f32 %v7444, 0.0
        %v7477 = vmax.f32 %v7445, 0.0
        %v7478 = vmax.f32 %v7446, 0.0
        %v7479 = vmax.f32 %v7447, 0.0
        %v7480 = vmax.f32 %v7448, 0.0
        %v7481 = vmax.f32 %v7449, 0.0
        %v7482 = vmax.f32 %v7450, 0.0
        %v7483 = vmax.f32 %v7451, 0.0
        %v7484 = vmax.f32 %v7452, 0.0
        %v7485 = vmax.f32 %v7453, 0.0
        %v7486 = vmax.f32 %v7454, 0.0
        %v7487 = vmax.f32 %v7455, 0.0
        %v7488 = vmax.f32 %v7456, 0.0
        %v7489 = vmax.f32 %v7457, 0.0
        %v7490 = vmax.f32 %v7458, 0.0
        %v7491 = vmax.f32 %v7459, 0.0
        %v7492 = vmax.f32 %v7460, 0.0
        %v7493 = vmax.f32 %v7461, 0.0
        %v7494 = vmax.f32 %v7462, 0.0
        %v7495 = vmax.f32 %v7463, 0.0
        %v7496 = vmax.f32 %v7464, 0.0
        %v7497 = vmax.f32 %v7465, 0.0
        %v7498 = vmax.f32 %v7466, 0.0
        %v7499 = vmax.f32 %v7467, 0.0
        %v7500 = vmax.f32 %v7468, 0.0
        %v7501 = vmax.f32 %v7469, 0.0
        %v7502 = vmax.f32 %v7470, 0.0
        %v7503 = vmax.f32 %v7471, 0.0
        %v7504 = vmax.f32 %v7472, 0.0
        %v7505 = vmax.f32 %v7473, 0.0
        %v7506 = vmax.f32 %v7474, 0.0
        %7507 = vst [vmem:[%s298] sm:$0xff] %v7475
        %7508 = vst [vmem:[%s298 + $0x8] sm:$0xff] %v7476
        %7509 = vst [vmem:[%s298 + $0x10] sm:$0xff] %v7477
        %7510 = vst [vmem:[%s298 + $0x18] sm:$0xff] %v7478
        %7511 = vst [vmem:[%s298 + $0x20] sm:$0xff] %v7479
        %7512 = vst [vmem:[%s298 + $0x28] sm:$0xff] %v7480
        %7513 = vst [vmem:[%s298 + $0x30] sm:$0xff] %v7481
        %7514 = vst [vmem:[%s298 + $0x38] sm:$0xff] %v7482
        %7515 = vst [vmem:[%s298 + $0x40] sm:$0xff] %v7483
        %7516 = vst [vmem:[%s298 + $0x48] sm:$0xff] %v7484
        %7517 = vst [vmem:[%s298 + $0x50] sm:$0xff] %v7485
        %7518 = vst [vmem:[%s298 + $0x58] sm:$0xff] %v7486
        %7519 = vst [vmem:[%s298 + $0x60] sm:$0xff] %v7487
        %7520 = vst [vmem:[%s298 + $0x68] sm:$0xff] %v7488
        %7521 = vst [vmem:[%s298 + $0x70] sm:$0xff] %v7489
        %7522 = vst [vmem:[%s298 + $0x78] sm:$0xff] %v7490
        %7523 = vst [vmem:[%s298 + $0x80] sm:$0xff] %v7491
        %7524 = vst [vmem:[%s298 + $0x88] sm:$0xff] %v7492
        %7525 = vst [vmem:[%s298 + $0x90] sm:$0xff] %v7493
        %7526 = vst [vmem:[%s298 + $0x98] sm:$0xff] %v7494
        %7527 = vst [vmem:[%s298 + $0xa0] sm:$0xff] %v7495
        %7528 = vst [vmem:[%s298 + $0xa8] sm:$0xff] %v7496
        %7529 = vst [vmem:[%s298 + $0xb0] sm:$0xff] %v7497
        %7530 = vst [vmem:[%s298 + $0xb8] sm:$0xff] %v7498
        %7531 = vst [vmem:[%s298 + $0xc0] sm:$0xff] %v7499
        %7532 = vst [vmem:[%s298 + $0xc8] sm:$0xff] %v7500
        %7533 = vst [vmem:[%s298 + $0xd0] sm:$0xff] %v7501
        %7534 = vst [vmem:[%s298 + $0xd8] sm:$0xff] %v7502
        %7535 = vst [vmem:[%s298 + $0xe0] sm:$0xff] %v7503
        %7536 = vst [vmem:[%s298 + $0xe8] sm:$0xff] %v7504
        %7537 = vst [vmem:[%s298 + $0xf0] sm:$0xff] %v7505
        %7538 = vst [vmem:[%s298 + $0xf8] sm:$0xff] %v7506
        %s7539 = sand.u32 %s203, 1
        %s7540 = scalar_lea.sflag [#allocation3], %s7539
        %s7541 = sand.u32 %s203, 1
        %s7542 = smul.addr %s7541, 256
        %s7543 = scalar_lea.vmem [#allocation2], %s7542
        // Predicated region
        $region53: #{tpu_custom_call.1} parent=51 // pred_check
          %p7544 = pneg %p213
        $region54: #{tpu_custom_call.1} parent=51 // pred_check_branch
          %7546 = sbr.rel (%p7544) target = $region56
        $region55: #{tpu_custom_call.1} parent=51 // pred_region
          %s7547 = smul.u32 32, %s22
          %s7549 = ssub.s32 4096, 4096
          %7550 = vsyncadd %s7540, %s7549
          %s7551 = smul.addr %s7547, 128
          %s7552 = scalar_lea.hbm %s8, %s7551
          %s7553 = sshll.u32 %s7543, 4
          %s7554 = int_to_ptr.vmem [resolvable:$true] %s7553
          %7559 = dma.vmem_to_hbm [thread:$0]  %s7554, 4096, %s7552, %s7540, 128, 128, 8
        $region56: #{tpu_custom_call.1} parent=51 // pred_fallthru
          _
      $region52: #{tpu_custom_call.1} parent=5 // pred_fallthru
        _
      %p7560 = scmp.le.s32.totalorder 2, %s17
      // Predicated region
      $region57: #{tpu_custom_call.1} parent=5 // pred_check
        %p7561 = pneg %p7560
      $region58: #{tpu_custom_call.1} parent=5 // pred_check_branch
        %7563 = sbr.rel (%p7561) target = $region60
      $region59: #{tpu_custom_call.1} parent=5 // pred_region
        %s7564 = ssub.s32 %s17, 2
        // Predicated region
        $region61: #{tpu_custom_call.1} parent=59 // pred_check
          %p7565 = pneg %p219
        $region62: #{tpu_custom_call.1} parent=59 // pred_check_branch
          %7567 = sbr.rel (%p7565) target = $region64
        $region63: #{tpu_custom_call.1} parent=59 // pred_region
          %s7568 = sand.u32 %s204, 1
          %s7569 = scalar_lea.sflag [#allocation3], %s7568
          %s7570 = sand.u32 %s204, 1
          %s7571 = smul.addr %s7570, 256
          %s7572 = scalar_lea.vmem [#allocation2], %s7571
          %7573 = dma.done %s7569, 4096
        $region64: #{tpu_custom_call.1} parent=59 // pred_fallthru
          _
      $region60: #{tpu_custom_call.1} parent=5 // pred_fallthru
        _
    $region6: #{tpu_custom_call.1} parent=1 // loop_footer
      %s21 = sadd.s32 1, %s17
    $region7: #{tpu_custom_call.1} parent=1 // loop_footer_branch
      %16 = sbr.rel target = $region3
    $region8: #{tpu_custom_call.1} parent=1 // loop_exit
      _
    %7574 = vsyncpa [#allocation3], 1
    %s7575 = scalar_lea.sflag [#allocation3], 1
    %7576 = vsyncpa %s7575, 1

</llo_original>
